<compile_context>
chip_gen: v7x
topology: tpu7x:2x2x1
jax: 0.10.0
libtpu: 0.0.40
codegen_flags: <defaults>
</compile_context>

<pallas_src>
import functools
import math

import jax
import jax.numpy as jnp
from jax.experimental import pallas as pl
from jax.experimental.pallas import tpu as pltpu

# ---------------- small synthetic SigLIP-style config ----------------------
BATCH = 2
CHANNELS = 3
IMAGE_SIZE = 16
PATCH_SIZE = 8
NUM_PATCHES = (IMAGE_SIZE // PATCH_SIZE) ** 2      # 4
EMBED_DIM = 32
NUM_HEADS = 4
HEAD_DIM = EMBED_DIM // NUM_HEADS                  # 8
INTERMEDIATE = 64
NUM_LAYERS = 2
EPS = 1e-6
PATCH_FEATS = CHANNELS * PATCH_SIZE * PATCH_SIZE   # 192


# ---------------- fused whole-encoder Pallas kernel -------------------------
def _encoder_kernel(
    patches_ref,   # (1, T, C*P*P)   per-batch patch block
    pos_ref,       # (T, D)
    pw_ref,        # (C*P*P, D)
    pb_ref,        # (1, D)
    ln1w_ref,      # (L, 1, D)
    ln1b_ref,      # (L, 1, D)
    wqkv_ref,      # (L, D, 3D)
    bqkv_ref,      # (L, 1, 3D)
    wo_ref,        # (L, D, D)
    bo_ref,        # (L, 1, D)
    ln2w_ref,      # (L, 1, D)
    ln2b_ref,      # (L, 1, D)
    w1_ref,        # (L, D, I)
    b1_ref,        # (L, 1, I)
    w2_ref,        # (L, I, D)
    b2_ref,        # (L, 1, D)
    flnw_ref,      # (1, D)
    flnb_ref,      # (1, D)
    o_ref,         # (1, T, D)
):
  def layer_norm(x, w, b):
    mean = jnp.mean(x, axis=-1, keepdims=True)
    var = jnp.mean((x - mean) ** 2, axis=-1, keepdims=True)
    return (x - mean) * jax.lax.rsqrt(var + EPS) * w + b

  def gelu_tanh(x):
    c = math.sqrt(2.0 / math.pi)
    return 0.5 * x * (1.0 + jnp.tanh(c * (x + 0.044715 * x * x * x)))

  # ---- patch embedding (conv-as-matmul) + positional embedding ----
  p = patches_ref[0]                                                 # [T, CPP]
  x = jnp.dot(p, pw_ref[...], preferred_element_type=jnp.float32)
  x = x + pb_ref[...] + pos_ref[...]                                 # [T, D]

  scale = 1.0 / math.sqrt(HEAD_DIM)

  for l in range(NUM_LAYERS):                     # short fixed loop -> unrolled
    # ---------------- self-attention block (pre-norm) ----------------
    y = layer_norm(x, ln1w_ref[l], ln1b_ref[l])
    qkv = jnp.dot(y, wqkv_ref[l],
                  preferred_element_type=jnp.float32) + bqkv_ref[l]  # [T, 3D]
    q = qkv[:, :EMBED_DIM] * scale
    k = qkv[:, EMBED_DIM:2 * EMBED_DIM]
    v = qkv[:, 2 * EMBED_DIM:]

    wo = wo_ref[l]                                                   # [D, D]
    acc = jnp.zeros_like(x)                                          # attn @ Wo accumulator
    for h in range(NUM_HEADS):
      sl = slice(h * HEAD_DIM, (h + 1) * HEAD_DIM)
      qh, kh, vh = q[:, sl], k[:, sl], v[:, sl]                      # [T, hd]
      # scores: contract over head_dim (no explicit transpose needed)
      s = jax.lax.dot_general(qh, kh, (((1,), (1,)), ((), ())),
                              preferred_element_type=jnp.float32)    # [T, T]
      s = s - jnp.max(s, axis=-1, keepdims=True)
      ph = jnp.exp(s)
      ph = ph * pl.reciprocal(jnp.sum(ph, axis=-1, keepdims=True),
                              approx=True)
      oh = jnp.dot(ph, vh, preferred_element_type=jnp.float32)       # [T, hd]
      # out-projection folded in per head: concat(oh) @ Wo == sum_h oh @ Wo[h*hd:(h+1)*hd]
      acc = acc + jnp.dot(oh, wo[sl, :], preferred_element_type=jnp.float32)
    x = x + acc + bo_ref[l]                                          # fused residual

    # ---------------- MLP block (pre-norm, gelu_tanh) ----------------
    y = layer_norm(x, ln2w_ref[l], ln2b_ref[l])
    hid = gelu_tanh(jnp.dot(y, w1_ref[l],
                            preferred_element_type=jnp.float32) + b1_ref[l])
    x = x + jnp.dot(hid, w2_ref[l],
                    preferred_element_type=jnp.float32) + b2_ref[l]  # fused residual

  # ---- final LayerNorm ----
  o_ref[0] = layer_norm(x, flnw_ref[...], flnb_ref[...]).astype(o_ref.dtype)


# ---------------- wrapper: one pallas_call for the whole encoder ------------
def vision_encoder(pixel_values, params):
  B, C, H, W = pixel_values.shape
  hp, wp = H // PATCH_SIZE, W // PATCH_SIZE
  T = hp * wp
  CPP = C * PATCH_SIZE * PATCH_SIZE

  # Patch extraction: per-patch flattening order (C, kh, kw) matches the PyTorch
  # Conv2d weight layout (out, in, kh, kw), so conv == matmul on these patches.
  patches = pixel_values.reshape(B, C, hp, PATCH_SIZE, wp, PATCH_SIZE)
  patches = patches.transpose(0, 2, 4, 1, 3, 5).reshape(B, T, CPP)

  L, D, I = NUM_LAYERS, EMBED_DIM, INTERMEDIATE

  def rep_spec(shape):
    n = len(shape)
    return pl.BlockSpec(shape, lambda b, _n=n: (0,) * _n)

  inputs = (
      patches,                                        # (B, T, CPP)
      params["pos_emb"],                              # (T, D)
      params["patch_w"],                              # (CPP, D)
      params["patch_b"].reshape(1, D),
      params["ln1_w"].reshape(L, 1, D),
      params["ln1_b"].reshape(L, 1, D),
      params["wqkv"],                                 # (L, D, 3D)
      params["bqkv"].reshape(L, 1, 3 * D),
      params["wo"],                                   # (L, D, D)
      params["bo"].reshape(L, 1, D),
      params["ln2_w"].reshape(L, 1, D),
      params["ln2_b"].reshape(L, 1, D),
      params["w1"],                                   # (L, D, I)
      params["b1"].reshape(L, 1, I),
      params["w2"],                                   # (L, I, D)
      params["b2"].reshape(L, 1, D),
      params["final_ln_w"].reshape(1, D),
      params["final_ln_b"].reshape(1, D),
  )

  in_specs = [pl.BlockSpec((1, T, CPP), lambda b: (b, 0, 0))]
  in_specs += [rep_spec(a.shape) for a in inputs[1:]]

  out = pl.pallas_call(
      _encoder_kernel,
      grid=(B,),
      in_specs=in_specs,
      out_specs=pl.BlockSpec((1, T, D), lambda b: (b, 0, 0)),
      out_shape=jax.ShapeDtypeStruct((B, T, D), jnp.float32),
      compiler_params=pltpu.CompilerParams(
          dimension_semantics=("parallel",)),   # shard batch across TCs (v7x)
  )(*inputs)
  return out


# ---------------- deterministic parameter init ------------------------------
def init_params(key):
  def normal(k, shape, scale=0.02):
    return scale * jax.random.normal(k, shape, jnp.float32)

  keys = iter(jax.random.split(key, 32))
  L, D, I = NUM_LAYERS, EMBED_DIM, INTERMEDIATE
  return {
      "patch_w": normal(next(keys), (PATCH_FEATS, D)),
      "patch_b": normal(next(keys), (D,)),
      "pos_emb": normal(next(keys), (NUM_PATCHES, D)),
      "ln1_w": jnp.ones((L, D), jnp.float32),
      "ln1_b": jnp.zeros((L, D), jnp.float32),
      "wqkv": normal(next(keys), (L, D, 3 * D)),      # fused q,k,v projection
      "bqkv": normal(next(keys), (L, 3 * D)),
      "wo": normal(next(keys), (L, D, D)),
      "bo": normal(next(keys), (L, D)),
      "ln2_w": jnp.ones((L, D), jnp.float32),
      "ln2_b": jnp.zeros((L, D), jnp.float32),
      "w1": normal(next(keys), (L, D, I)),
      "b1": normal(next(keys), (L, I)),
      "w2": normal(next(keys), (L, I, D)),
      "b2": normal(next(keys), (L, D)),
      "final_ln_w": jnp.ones((D,), jnp.float32),
      "final_ln_b": jnp.zeros((D,), jnp.float32),
  }


# ---------------- main -------------------------------------------------------
if __name__ == "__main__":
  root = jax.random.PRNGKey(0)
  k_pix, k_par = jax.random.split(root)
  pixel_values = jax.random.normal(
      k_pix, (BATCH, CHANNELS, IMAGE_SIZE, IMAGE_SIZE), jnp.float32)
  params = init_params(k_par)

  out = jax.jit(vision_encoder)(pixel_values, params)
  out = jax.block_until_ready(out)
  assert out.shape == (BATCH, NUM_PATCHES, EMBED_DIM), out.shape
  assert jnp.all(jnp.isfinite(out))
  print("KERNEL_OK")
</pallas_src>

<mosaic_0001>
module attributes {stable_mosaic.version = 11 : i64} {
  func.func @_encoder_kernel(%arg0: i32, %arg1: memref<1x4x192xf32, #tpu.memory_space<vmem>>, %arg2: memref<4x32xf32, #tpu.memory_space<vmem>>, %arg3: memref<192x32xf32, #tpu.memory_space<vmem>>, %arg4: memref<1x32xf32, #tpu.memory_space<vmem>>, %arg5: memref<2x1x32xf32, #tpu.memory_space<vmem>>, %arg6: memref<2x1x32xf32, #tpu.memory_space<vmem>>, %arg7: memref<2x32x96xf32, #tpu.memory_space<vmem>>, %arg8: memref<2x1x96xf32, #tpu.memory_space<vmem>>, %arg9: memref<2x32x32xf32, #tpu.memory_space<vmem>>, %arg10: memref<2x1x32xf32, #tpu.memory_space<vmem>>, %arg11: memref<2x1x32xf32, #tpu.memory_space<vmem>>, %arg12: memref<2x1x32xf32, #tpu.memory_space<vmem>>, %arg13: memref<2x32x64xf32, #tpu.memory_space<vmem>>, %arg14: memref<2x1x64xf32, #tpu.memory_space<vmem>>, %arg15: memref<2x64x32xf32, #tpu.memory_space<vmem>>, %arg16: memref<2x1x32xf32, #tpu.memory_space<vmem>>, %arg17: memref<1x32xf32, #tpu.memory_space<vmem>>, %arg18: memref<1x32xf32, #tpu.memory_space<vmem>>, %arg19: memref<1x4x32xf32, #tpu.memory_space<vmem>>) attributes {dimension_semantics = [#tpu.dimension_semantics<parallel>], iteration_bounds = array<i64: 2>, scalar_prefetch = 0 : i64, scratch_operands = 0 : i64, tpu.core_type = #tpu.core_type<tc>, window_params = [{transform_indices = @transform_0, window_bounds = array<i64: 1, 4, 192>}, {pipeline_mode = #tpu.pipeline_mode<synchronous>, transform_indices = @transform_1, window_bounds = array<i64: 4, 32>}, {pipeline_mode = #tpu.pipeline_mode<synchronous>, transform_indices = @transform_2, window_bounds = array<i64: 192, 32>}, {pipeline_mode = #tpu.pipeline_mode<synchronous>, transform_indices = @transform_3, window_bounds = array<i64: 1, 32>}, {pipeline_mode = #tpu.pipeline_mode<synchronous>, transform_indices = @transform_4, window_bounds = array<i64: 2, 1, 32>}, {pipeline_mode = #tpu.pipeline_mode<synchronous>, transform_indices = @transform_5, window_bounds = array<i64: 2, 1, 32>}, {pipeline_mode = #tpu.pipeline_mode<synchronous>, transform_indices = @transform_6, window_bounds = array<i64: 2, 32, 96>}, {pipeline_mode = #tpu.pipeline_mode<synchronous>, transform_indices = @transform_7, window_bounds = array<i64: 2, 1, 96>}, {pipeline_mode = #tpu.pipeline_mode<synchronous>, transform_indices = @transform_8, window_bounds = array<i64: 2, 32, 32>}, {pipeline_mode = #tpu.pipeline_mode<synchronous>, transform_indices = @transform_9, window_bounds = array<i64: 2, 1, 32>}, {pipeline_mode = #tpu.pipeline_mode<synchronous>, transform_indices = @transform_10, window_bounds = array<i64: 2, 1, 32>}, {pipeline_mode = #tpu.pipeline_mode<synchronous>, transform_indices = @transform_11, window_bounds = array<i64: 2, 1, 32>}, {pipeline_mode = #tpu.pipeline_mode<synchronous>, transform_indices = @transform_12, window_bounds = array<i64: 2, 32, 64>}, {pipeline_mode = #tpu.pipeline_mode<synchronous>, transform_indices = @transform_13, window_bounds = array<i64: 2, 1, 64>}, {pipeline_mode = #tpu.pipeline_mode<synchronous>, transform_indices = @transform_14, window_bounds = array<i64: 2, 64, 32>}, {pipeline_mode = #tpu.pipeline_mode<synchronous>, transform_indices = @transform_15, window_bounds = array<i64: 2, 1, 32>}, {pipeline_mode = #tpu.pipeline_mode<synchronous>, transform_indices = @transform_16, window_bounds = array<i64: 1, 32>}, {pipeline_mode = #tpu.pipeline_mode<synchronous>, transform_indices = @transform_17, window_bounds = array<i64: 1, 32>}, {transform_indices = @transform_18, window_bounds = array<i64: 1, 4, 32>}]} {
    %c0 = arith.constant 0 : index
    %c0_0 = arith.constant 0 : index
    %c0_1 = arith.constant 0 : index
    %0 = vector.load %arg1[%c0, %c0_0, %c0_1] : memref<1x4x192xf32, #tpu.memory_space<vmem>>, vector<1x4x192xf32>
    %1 = vector.shape_cast %0 : vector<1x4x192xf32> to vector<4x192xf32>
    %c0_2 = arith.constant 0 : index
    %c0_3 = arith.constant 0 : index
    %2 = vector.load %arg3[%c0_2, %c0_3] : memref<192x32xf32, #tpu.memory_space<vmem>>, vector<192x32xf32>
    %cst = arith.constant dense<0.000000e+00> : vector<4x32xf32>
    %3 = tpu.matmul %1, %2, %cst {dimension_numbers = #tpu.dot_dimension_numbers<[1], [0], [0], [1], [0, 0, 1, 1], [], []>} : vector<4x192xf32>, vector<192x32xf32>, vector<4x32xf32> -> vector<4x32xf32>
    %c0_4 = arith.constant 0 : index
    %c0_5 = arith.constant 0 : index
    %4 = vector.load %arg4[%c0_4, %c0_5] : memref<1x32xf32, #tpu.memory_space<vmem>>, vector<1x32xf32>
    %5 = vector.broadcast %4 : vector<1x32xf32> to vector<4x32xf32>
    %6 = arith.addf %3, %5 : vector<4x32xf32>
    %c0_6 = arith.constant 0 : index
    %c0_7 = arith.constant 0 : index
    %7 = vector.load %arg2[%c0_6, %c0_7] : memref<4x32xf32, #tpu.memory_space<vmem>>, vector<4x32xf32>
    %8 = arith.addf %6, %7 : vector<4x32xf32>
    %c0_8 = arith.constant 0 : index
    %c0_9 = arith.constant 0 : index
    %c0_10 = arith.constant 0 : index
    %9 = vector.load %arg5[%c0_8, %c0_9, %c0_10] : memref<2x1x32xf32, #tpu.memory_space<vmem>>, vector<1x1x32xf32>
    %10 = vector.shape_cast %9 : vector<1x1x32xf32> to vector<1x32xf32>
    %c0_11 = arith.constant 0 : index
    %c0_12 = arith.constant 0 : index
    %c0_13 = arith.constant 0 : index
    %11 = vector.load %arg6[%c0_11, %c0_12, %c0_13] : memref<2x1x32xf32, #tpu.memory_space<vmem>>, vector<1x1x32xf32>
    %12 = vector.shape_cast %11 : vector<1x1x32xf32> to vector<1x32xf32>
    %cst_14 = arith.constant dense<0.000000e+00> : vector<4xf32>
    %13 = vector.multi_reduction <add>, %8, %cst_14 [1] : vector<4x32xf32> to vector<4xf32>
    %14 = vector.shape_cast %13 : vector<4xf32> to vector<4x1xf32>
    %cst_15 = arith.constant 3.200000e+01 : f32
    %15 = vector.broadcast %cst_15 : f32 to vector<4x1xf32>
    %16 = arith.divf %14, %15 : vector<4x1xf32>
    %17 = vector.broadcast %16 : vector<4x1xf32> to vector<4x32xf32>
    %18 = arith.subf %8, %17 : vector<4x32xf32>
    %19 = arith.mulf %18, %18 : vector<4x32xf32>
    %cst_16 = arith.constant dense<0.000000e+00> : vector<4xf32>
    %20 = vector.multi_reduction <add>, %19, %cst_16 [1] : vector<4x32xf32> to vector<4xf32>
    %21 = vector.shape_cast %20 : vector<4xf32> to vector<4x1xf32>
    %cst_17 = arith.constant 3.200000e+01 : f32
    %22 = vector.broadcast %cst_17 : f32 to vector<4x1xf32>
    %23 = arith.divf %21, %22 : vector<4x1xf32>
    %24 = vector.broadcast %16 : vector<4x1xf32> to vector<4x32xf32>
    %25 = arith.subf %8, %24 : vector<4x32xf32>
    %cst_18 = arith.constant 9.99999997E-7 : f32
    %26 = vector.broadcast %cst_18 : f32 to vector<4x1xf32>
    %27 = arith.addf %23, %26 : vector<4x1xf32>
    %28 = math.rsqrt %27 : vector<4x1xf32>
    %29 = vector.broadcast %28 : vector<4x1xf32> to vector<4x32xf32>
    %30 = arith.mulf %25, %29 : vector<4x32xf32>
    %31 = vector.broadcast %10 : vector<1x32xf32> to vector<4x32xf32>
    %32 = arith.mulf %30, %31 : vector<4x32xf32>
    %33 = vector.broadcast %12 : vector<1x32xf32> to vector<4x32xf32>
    %34 = arith.addf %32, %33 : vector<4x32xf32>
    %c0_19 = arith.constant 0 : index
    %c0_20 = arith.constant 0 : index
    %c0_21 = arith.constant 0 : index
    %35 = vector.load %arg7[%c0_19, %c0_20, %c0_21] : memref<2x32x96xf32, #tpu.memory_space<vmem>>, vector<1x32x96xf32>
    %36 = vector.shape_cast %35 : vector<1x32x96xf32> to vector<32x96xf32>
    %cst_22 = arith.constant dense<0.000000e+00> : vector<4x96xf32>
    %37 = tpu.matmul %34, %36, %cst_22 {dimension_numbers = #tpu.dot_dimension_numbers<[1], [0], [0], [1], [0, 0, 1, 1], [], []>} : vector<4x32xf32>, vector<32x96xf32>, vector<4x96xf32> -> vector<4x96xf32>
    %c0_23 = arith.constant 0 : index
    %c0_24 = arith.constant 0 : index
    %c0_25 = arith.constant 0 : index
    %38 = vector.load %arg8[%c0_23, %c0_24, %c0_25] : memref<2x1x96xf32, #tpu.memory_space<vmem>>, vector<1x1x96xf32>
    %39 = vector.shape_cast %38 : vector<1x1x96xf32> to vector<1x96xf32>
    %40 = vector.broadcast %39 : vector<1x96xf32> to vector<4x96xf32>
    %41 = arith.addf %37, %40 : vector<4x96xf32>
    %42 = vector.extract_strided_slice %41 {offsets = [0, 0], sizes = [4, 32], strides = [1, 1]} : vector<4x96xf32> to vector<4x32xf32>
    %cst_26 = arith.constant 0.353553385 : f32
    %43 = vector.broadcast %cst_26 : f32 to vector<4x32xf32>
    %44 = arith.mulf %42, %43 : vector<4x32xf32>
    %45 = vector.extract_strided_slice %41 {offsets = [0, 32], sizes = [4, 32], strides = [1, 1]} : vector<4x96xf32> to vector<4x32xf32>
    %46 = vector.extract_strided_slice %41 {offsets = [0, 64], sizes = [4, 32], strides = [1, 1]} : vector<4x96xf32> to vector<4x32xf32>
    %c0_27 = arith.constant 0 : index
    %c0_28 = arith.constant 0 : index
    %c0_29 = arith.constant 0 : index
    %47 = vector.load %arg9[%c0_27, %c0_28, %c0_29] : memref<2x32x32xf32, #tpu.memory_space<vmem>>, vector<1x32x32xf32>
    %48 = vector.shape_cast %47 : vector<1x32x32xf32> to vector<32x32xf32>
    %cst_30 = arith.constant 0.000000e+00 : f32
    %49 = vector.broadcast %cst_30 : f32 to vector<4x32xf32>
    %50 = vector.extract_strided_slice %44 {offsets = [0, 0], sizes = [4, 8], strides = [1, 1]} : vector<4x32xf32> to vector<4x8xf32>
    %51 = vector.extract_strided_slice %45 {offsets = [0, 0], sizes = [4, 8], strides = [1, 1]} : vector<4x32xf32> to vector<4x8xf32>
    %52 = vector.extract_strided_slice %46 {offsets = [0, 0], sizes = [4, 8], strides = [1, 1]} : vector<4x32xf32> to vector<4x8xf32>
    %cst_31 = arith.constant dense<0.000000e+00> : vector<4x4xf32>
    %53 = tpu.matmul %50, %51, %cst_31 {dimension_numbers = #tpu.dot_dimension_numbers<[1], [1], [0], [0], [0, 0, 1, 0], [], []>} : vector<4x8xf32>, vector<4x8xf32>, vector<4x4xf32> -> vector<4x4xf32>
    %cst_32 = arith.constant dense<0xFF800000> : vector<4xf32>
    %54 = vector.multi_reduction <maximumf>, %53, %cst_32 [1] : vector<4x4xf32> to vector<4xf32>
    %55 = vector.shape_cast %54 : vector<4xf32> to vector<4x1xf32>
    %56 = vector.broadcast %55 : vector<4x1xf32> to vector<4x4xf32>
    %57 = arith.subf %53, %56 : vector<4x4xf32>
    %58 = math.exp %57 : vector<4x4xf32>
    %cst_33 = arith.constant dense<0.000000e+00> : vector<4xf32>
    %59 = vector.multi_reduction <add>, %58, %cst_33 [1] : vector<4x4xf32> to vector<4xf32>
    %60 = vector.shape_cast %59 : vector<4xf32> to vector<4x1xf32>
    %61 = tpu.reciprocal %60 {approx = true} : vector<4x1xf32> -> vector<4x1xf32>
    %62 = vector.broadcast %61 : vector<4x1xf32> to vector<4x4xf32>
    %63 = arith.mulf %58, %62 : vector<4x4xf32>
    %cst_34 = arith.constant dense<0.000000e+00> : vector<4x8xf32>
    %64 = tpu.matmul %63, %52, %cst_34 {dimension_numbers = #tpu.dot_dimension_numbers<[1], [0], [0], [1], [0, 0, 1, 1], [], []>} : vector<4x4xf32>, vector<4x8xf32>, vector<4x8xf32> -> vector<4x8xf32>
    %65 = vector.extract_strided_slice %48 {offsets = [0, 0], sizes = [8, 32], strides = [1, 1]} : vector<32x32xf32> to vector<8x32xf32>
    %cst_35 = arith.constant dense<0.000000e+00> : vector<4x32xf32>
    %66 = tpu.matmul %64, %65, %cst_35 {dimension_numbers = #tpu.dot_dimension_numbers<[1], [0], [0], [1], [0, 0, 1, 1], [], []>} : vector<4x8xf32>, vector<8x32xf32>, vector<4x32xf32> -> vector<4x32xf32>
    %67 = arith.addf %49, %66 : vector<4x32xf32>
    %68 = vector.extract_strided_slice %44 {offsets = [0, 8], sizes = [4, 8], strides = [1, 1]} : vector<4x32xf32> to vector<4x8xf32>
    %69 = vector.extract_strided_slice %45 {offsets = [0, 8], sizes = [4, 8], strides = [1, 1]} : vector<4x32xf32> to vector<4x8xf32>
    %70 = vector.extract_strided_slice %46 {offsets = [0, 8], sizes = [4, 8], strides = [1, 1]} : vector<4x32xf32> to vector<4x8xf32>
    %cst_36 = arith.constant dense<0.000000e+00> : vector<4x4xf32>
    %71 = tpu.matmul %68, %69, %cst_36 {dimension_numbers = #tpu.dot_dimension_numbers<[1], [1], [0], [0], [0, 0, 1, 0], [], []>} : vector<4x8xf32>, vector<4x8xf32>, vector<4x4xf32> -> vector<4x4xf32>
    %cst_37 = arith.constant dense<0xFF800000> : vector<4xf32>
    %72 = vector.multi_reduction <maximumf>, %71, %cst_37 [1] : vector<4x4xf32> to vector<4xf32>
    %73 = vector.shape_cast %72 : vector<4xf32> to vector<4x1xf32>
    %74 = vector.broadcast %73 : vector<4x1xf32> to vector<4x4xf32>
    %75 = arith.subf %71, %74 : vector<4x4xf32>
    %76 = math.exp %75 : vector<4x4xf32>
    %cst_38 = arith.constant dense<0.000000e+00> : vector<4xf32>
    %77 = vector.multi_reduction <add>, %76, %cst_38 [1] : vector<4x4xf32> to vector<4xf32>
    %78 = vector.shape_cast %77 : vector<4xf32> to vector<4x1xf32>
    %79 = tpu.reciprocal %78 {approx = true} : vector<4x1xf32> -> vector<4x1xf32>
    %80 = vector.broadcast %79 : vector<4x1xf32> to vector<4x4xf32>
    %81 = arith.mulf %76, %80 : vector<4x4xf32>
    %cst_39 = arith.constant dense<0.000000e+00> : vector<4x8xf32>
    %82 = tpu.matmul %81, %70, %cst_39 {dimension_numbers = #tpu.dot_dimension_numbers<[1], [0], [0], [1], [0, 0, 1, 1], [], []>} : vector<4x4xf32>, vector<4x8xf32>, vector<4x8xf32> -> vector<4x8xf32>
    %83 = vector.extract_strided_slice %48 {offsets = [8, 0], sizes = [8, 32], strides = [1, 1]} : vector<32x32xf32> to vector<8x32xf32>
    %cst_40 = arith.constant dense<0.000000e+00> : vector<4x32xf32>
    %84 = tpu.matmul %82, %83, %cst_40 {dimension_numbers = #tpu.dot_dimension_numbers<[1], [0], [0], [1], [0, 0, 1, 1], [], []>} : vector<4x8xf32>, vector<8x32xf32>, vector<4x32xf32> -> vector<4x32xf32>
    %85 = arith.addf %67, %84 : vector<4x32xf32>
    %86 = vector.extract_strided_slice %44 {offsets = [0, 16], sizes = [4, 8], strides = [1, 1]} : vector<4x32xf32> to vector<4x8xf32>
    %87 = vector.extract_strided_slice %45 {offsets = [0, 16], sizes = [4, 8], strides = [1, 1]} : vector<4x32xf32> to vector<4x8xf32>
    %88 = vector.extract_strided_slice %46 {offsets = [0, 16], sizes = [4, 8], strides = [1, 1]} : vector<4x32xf32> to vector<4x8xf32>
    %cst_41 = arith.constant dense<0.000000e+00> : vector<4x4xf32>
    %89 = tpu.matmul %86, %87, %cst_41 {dimension_numbers = #tpu.dot_dimension_numbers<[1], [1], [0], [0], [0, 0, 1, 0], [], []>} : vector<4x8xf32>, vector<4x8xf32>, vector<4x4xf32> -> vector<4x4xf32>
    %cst_42 = arith.constant dense<0xFF800000> : vector<4xf32>
    %90 = vector.multi_reduction <maximumf>, %89, %cst_42 [1] : vector<4x4xf32> to vector<4xf32>
    %91 = vector.shape_cast %90 : vector<4xf32> to vector<4x1xf32>
    %92 = vector.broadcast %91 : vector<4x1xf32> to vector<4x4xf32>
    %93 = arith.subf %89, %92 : vector<4x4xf32>
    %94 = math.exp %93 : vector<4x4xf32>
    %cst_43 = arith.constant dense<0.000000e+00> : vector<4xf32>
    %95 = vector.multi_reduction <add>, %94, %cst_43 [1] : vector<4x4xf32> to vector<4xf32>
    %96 = vector.shape_cast %95 : vector<4xf32> to vector<4x1xf32>
    %97 = tpu.reciprocal %96 {approx = true} : vector<4x1xf32> -> vector<4x1xf32>
    %98 = vector.broadcast %97 : vector<4x1xf32> to vector<4x4xf32>
    %99 = arith.mulf %94, %98 : vector<4x4xf32>
    %cst_44 = arith.constant dense<0.000000e+00> : vector<4x8xf32>
    %100 = tpu.matmul %99, %88, %cst_44 {dimension_numbers = #tpu.dot_dimension_numbers<[1], [0], [0], [1], [0, 0, 1, 1], [], []>} : vector<4x4xf32>, vector<4x8xf32>, vector<4x8xf32> -> vector<4x8xf32>
    %101 = vector.extract_strided_slice %48 {offsets = [16, 0], sizes = [8, 32], strides = [1, 1]} : vector<32x32xf32> to vector<8x32xf32>
    %cst_45 = arith.constant dense<0.000000e+00> : vector<4x32xf32>
    %102 = tpu.matmul %100, %101, %cst_45 {dimension_numbers = #tpu.dot_dimension_numbers<[1], [0], [0], [1], [0, 0, 1, 1], [], []>} : vector<4x8xf32>, vector<8x32xf32>, vector<4x32xf32> -> vector<4x32xf32>
    %103 = arith.addf %85, %102 : vector<4x32xf32>
    %104 = vector.extract_strided_slice %44 {offsets = [0, 24], sizes = [4, 8], strides = [1, 1]} : vector<4x32xf32> to vector<4x8xf32>
    %105 = vector.extract_strided_slice %45 {offsets = [0, 24], sizes = [4, 8], strides = [1, 1]} : vector<4x32xf32> to vector<4x8xf32>
    %106 = vector.extract_strided_slice %46 {offsets = [0, 24], sizes = [4, 8], strides = [1, 1]} : vector<4x32xf32> to vector<4x8xf32>
    %cst_46 = arith.constant dense<0.000000e+00> : vector<4x4xf32>
    %107 = tpu.matmul %104, %105, %cst_46 {dimension_numbers = #tpu.dot_dimension_numbers<[1], [1], [0], [0], [0, 0, 1, 0], [], []>} : vector<4x8xf32>, vector<4x8xf32>, vector<4x4xf32> -> vector<4x4xf32>
    %cst_47 = arith.constant dense<0xFF800000> : vector<4xf32>
    %108 = vector.multi_reduction <maximumf>, %107, %cst_47 [1] : vector<4x4xf32> to vector<4xf32>
    %109 = vector.shape_cast %108 : vector<4xf32> to vector<4x1xf32>
    %110 = vector.broadcast %109 : vector<4x1xf32> to vector<4x4xf32>
    %111 = arith.subf %107, %110 : vector<4x4xf32>
    %112 = math.exp %111 : vector<4x4xf32>
    %cst_48 = arith.constant dense<0.000000e+00> : vector<4xf32>
    %113 = vector.multi_reduction <add>, %112, %cst_48 [1] : vector<4x4xf32> to vector<4xf32>
    %114 = vector.shape_cast %113 : vector<4xf32> to vector<4x1xf32>
    %115 = tpu.reciprocal %114 {approx = true} : vector<4x1xf32> -> vector<4x1xf32>
    %116 = vector.broadcast %115 : vector<4x1xf32> to vector<4x4xf32>
    %117 = arith.mulf %112, %116 : vector<4x4xf32>
    %cst_49 = arith.constant dense<0.000000e+00> : vector<4x8xf32>
    %118 = tpu.matmul %117, %106, %cst_49 {dimension_numbers = #tpu.dot_dimension_numbers<[1], [0], [0], [1], [0, 0, 1, 1], [], []>} : vector<4x4xf32>, vector<4x8xf32>, vector<4x8xf32> -> vector<4x8xf32>
    %119 = vector.extract_strided_slice %48 {offsets = [24, 0], sizes = [8, 32], strides = [1, 1]} : vector<32x32xf32> to vector<8x32xf32>
    %cst_50 = arith.constant dense<0.000000e+00> : vector<4x32xf32>
    %120 = tpu.matmul %118, %119, %cst_50 {dimension_numbers = #tpu.dot_dimension_numbers<[1], [0], [0], [1], [0, 0, 1, 1], [], []>} : vector<4x8xf32>, vector<8x32xf32>, vector<4x32xf32> -> vector<4x32xf32>
    %121 = arith.addf %103, %120 : vector<4x32xf32>
    %122 = arith.addf %8, %121 : vector<4x32xf32>
    %c0_51 = arith.constant 0 : index
    %c0_52 = arith.constant 0 : index
    %c0_53 = arith.constant 0 : index
    %123 = vector.load %arg10[%c0_51, %c0_52, %c0_53] : memref<2x1x32xf32, #tpu.memory_space<vmem>>, vector<1x1x32xf32>
    %124 = vector.shape_cast %123 : vector<1x1x32xf32> to vector<1x32xf32>
    %125 = vector.broadcast %124 : vector<1x32xf32> to vector<4x32xf32>
    %126 = arith.addf %122, %125 : vector<4x32xf32>
    %c0_54 = arith.constant 0 : index
    %c0_55 = arith.constant 0 : index
    %c0_56 = arith.constant 0 : index
    %127 = vector.load %arg11[%c0_54, %c0_55, %c0_56] : memref<2x1x32xf32, #tpu.memory_space<vmem>>, vector<1x1x32xf32>
    %128 = vector.shape_cast %127 : vector<1x1x32xf32> to vector<1x32xf32>
    %c0_57 = arith.constant 0 : index
    %c0_58 = arith.constant 0 : index
    %c0_59 = arith.constant 0 : index
    %129 = vector.load %arg12[%c0_57, %c0_58, %c0_59] : memref<2x1x32xf32, #tpu.memory_space<vmem>>, vector<1x1x32xf32>
    %130 = vector.shape_cast %129 : vector<1x1x32xf32> to vector<1x32xf32>
    %cst_60 = arith.constant dense<0.000000e+00> : vector<4xf32>
    %131 = vector.multi_reduction <add>, %126, %cst_60 [1] : vector<4x32xf32> to vector<4xf32>
    %132 = vector.shape_cast %131 : vector<4xf32> to vector<4x1xf32>
    %cst_61 = arith.constant 3.200000e+01 : f32
    %133 = vector.broadcast %cst_61 : f32 to vector<4x1xf32>
    %134 = arith.divf %132, %133 : vector<4x1xf32>
    %135 = vector.broadcast %134 : vector<4x1xf32> to vector<4x32xf32>
    %136 = arith.subf %126, %135 : vector<4x32xf32>
    %137 = arith.mulf %136, %136 : vector<4x32xf32>
    %cst_62 = arith.constant dense<0.000000e+00> : vector<4xf32>
    %138 = vector.multi_reduction <add>, %137, %cst_62 [1] : vector<4x32xf32> to vector<4xf32>
    %139 = vector.shape_cast %138 : vector<4xf32> to vector<4x1xf32>
    %cst_63 = arith.constant 3.200000e+01 : f32
    %140 = vector.broadcast %cst_63 : f32 to vector<4x1xf32>
    %141 = arith.divf %139, %140 : vector<4x1xf32>
    %142 = vector.broadcast %134 : vector<4x1xf32> to vector<4x32xf32>
    %143 = arith.subf %126, %142 : vector<4x32xf32>
    %cst_64 = arith.constant 9.99999997E-7 : f32
    %144 = vector.broadcast %cst_64 : f32 to vector<4x1xf32>
    %145 = arith.addf %141, %144 : vector<4x1xf32>
    %146 = math.rsqrt %145 : vector<4x1xf32>
    %147 = vector.broadcast %146 : vector<4x1xf32> to vector<4x32xf32>
    %148 = arith.mulf %143, %147 : vector<4x32xf32>
    %149 = vector.broadcast %128 : vector<1x32xf32> to vector<4x32xf32>
    %150 = arith.mulf %148, %149 : vector<4x32xf32>
    %151 = vector.broadcast %130 : vector<1x32xf32> to vector<4x32xf32>
    %152 = arith.addf %150, %151 : vector<4x32xf32>
    %c0_65 = arith.constant 0 : index
    %c0_66 = arith.constant 0 : index
    %c0_67 = arith.constant 0 : index
    %153 = vector.load %arg13[%c0_65, %c0_66, %c0_67] : memref<2x32x64xf32, #tpu.memory_space<vmem>>, vector<1x32x64xf32>
    %154 = vector.shape_cast %153 : vector<1x32x64xf32> to vector<32x64xf32>
    %cst_68 = arith.constant dense<0.000000e+00> : vector<4x64xf32>
    %155 = tpu.matmul %152, %154, %cst_68 {dimension_numbers = #tpu.dot_dimension_numbers<[1], [0], [0], [1], [0, 0, 1, 1], [], []>} : vector<4x32xf32>, vector<32x64xf32>, vector<4x64xf32> -> vector<4x64xf32>
    %c0_69 = arith.constant 0 : index
    %c0_70 = arith.constant 0 : index
    %c0_71 = arith.constant 0 : index
    %156 = vector.load %arg14[%c0_69, %c0_70, %c0_71] : memref<2x1x64xf32, #tpu.memory_space<vmem>>, vector<1x1x64xf32>
    %157 = vector.shape_cast %156 : vector<1x1x64xf32> to vector<1x64xf32>
    %158 = vector.broadcast %157 : vector<1x64xf32> to vector<4x64xf32>
    %159 = arith.addf %155, %158 : vector<4x64xf32>
    %cst_72 = arith.constant 5.000000e-01 : f32
    %160 = vector.broadcast %cst_72 : f32 to vector<4x64xf32>
    %161 = arith.mulf %160, %159 : vector<4x64xf32>
    %cst_73 = arith.constant 4.471500e-02 : f32
    %162 = vector.broadcast %cst_73 : f32 to vector<4x64xf32>
    %163 = arith.mulf %162, %159 : vector<4x64xf32>
    %164 = arith.mulf %163, %159 : vector<4x64xf32>
    %165 = arith.mulf %164, %159 : vector<4x64xf32>
    %166 = arith.addf %159, %165 : vector<4x64xf32>
    %cst_74 = arith.constant 0.797884583 : f32
    %167 = vector.broadcast %cst_74 : f32 to vector<4x64xf32>
    %168 = arith.mulf %167, %166 : vector<4x64xf32>
    %169 = math.tanh %168 : vector<4x64xf32>
    %cst_75 = arith.constant 1.000000e+00 : f32
    %170 = vector.broadcast %cst_75 : f32 to vector<4x64xf32>
    %171 = arith.addf %170, %169 : vector<4x64xf32>
    %172 = arith.mulf %161, %171 : vector<4x64xf32>
    %c0_76 = arith.constant 0 : index
    %c0_77 = arith.constant 0 : index
    %c0_78 = arith.constant 0 : index
    %173 = vector.load %arg15[%c0_76, %c0_77, %c0_78] : memref<2x64x32xf32, #tpu.memory_space<vmem>>, vector<1x64x32xf32>
    %174 = vector.shape_cast %173 : vector<1x64x32xf32> to vector<64x32xf32>
    %cst_79 = arith.constant dense<0.000000e+00> : vector<4x32xf32>
    %175 = tpu.matmul %172, %174, %cst_79 {dimension_numbers = #tpu.dot_dimension_numbers<[1], [0], [0], [1], [0, 0, 1, 1], [], []>} : vector<4x64xf32>, vector<64x32xf32>, vector<4x32xf32> -> vector<4x32xf32>
    %176 = arith.addf %126, %175 : vector<4x32xf32>
    %c0_80 = arith.constant 0 : index
    %c0_81 = arith.constant 0 : index
    %c0_82 = arith.constant 0 : index
    %177 = vector.load %arg16[%c0_80, %c0_81, %c0_82] : memref<2x1x32xf32, #tpu.memory_space<vmem>>, vector<1x1x32xf32>
    %178 = vector.shape_cast %177 : vector<1x1x32xf32> to vector<1x32xf32>
    %179 = vector.broadcast %178 : vector<1x32xf32> to vector<4x32xf32>
    %180 = arith.addf %176, %179 : vector<4x32xf32>
    %c1 = arith.constant 1 : index
    %c0_83 = arith.constant 0 : index
    %c0_84 = arith.constant 0 : index
    %181 = vector.load %arg5[%c1, %c0_83, %c0_84] : memref<2x1x32xf32, #tpu.memory_space<vmem>>, vector<1x1x32xf32>
    %182 = vector.shape_cast %181 : vector<1x1x32xf32> to vector<1x32xf32>
    %c1_85 = arith.constant 1 : index
    %c0_86 = arith.constant 0 : index
    %c0_87 = arith.constant 0 : index
    %183 = vector.load %arg6[%c1_85, %c0_86, %c0_87] : memref<2x1x32xf32, #tpu.memory_space<vmem>>, vector<1x1x32xf32>
    %184 = vector.shape_cast %183 : vector<1x1x32xf32> to vector<1x32xf32>
    %cst_88 = arith.constant dense<0.000000e+00> : vector<4xf32>
    %185 = vector.multi_reduction <add>, %180, %cst_88 [1] : vector<4x32xf32> to vector<4xf32>
    %186 = vector.shape_cast %185 : vector<4xf32> to vector<4x1xf32>
    %cst_89 = arith.constant 3.200000e+01 : f32
    %187 = vector.broadcast %cst_89 : f32 to vector<4x1xf32>
    %188 = arith.divf %186, %187 : vector<4x1xf32>
    %189 = vector.broadcast %188 : vector<4x1xf32> to vector<4x32xf32>
    %190 = arith.subf %180, %189 : vector<4x32xf32>
    %191 = arith.mulf %190, %190 : vector<4x32xf32>
    %cst_90 = arith.constant dense<0.000000e+00> : vector<4xf32>
    %192 = vector.multi_reduction <add>, %191, %cst_90 [1] : vector<4x32xf32> to vector<4xf32>
    %193 = vector.shape_cast %192 : vector<4xf32> to vector<4x1xf32>
    %cst_91 = arith.constant 3.200000e+01 : f32
    %194 = vector.broadcast %cst_91 : f32 to vector<4x1xf32>
    %195 = arith.divf %193, %194 : vector<4x1xf32>
    %196 = vector.broadcast %188 : vector<4x1xf32> to vector<4x32xf32>
    %197 = arith.subf %180, %196 : vector<4x32xf32>
    %cst_92 = arith.constant 9.99999997E-7 : f32
    %198 = vector.broadcast %cst_92 : f32 to vector<4x1xf32>
    %199 = arith.addf %195, %198 : vector<4x1xf32>
    %200 = math.rsqrt %199 : vector<4x1xf32>
    %201 = vector.broadcast %200 : vector<4x1xf32> to vector<4x32xf32>
    %202 = arith.mulf %197, %201 : vector<4x32xf32>
    %203 = vector.broadcast %182 : vector<1x32xf32> to vector<4x32xf32>
    %204 = arith.mulf %202, %203 : vector<4x32xf32>
    %205 = vector.broadcast %184 : vector<1x32xf32> to vector<4x32xf32>
    %206 = arith.addf %204, %205 : vector<4x32xf32>
    %c1_93 = arith.constant 1 : index
    %c0_94 = arith.constant 0 : index
    %c0_95 = arith.constant 0 : index
    %207 = vector.load %arg7[%c1_93, %c0_94, %c0_95] : memref<2x32x96xf32, #tpu.memory_space<vmem>>, vector<1x32x96xf32>
    %208 = vector.shape_cast %207 : vector<1x32x96xf32> to vector<32x96xf32>
    %cst_96 = arith.constant dense<0.000000e+00> : vector<4x96xf32>
    %209 = tpu.matmul %206, %208, %cst_96 {dimension_numbers = #tpu.dot_dimension_numbers<[1], [0], [0], [1], [0, 0, 1, 1], [], []>} : vector<4x32xf32>, vector<32x96xf32>, vector<4x96xf32> -> vector<4x96xf32>
    %c1_97 = arith.constant 1 : index
    %c0_98 = arith.constant 0 : index
    %c0_99 = arith.constant 0 : index
    %210 = vector.load %arg8[%c1_97, %c0_98, %c0_99] : memref<2x1x96xf32, #tpu.memory_space<vmem>>, vector<1x1x96xf32>
    %211 = vector.shape_cast %210 : vector<1x1x96xf32> to vector<1x96xf32>
    %212 = vector.broadcast %211 : vector<1x96xf32> to vector<4x96xf32>
    %213 = arith.addf %209, %212 : vector<4x96xf32>
    %214 = vector.extract_strided_slice %213 {offsets = [0, 0], sizes = [4, 32], strides = [1, 1]} : vector<4x96xf32> to vector<4x32xf32>
    %cst_100 = arith.constant 0.353553385 : f32
    %215 = vector.broadcast %cst_100 : f32 to vector<4x32xf32>
    %216 = arith.mulf %214, %215 : vector<4x32xf32>
    %217 = vector.extract_strided_slice %213 {offsets = [0, 32], sizes = [4, 32], strides = [1, 1]} : vector<4x96xf32> to vector<4x32xf32>
    %218 = vector.extract_strided_slice %213 {offsets = [0, 64], sizes = [4, 32], strides = [1, 1]} : vector<4x96xf32> to vector<4x32xf32>
    %c1_101 = arith.constant 1 : index
    %c0_102 = arith.constant 0 : index
    %c0_103 = arith.constant 0 : index
    %219 = vector.load %arg9[%c1_101, %c0_102, %c0_103] : memref<2x32x32xf32, #tpu.memory_space<vmem>>, vector<1x32x32xf32>
    %220 = vector.shape_cast %219 : vector<1x32x32xf32> to vector<32x32xf32>
    %cst_104 = arith.constant 0.000000e+00 : f32
    %221 = vector.broadcast %cst_104 : f32 to vector<4x32xf32>
    %222 = vector.extract_strided_slice %216 {offsets = [0, 0], sizes = [4, 8], strides = [1, 1]} : vector<4x32xf32> to vector<4x8xf32>
    %223 = vector.extract_strided_slice %217 {offsets = [0, 0], sizes = [4, 8], strides = [1, 1]} : vector<4x32xf32> to vector<4x8xf32>
    %224 = vector.extract_strided_slice %218 {offsets = [0, 0], sizes = [4, 8], strides = [1, 1]} : vector<4x32xf32> to vector<4x8xf32>
    %cst_105 = arith.constant dense<0.000000e+00> : vector<4x4xf32>
    %225 = tpu.matmul %222, %223, %cst_105 {dimension_numbers = #tpu.dot_dimension_numbers<[1], [1], [0], [0], [0, 0, 1, 0], [], []>} : vector<4x8xf32>, vector<4x8xf32>, vector<4x4xf32> -> vector<4x4xf32>
    %cst_106 = arith.constant dense<0xFF800000> : vector<4xf32>
    %226 = vector.multi_reduction <maximumf>, %225, %cst_106 [1] : vector<4x4xf32> to vector<4xf32>
    %227 = vector.shape_cast %226 : vector<4xf32> to vector<4x1xf32>
    %228 = vector.broadcast %227 : vector<4x1xf32> to vector<4x4xf32>
    %229 = arith.subf %225, %228 : vector<4x4xf32>
    %230 = math.exp %229 : vector<4x4xf32>
    %cst_107 = arith.constant dense<0.000000e+00> : vector<4xf32>
    %231 = vector.multi_reduction <add>, %230, %cst_107 [1] : vector<4x4xf32> to vector<4xf32>
    %232 = vector.shape_cast %231 : vector<4xf32> to vector<4x1xf32>
    %233 = tpu.reciprocal %232 {approx = true} : vector<4x1xf32> -> vector<4x1xf32>
    %234 = vector.broadcast %233 : vector<4x1xf32> to vector<4x4xf32>
    %235 = arith.mulf %230, %234 : vector<4x4xf32>
    %cst_108 = arith.constant dense<0.000000e+00> : vector<4x8xf32>
    %236 = tpu.matmul %235, %224, %cst_108 {dimension_numbers = #tpu.dot_dimension_numbers<[1], [0], [0], [1], [0, 0, 1, 1], [], []>} : vector<4x4xf32>, vector<4x8xf32>, vector<4x8xf32> -> vector<4x8xf32>
    %237 = vector.extract_strided_slice %220 {offsets = [0, 0], sizes = [8, 32], strides = [1, 1]} : vector<32x32xf32> to vector<8x32xf32>
    %cst_109 = arith.constant dense<0.000000e+00> : vector<4x32xf32>
    %238 = tpu.matmul %236, %237, %cst_109 {dimension_numbers = #tpu.dot_dimension_numbers<[1], [0], [0], [1], [0, 0, 1, 1], [], []>} : vector<4x8xf32>, vector<8x32xf32>, vector<4x32xf32> -> vector<4x32xf32>
    %239 = arith.addf %221, %238 : vector<4x32xf32>
    %240 = vector.extract_strided_slice %216 {offsets = [0, 8], sizes = [4, 8], strides = [1, 1]} : vector<4x32xf32> to vector<4x8xf32>
    %241 = vector.extract_strided_slice %217 {offsets = [0, 8], sizes = [4, 8], strides = [1, 1]} : vector<4x32xf32> to vector<4x8xf32>
    %242 = vector.extract_strided_slice %218 {offsets = [0, 8], sizes = [4, 8], strides = [1, 1]} : vector<4x32xf32> to vector<4x8xf32>
    %cst_110 = arith.constant dense<0.000000e+00> : vector<4x4xf32>
    %243 = tpu.matmul %240, %241, %cst_110 {dimension_numbers = #tpu.dot_dimension_numbers<[1], [1], [0], [0], [0, 0, 1, 0], [], []>} : vector<4x8xf32>, vector<4x8xf32>, vector<4x4xf32> -> vector<4x4xf32>
    %cst_111 = arith.constant dense<0xFF800000> : vector<4xf32>
    %244 = vector.multi_reduction <maximumf>, %243, %cst_111 [1] : vector<4x4xf32> to vector<4xf32>
    %245 = vector.shape_cast %244 : vector<4xf32> to vector<4x1xf32>
    %246 = vector.broadcast %245 : vector<4x1xf32> to vector<4x4xf32>
    %247 = arith.subf %243, %246 : vector<4x4xf32>
    %248 = math.exp %247 : vector<4x4xf32>
    %cst_112 = arith.constant dense<0.000000e+00> : vector<4xf32>
    %249 = vector.multi_reduction <add>, %248, %cst_112 [1] : vector<4x4xf32> to vector<4xf32>
    %250 = vector.shape_cast %249 : vector<4xf32> to vector<4x1xf32>
    %251 = tpu.reciprocal %250 {approx = true} : vector<4x1xf32> -> vector<4x1xf32>
    %252 = vector.broadcast %251 : vector<4x1xf32> to vector<4x4xf32>
    %253 = arith.mulf %248, %252 : vector<4x4xf32>
    %cst_113 = arith.constant dense<0.000000e+00> : vector<4x8xf32>
    %254 = tpu.matmul %253, %242, %cst_113 {dimension_numbers = #tpu.dot_dimension_numbers<[1], [0], [0], [1], [0, 0, 1, 1], [], []>} : vector<4x4xf32>, vector<4x8xf32>, vector<4x8xf32> -> vector<4x8xf32>
    %255 = vector.extract_strided_slice %220 {offsets = [8, 0], sizes = [8, 32], strides = [1, 1]} : vector<32x32xf32> to vector<8x32xf32>
    %cst_114 = arith.constant dense<0.000000e+00> : vector<4x32xf32>
    %256 = tpu.matmul %254, %255, %cst_114 {dimension_numbers = #tpu.dot_dimension_numbers<[1], [0], [0], [1], [0, 0, 1, 1], [], []>} : vector<4x8xf32>, vector<8x32xf32>, vector<4x32xf32> -> vector<4x32xf32>
    %257 = arith.addf %239, %256 : vector<4x32xf32>
    %258 = vector.extract_strided_slice %216 {offsets = [0, 16], sizes = [4, 8], strides = [1, 1]} : vector<4x32xf32> to vector<4x8xf32>
    %259 = vector.extract_strided_slice %217 {offsets = [0, 16], sizes = [4, 8], strides = [1, 1]} : vector<4x32xf32> to vector<4x8xf32>
    %260 = vector.extract_strided_slice %218 {offsets = [0, 16], sizes = [4, 8], strides = [1, 1]} : vector<4x32xf32> to vector<4x8xf32>
    %cst_115 = arith.constant dense<0.000000e+00> : vector<4x4xf32>
    %261 = tpu.matmul %258, %259, %cst_115 {dimension_numbers = #tpu.dot_dimension_numbers<[1], [1], [0], [0], [0, 0, 1, 0], [], []>} : vector<4x8xf32>, vector<4x8xf32>, vector<4x4xf32> -> vector<4x4xf32>
    %cst_116 = arith.constant dense<0xFF800000> : vector<4xf32>
    %262 = vector.multi_reduction <maximumf>, %261, %cst_116 [1] : vector<4x4xf32> to vector<4xf32>
    %263 = vector.shape_cast %262 : vector<4xf32> to vector<4x1xf32>
    %264 = vector.broadcast %263 : vector<4x1xf32> to vector<4x4xf32>
    %265 = arith.subf %261, %264 : vector<4x4xf32>
    %266 = math.exp %265 : vector<4x4xf32>
    %cst_117 = arith.constant dense<0.000000e+00> : vector<4xf32>
    %267 = vector.multi_reduction <add>, %266, %cst_117 [1] : vector<4x4xf32> to vector<4xf32>
    %268 = vector.shape_cast %267 : vector<4xf32> to vector<4x1xf32>
    %269 = tpu.reciprocal %268 {approx = true} : vector<4x1xf32> -> vector<4x1xf32>
    %270 = vector.broadcast %269 : vector<4x1xf32> to vector<4x4xf32>
    %271 = arith.mulf %266, %270 : vector<4x4xf32>
    %cst_118 = arith.constant dense<0.000000e+00> : vector<4x8xf32>
    %272 = tpu.matmul %271, %260, %cst_118 {dimension_numbers = #tpu.dot_dimension_numbers<[1], [0], [0], [1], [0, 0, 1, 1], [], []>} : vector<4x4xf32>, vector<4x8xf32>, vector<4x8xf32> -> vector<4x8xf32>
    %273 = vector.extract_strided_slice %220 {offsets = [16, 0], sizes = [8, 32], strides = [1, 1]} : vector<32x32xf32> to vector<8x32xf32>
    %cst_119 = arith.constant dense<0.000000e+00> : vector<4x32xf32>
    %274 = tpu.matmul %272, %273, %cst_119 {dimension_numbers = #tpu.dot_dimension_numbers<[1], [0], [0], [1], [0, 0, 1, 1], [], []>} : vector<4x8xf32>, vector<8x32xf32>, vector<4x32xf32> -> vector<4x32xf32>
    %275 = arith.addf %257, %274 : vector<4x32xf32>
    %276 = vector.extract_strided_slice %216 {offsets = [0, 24], sizes = [4, 8], strides = [1, 1]} : vector<4x32xf32> to vector<4x8xf32>
    %277 = vector.extract_strided_slice %217 {offsets = [0, 24], sizes = [4, 8], strides = [1, 1]} : vector<4x32xf32> to vector<4x8xf32>
    %278 = vector.extract_strided_slice %218 {offsets = [0, 24], sizes = [4, 8], strides = [1, 1]} : vector<4x32xf32> to vector<4x8xf32>
    %cst_120 = arith.constant dense<0.000000e+00> : vector<4x4xf32>
    %279 = tpu.matmul %276, %277, %cst_120 {dimension_numbers = #tpu.dot_dimension_numbers<[1], [1], [0], [0], [0, 0, 1, 0], [], []>} : vector<4x8xf32>, vector<4x8xf32>, vector<4x4xf32> -> vector<4x4xf32>
    %cst_121 = arith.constant dense<0xFF800000> : vector<4xf32>
    %280 = vector.multi_reduction <maximumf>, %279, %cst_121 [1] : vector<4x4xf32> to vector<4xf32>
    %281 = vector.shape_cast %280 : vector<4xf32> to vector<4x1xf32>
    %282 = vector.broadcast %281 : vector<4x1xf32> to vector<4x4xf32>
    %283 = arith.subf %279, %282 : vector<4x4xf32>
    %284 = math.exp %283 : vector<4x4xf32>
    %cst_122 = arith.constant dense<0.000000e+00> : vector<4xf32>
    %285 = vector.multi_reduction <add>, %284, %cst_122 [1] : vector<4x4xf32> to vector<4xf32>
    %286 = vector.shape_cast %285 : vector<4xf32> to vector<4x1xf32>
    %287 = tpu.reciprocal %286 {approx = true} : vector<4x1xf32> -> vector<4x1xf32>
    %288 = vector.broadcast %287 : vector<4x1xf32> to vector<4x4xf32>
    %289 = arith.mulf %284, %288 : vector<4x4xf32>
    %cst_123 = arith.constant dense<0.000000e+00> : vector<4x8xf32>
    %290 = tpu.matmul %289, %278, %cst_123 {dimension_numbers = #tpu.dot_dimension_numbers<[1], [0], [0], [1], [0, 0, 1, 1], [], []>} : vector<4x4xf32>, vector<4x8xf32>, vector<4x8xf32> -> vector<4x8xf32>
    %291 = vector.extract_strided_slice %220 {offsets = [24, 0], sizes = [8, 32], strides = [1, 1]} : vector<32x32xf32> to vector<8x32xf32>
    %cst_124 = arith.constant dense<0.000000e+00> : vector<4x32xf32>
    %292 = tpu.matmul %290, %291, %cst_124 {dimension_numbers = #tpu.dot_dimension_numbers<[1], [0], [0], [1], [0, 0, 1, 1], [], []>} : vector<4x8xf32>, vector<8x32xf32>, vector<4x32xf32> -> vector<4x32xf32>
    %293 = arith.addf %275, %292 : vector<4x32xf32>
    %294 = arith.addf %180, %293 : vector<4x32xf32>
    %c1_125 = arith.constant 1 : index
    %c0_126 = arith.constant 0 : index
    %c0_127 = arith.constant 0 : index
    %295 = vector.load %arg10[%c1_125, %c0_126, %c0_127] : memref<2x1x32xf32, #tpu.memory_space<vmem>>, vector<1x1x32xf32>
    %296 = vector.shape_cast %295 : vector<1x1x32xf32> to vector<1x32xf32>
    %297 = vector.broadcast %296 : vector<1x32xf32> to vector<4x32xf32>
    %298 = arith.addf %294, %297 : vector<4x32xf32>
    %c1_128 = arith.constant 1 : index
    %c0_129 = arith.constant 0 : index
    %c0_130 = arith.constant 0 : index
    %299 = vector.load %arg11[%c1_128, %c0_129, %c0_130] : memref<2x1x32xf32, #tpu.memory_space<vmem>>, vector<1x1x32xf32>
    %300 = vector.shape_cast %299 : vector<1x1x32xf32> to vector<1x32xf32>
    %c1_131 = arith.constant 1 : index
    %c0_132 = arith.constant 0 : index
    %c0_133 = arith.constant 0 : index
    %301 = vector.load %arg12[%c1_131, %c0_132, %c0_133] : memref<2x1x32xf32, #tpu.memory_space<vmem>>, vector<1x1x32xf32>
    %302 = vector.shape_cast %301 : vector<1x1x32xf32> to vector<1x32xf32>
    %cst_134 = arith.constant dense<0.000000e+00> : vector<4xf32>
    %303 = vector.multi_reduction <add>, %298, %cst_134 [1] : vector<4x32xf32> to vector<4xf32>
    %304 = vector.shape_cast %303 : vector<4xf32> to vector<4x1xf32>
    %cst_135 = arith.constant 3.200000e+01 : f32
    %305 = vector.broadcast %cst_135 : f32 to vector<4x1xf32>
    %306 = arith.divf %304, %305 : vector<4x1xf32>
    %307 = vector.broadcast %306 : vector<4x1xf32> to vector<4x32xf32>
    %308 = arith.subf %298, %307 : vector<4x32xf32>
    %309 = arith.mulf %308, %308 : vector<4x32xf32>
    %cst_136 = arith.constant dense<0.000000e+00> : vector<4xf32>
    %310 = vector.multi_reduction <add>, %309, %cst_136 [1] : vector<4x32xf32> to vector<4xf32>
    %311 = vector.shape_cast %310 : vector<4xf32> to vector<4x1xf32>
    %cst_137 = arith.constant 3.200000e+01 : f32
    %312 = vector.broadcast %cst_137 : f32 to vector<4x1xf32>
    %313 = arith.divf %311, %312 : vector<4x1xf32>
    %314 = vector.broadcast %306 : vector<4x1xf32> to vector<4x32xf32>
    %315 = arith.subf %298, %314 : vector<4x32xf32>
    %cst_138 = arith.constant 9.99999997E-7 : f32
    %316 = vector.broadcast %cst_138 : f32 to vector<4x1xf32>
    %317 = arith.addf %313, %316 : vector<4x1xf32>
    %318 = math.rsqrt %317 : vector<4x1xf32>
    %319 = vector.broadcast %318 : vector<4x1xf32> to vector<4x32xf32>
    %320 = arith.mulf %315, %319 : vector<4x32xf32>
    %321 = vector.broadcast %300 : vector<1x32xf32> to vector<4x32xf32>
    %322 = arith.mulf %320, %321 : vector<4x32xf32>
    %323 = vector.broadcast %302 : vector<1x32xf32> to vector<4x32xf32>
    %324 = arith.addf %322, %323 : vector<4x32xf32>
    %c1_139 = arith.constant 1 : index
    %c0_140 = arith.constant 0 : index
    %c0_141 = arith.constant 0 : index
    %325 = vector.load %arg13[%c1_139, %c0_140, %c0_141] : memref<2x32x64xf32, #tpu.memory_space<vmem>>, vector<1x32x64xf32>
    %326 = vector.shape_cast %325 : vector<1x32x64xf32> to vector<32x64xf32>
    %cst_142 = arith.constant dense<0.000000e+00> : vector<4x64xf32>
    %327 = tpu.matmul %324, %326, %cst_142 {dimension_numbers = #tpu.dot_dimension_numbers<[1], [0], [0], [1], [0, 0, 1, 1], [], []>} : vector<4x32xf32>, vector<32x64xf32>, vector<4x64xf32> -> vector<4x64xf32>
    %c1_143 = arith.constant 1 : index
    %c0_144 = arith.constant 0 : index
    %c0_145 = arith.constant 0 : index
    %328 = vector.load %arg14[%c1_143, %c0_144, %c0_145] : memref<2x1x64xf32, #tpu.memory_space<vmem>>, vector<1x1x64xf32>
    %329 = vector.shape_cast %328 : vector<1x1x64xf32> to vector<1x64xf32>
    %330 = vector.broadcast %329 : vector<1x64xf32> to vector<4x64xf32>
    %331 = arith.addf %327, %330 : vector<4x64xf32>
    %cst_146 = arith.constant 5.000000e-01 : f32
    %332 = vector.broadcast %cst_146 : f32 to vector<4x64xf32>
    %333 = arith.mulf %332, %331 : vector<4x64xf32>
    %cst_147 = arith.constant 4.471500e-02 : f32
    %334 = vector.broadcast %cst_147 : f32 to vector<4x64xf32>
    %335 = arith.mulf %334, %331 : vector<4x64xf32>
    %336 = arith.mulf %335, %331 : vector<4x64xf32>
    %337 = arith.mulf %336, %331 : vector<4x64xf32>
    %338 = arith.addf %331, %337 : vector<4x64xf32>
    %cst_148 = arith.constant 0.797884583 : f32
    %339 = vector.broadcast %cst_148 : f32 to vector<4x64xf32>
    %340 = arith.mulf %339, %338 : vector<4x64xf32>
    %341 = math.tanh %340 : vector<4x64xf32>
    %cst_149 = arith.constant 1.000000e+00 : f32
    %342 = vector.broadcast %cst_149 : f32 to vector<4x64xf32>
    %343 = arith.addf %342, %341 : vector<4x64xf32>
    %344 = arith.mulf %333, %343 : vector<4x64xf32>
    %c1_150 = arith.constant 1 : index
    %c0_151 = arith.constant 0 : index
    %c0_152 = arith.constant 0 : index
    %345 = vector.load %arg15[%c1_150, %c0_151, %c0_152] : memref<2x64x32xf32, #tpu.memory_space<vmem>>, vector<1x64x32xf32>
    %346 = vector.shape_cast %345 : vector<1x64x32xf32> to vector<64x32xf32>
    %cst_153 = arith.constant dense<0.000000e+00> : vector<4x32xf32>
    %347 = tpu.matmul %344, %346, %cst_153 {dimension_numbers = #tpu.dot_dimension_numbers<[1], [0], [0], [1], [0, 0, 1, 1], [], []>} : vector<4x64xf32>, vector<64x32xf32>, vector<4x32xf32> -> vector<4x32xf32>
    %348 = arith.addf %298, %347 : vector<4x32xf32>
    %c1_154 = arith.constant 1 : index
    %c0_155 = arith.constant 0 : index
    %c0_156 = arith.constant 0 : index
    %349 = vector.load %arg16[%c1_154, %c0_155, %c0_156] : memref<2x1x32xf32, #tpu.memory_space<vmem>>, vector<1x1x32xf32>
    %350 = vector.shape_cast %349 : vector<1x1x32xf32> to vector<1x32xf32>
    %351 = vector.broadcast %350 : vector<1x32xf32> to vector<4x32xf32>
    %352 = arith.addf %348, %351 : vector<4x32xf32>
    %c0_157 = arith.constant 0 : index
    %c0_158 = arith.constant 0 : index
    %353 = vector.load %arg17[%c0_157, %c0_158] : memref<1x32xf32, #tpu.memory_space<vmem>>, vector<1x32xf32>
    %c0_159 = arith.constant 0 : index
    %c0_160 = arith.constant 0 : index
    %354 = vector.load %arg18[%c0_159, %c0_160] : memref<1x32xf32, #tpu.memory_space<vmem>>, vector<1x32xf32>
    %cst_161 = arith.constant dense<0.000000e+00> : vector<4xf32>
    %355 = vector.multi_reduction <add>, %352, %cst_161 [1] : vector<4x32xf32> to vector<4xf32>
    %356 = vector.shape_cast %355 : vector<4xf32> to vector<4x1xf32>
    %cst_162 = arith.constant 3.200000e+01 : f32
    %357 = vector.broadcast %cst_162 : f32 to vector<4x1xf32>
    %358 = arith.divf %356, %357 : vector<4x1xf32>
    %359 = vector.broadcast %358 : vector<4x1xf32> to vector<4x32xf32>
    %360 = arith.subf %352, %359 : vector<4x32xf32>
    %361 = arith.mulf %360, %360 : vector<4x32xf32>
    %cst_163 = arith.constant dense<0.000000e+00> : vector<4xf32>
    %362 = vector.multi_reduction <add>, %361, %cst_163 [1] : vector<4x32xf32> to vector<4xf32>
    %363 = vector.shape_cast %362 : vector<4xf32> to vector<4x1xf32>
    %cst_164 = arith.constant 3.200000e+01 : f32
    %364 = vector.broadcast %cst_164 : f32 to vector<4x1xf32>
    %365 = arith.divf %363, %364 : vector<4x1xf32>
    %366 = vector.broadcast %358 : vector<4x1xf32> to vector<4x32xf32>
    %367 = arith.subf %352, %366 : vector<4x32xf32>
    %cst_165 = arith.constant 9.99999997E-7 : f32
    %368 = vector.broadcast %cst_165 : f32 to vector<4x1xf32>
    %369 = arith.addf %365, %368 : vector<4x1xf32>
    %370 = math.rsqrt %369 : vector<4x1xf32>
    %371 = vector.broadcast %370 : vector<4x1xf32> to vector<4x32xf32>
    %372 = arith.mulf %367, %371 : vector<4x32xf32>
    %373 = vector.broadcast %353 : vector<1x32xf32> to vector<4x32xf32>
    %374 = arith.mulf %372, %373 : vector<4x32xf32>
    %375 = vector.broadcast %354 : vector<1x32xf32> to vector<4x32xf32>
    %376 = arith.addf %374, %375 : vector<4x32xf32>
    %c0_166 = arith.constant 0 : index
    %c0_167 = arith.constant 0 : index
    %c0_168 = arith.constant 0 : index
    %377 = vector.load %arg19[%c0_166, %c0_167, %c0_168] : memref<1x4x32xf32, #tpu.memory_space<vmem>>, vector<1x4x32xf32>
    %378 = vector.shape_cast %377 : vector<1x4x32xf32> to vector<4x32xf32>
    %379 = vector.shape_cast %376 : vector<4x32xf32> to vector<1x4x32xf32>
    tpu.vector_store %arg19[%c0_166, %c0_167, %c0_168], %379 {strides = array<i32>} : memref<1x4x32xf32, #tpu.memory_space<vmem>>, vector<1x4x32xf32>,
    return
  }
  func.func @transform_0(%arg0: i32) -> (i32, i32, i32) {
    %c0_i32 = arith.constant 0 : i32
    %c0_i32_0 = arith.constant 0 : i32
    %c0_i32_1 = arith.constant 0 : i32
    return %arg0, %c0_i32, %c0_i32_0 : i32, i32, i32
  }
  func.func @transform_1(%arg0: i32) -> (i32, i32) {
    %c0_i32 = arith.constant 0 : i32
    %c0_i32_0 = arith.constant 0 : i32
    %c0_i32_1 = arith.constant 0 : i32
    return %c0_i32, %c0_i32_0 : i32, i32
  }
  func.func @transform_2(%arg0: i32) -> (i32, i32) {
    %c0_i32 = arith.constant 0 : i32
    %c0_i32_0 = arith.constant 0 : i32
    %c0_i32_1 = arith.constant 0 : i32
    return %c0_i32, %c0_i32_0 : i32, i32
  }
  func.func @transform_3(%arg0: i32) -> (i32, i32) {
    %c0_i32 = arith.constant 0 : i32
    %c0_i32_0 = arith.constant 0 : i32
    %c0_i32_1 = arith.constant 0 : i32
    return %c0_i32, %c0_i32_0 : i32, i32
  }
  func.func @transform_4(%arg0: i32) -> (i32, i32, i32) {
    %c0_i32 = arith.constant 0 : i32
    %c0_i32_0 = arith.constant 0 : i32
    %c0_i32_1 = arith.constant 0 : i32
    %c0_i32_2 = arith.constant 0 : i32
    return %c0_i32, %c0_i32_0, %c0_i32_1 : i32, i32, i32
  }
  func.func @transform_5(%arg0: i32) -> (i32, i32, i32) {
    %c0_i32 = arith.constant 0 : i32
    %c0_i32_0 = arith.constant 0 : i32
    %c0_i32_1 = arith.constant 0 : i32
    %c0_i32_2 = arith.constant 0 : i32
    return %c0_i32, %c0_i32_0, %c0_i32_1 : i32, i32, i32
  }
  func.func @transform_6(%arg0: i32) -> (i32, i32, i32) {
    %c0_i32 = arith.constant 0 : i32
    %c0_i32_0 = arith.constant 0 : i32
    %c0_i32_1 = arith.constant 0 : i32
    %c0_i32_2 = arith.constant 0 : i32
    return %c0_i32, %c0_i32_0, %c0_i32_1 : i32, i32, i32
  }
  func.func @transform_7(%arg0: i32) -> (i32, i32, i32) {
    %c0_i32 = arith.constant 0 : i32
    %c0_i32_0 = arith.constant 0 : i32
    %c0_i32_1 = arith.constant 0 : i32
    %c0_i32_2 = arith.constant 0 : i32
    return %c0_i32, %c0_i32_0, %c0_i32_1 : i32, i32, i32
  }
  func.func @transform_8(%arg0: i32) -> (i32, i32, i32) {
    %c0_i32 = arith.constant 0 : i32
    %c0_i32_0 = arith.constant 0 : i32
    %c0_i32_1 = arith.constant 0 : i32
    %c0_i32_2 = arith.constant 0 : i32
    return %c0_i32, %c0_i32_0, %c0_i32_1 : i32, i32, i32
  }
  func.func @transform_9(%arg0: i32) -> (i32, i32, i32) {
    %c0_i32 = arith.constant 0 : i32
    %c0_i32_0 = arith.constant 0 : i32
    %c0_i32_1 = arith.constant 0 : i32
    %c0_i32_2 = arith.constant 0 : i32
    return %c0_i32, %c0_i32_0, %c0_i32_1 : i32, i32, i32
  }
  func.func @transform_10(%arg0: i32) -> (i32, i32, i32) {
    %c0_i32 = arith.constant 0 : i32
    %c0_i32_0 = arith.constant 0 : i32
    %c0_i32_1 = arith.constant 0 : i32
    %c0_i32_2 = arith.constant 0 : i32
    return %c0_i32, %c0_i32_0, %c0_i32_1 : i32, i32, i32
  }
  func.func @transform_11(%arg0: i32) -> (i32, i32, i32) {
    %c0_i32 = arith.constant 0 : i32
    %c0_i32_0 = arith.constant 0 : i32
    %c0_i32_1 = arith.constant 0 : i32
    %c0_i32_2 = arith.constant 0 : i32
    return %c0_i32, %c0_i32_0, %c0_i32_1 : i32, i32, i32
  }
  func.func @transform_12(%arg0: i32) -> (i32, i32, i32) {
    %c0_i32 = arith.constant 0 : i32
    %c0_i32_0 = arith.constant 0 : i32
    %c0_i32_1 = arith.constant 0 : i32
    %c0_i32_2 = arith.constant 0 : i32
    return %c0_i32, %c0_i32_0, %c0_i32_1 : i32, i32, i32
  }
  func.func @transform_13(%arg0: i32) -> (i32, i32, i32) {
    %c0_i32 = arith.constant 0 : i32
    %c0_i32_0 = arith.constant 0 : i32
    %c0_i32_1 = arith.constant 0 : i32
    %c0_i32_2 = arith.constant 0 : i32
    return %c0_i32, %c0_i32_0, %c0_i32_1 : i32, i32, i32
  }
  func.func @transform_14(%arg0: i32) -> (i32, i32, i32) {
    %c0_i32 = arith.constant 0 : i32
    %c0_i32_0 = arith.constant 0 : i32
    %c0_i32_1 = arith.constant 0 : i32
    %c0_i32_2 = arith.constant 0 : i32
    return %c0_i32, %c0_i32_0, %c0_i32_1 : i32, i32, i32
  }
  func.func @transform_15(%arg0: i32) -> (i32, i32, i32) {
    %c0_i32 = arith.constant 0 : i32
    %c0_i32_0 = arith.constant 0 : i32
    %c0_i32_1 = arith.constant 0 : i32
    %c0_i32_2 = arith.constant 0 : i32
    return %c0_i32, %c0_i32_0, %c0_i32_1 : i32, i32, i32
  }
  func.func @transform_16(%arg0: i32) -> (i32, i32) {
    %c0_i32 = arith.constant 0 : i32
    %c0_i32_0 = arith.constant 0 : i32
    %c0_i32_1 = arith.constant 0 : i32
    return %c0_i32, %c0_i32_0 : i32, i32
  }
  func.func @transform_17(%arg0: i32) -> (i32, i32) {
    %c0_i32 = arith.constant 0 : i32
    %c0_i32_0 = arith.constant 0 : i32
    %c0_i32_1 = arith.constant 0 : i32
    return %c0_i32, %c0_i32_0 : i32, i32
  }
  func.func @transform_18(%arg0: i32) -> (i32, i32, i32) {
    %c0_i32 = arith.constant 0 : i32
    %c0_i32_0 = arith.constant 0 : i32
    %c0_i32_1 = arith.constant 0 : i32
    return %arg0, %c0_i32, %c0_i32_0 : i32, i32, i32
  }
}

</mosaic_0001>

<llo_original>
// kernel: vision_encoder.1
$region0: #{vision_encoder.1}
  #allocation0 [shape = 'u32[]', space=smem, size = 0x4, offset = 0x4, fixed_abs, tag = 'smem constant byte address 0x4 - core index']
  #allocation1 [shape = 'u32[144,128]{1,0:T(1,128)}', space=vmem, size = 0x12000, scoped, tag = 'internal scratch']
  %s0 = inlined_call_operand.vmem [shape: f32[2,4,192], index: 0, kind: input, shape index: {}]
  %s1 = inlined_call_operand.vmem [shape: f32[4,32], index: 1, kind: input, shape index: {}]
  %s2 = inlined_call_operand.vmem [shape: f32[192,32], index: 2, kind: input, shape index: {}]
  %s3 = inlined_call_operand.vmem [shape: f32[1,32], index: 3, kind: input, shape index: {}]
  %s4 = inlined_call_operand.vmem [shape: f32[2,1,32], index: 4, kind: input, shape index: {}]
  %s5 = inlined_call_operand.vmem [shape: f32[2,1,32], index: 5, kind: input, shape index: {}]
  %s6 = inlined_call_operand.vmem [shape: f32[2,32,96], index: 6, kind: input, shape index: {}]
  %s7 = inlined_call_operand.vmem [shape: f32[2,1,96], index: 7, kind: input, shape index: {}]
  %s8 = inlined_call_operand.vmem [shape: f32[2,32,32], index: 8, kind: input, shape index: {}]
  %s9 = inlined_call_operand.vmem [shape: f32[2,1,32], index: 9, kind: input, shape index: {}]
  %s10 = inlined_call_operand.vmem [shape: f32[2,1,32], index: 10, kind: input, shape index: {}]
  %s11 = inlined_call_operand.vmem [shape: f32[2,1,32], index: 11, kind: input, shape index: {}]
  %s12 = inlined_call_operand.vmem [shape: f32[2,32,64], index: 12, kind: input, shape index: {}]
  %s13 = inlined_call_operand.vmem [shape: f32[2,1,64], index: 13, kind: input, shape index: {}]
  %s14 = inlined_call_operand.vmem [shape: f32[2,64,32], index: 14, kind: input, shape index: {}]
  %s15 = inlined_call_operand.vmem [shape: f32[2,1,32], index: 15, kind: input, shape index: {}]
  %s16 = inlined_call_operand.vmem [shape: f32[1,32], index: 16, kind: input, shape index: {}]
  %s17 = inlined_call_operand.vmem [shape: f32[1,32], index: 17, kind: input, shape index: {}]
  %s18 = inlined_call_operand.hbm [shape: f32[2,4,32], index: 18, kind: output, shape index: {}]
  %s19 = sld [smem:[#allocation0]]
  $region105: #{vision_encoder.1} parent=0
    _
  %s21 = ssub.s32 1, %s19
  %s22 = scalar_select 0, %s21, %s19
  $region1: #{vision_encoder.1} parent=0
    #allocation2 [shape = 'u8[4096]{0}', space=vmem, size = 0x1000, scoped, tag = 'output window, operand 0']
    #allocation3 [shape = 's32[2]{0}', space=sflag, size = 0x8, scoped, tag = 'scoped memory for vision_encoder.1']
    %23 = vsyncpa [#allocation3], 0
    %s24 = scalar_lea.sflag [#allocation3], 1
    %25 = vsyncpa %s24, 0
    loop: start=0, step=1, limit=4
    $region2: #{vision_encoder.1} parent=1 // loop_pre_header
      _
    $region3: #{vision_encoder.1} parent=1 // loop_header
      %s27 = sphi 0, %s31
      %p28 = scmp.ge.s32.totalorder %s27, 4
      %s37 = sphi 0, %s39
      %s40 = sphi 0, %s37
      %s41 = sphi 0, %s40
      %s57 = sphi 0, %s41
      %s61 = sphi 0, %s61
      %s63 = sphi 0, %s61
      %s64 = sphi 0, %s63
      %s78 = sphi 0, %s64
      %s82 = sphi 0, %s82
      %s84 = sphi 0, %s82
      %s85 = sphi 0, %s84
      %s99 = sphi 0, %s85
      %s103 = sphi 0, %s103
      %s105 = sphi 0, %s103
      %s106 = sphi 0, %s105
      %s120 = sphi 0, %s106
      %s124 = sphi 0, %s124
      %s126 = sphi 0, %s124
      %s127 = sphi 0, %s126
      %s141 = sphi 0, %s127
      %s145 = sphi 0, %s145
      %s147 = sphi 0, %s145
      %s148 = sphi 0, %s147
      %s162 = sphi 0, %s148
      %s166 = sphi 0, %s166
      %s168 = sphi 0, %s166
      %s169 = sphi 0, %s168
      %s183 = sphi 0, %s169
      %s187 = sphi 0, %s187
      %s189 = sphi 0, %s187
      %s190 = sphi 0, %s189
      %s204 = sphi 0, %s190
      %s208 = sphi 0, %s208
      %s210 = sphi 0, %s208
      %s211 = sphi 0, %s210
      %s225 = sphi 0, %s211
      %s229 = sphi 0, %s229
      %s231 = sphi 0, %s229
      %s232 = sphi 0, %s231
      %s246 = sphi 0, %s232
      %s250 = sphi 0, %s250
      %s252 = sphi 0, %s250
      %s253 = sphi 0, %s252
      %s267 = sphi 0, %s253
      %s271 = sphi 0, %s271
      %s273 = sphi 0, %s271
      %s274 = sphi 0, %s273
      %s288 = sphi 0, %s274
      %s292 = sphi 0, %s292
      %s294 = sphi 0, %s292
      %s295 = sphi 0, %s294
      %s309 = sphi 0, %s295
      %s313 = sphi 0, %s313
      %s315 = sphi 0, %s313
      %s316 = sphi 0, %s315
      %s330 = sphi 0, %s316
      %s334 = sphi 0, %s334
      %s336 = sphi 0, %s334
      %s337 = sphi 0, %s336
      %s351 = sphi 0, %s337
      %s355 = sphi 0, %s355
      %s357 = sphi 0, %s355
      %s358 = sphi 0, %s357
      %s372 = sphi 0, %s358
      %s376 = sphi 0, %s376
      %s378 = sphi 0, %s376
      %s379 = sphi 0, %s378
      %s393 = sphi 0, %s379
      %s397 = sphi 0, %s397
      %s399 = sphi 0, %s397
      %s400 = sphi 0, %s399
      %s414 = sphi 0, %s400
      %s420 = sphi 0, %s422
      %s423 = sphi 0, %s420
      %s424 = sphi 0, %s423
      %s440 = sphi 0, %s424
    $region4: #{vision_encoder.1} parent=1 // loop_header_branch
      %30 = sbr.rel (%p28) target = $region8
    $region5: #{vision_encoder.1} parent=1 // loop_body
      %s32 = ssub.s32 %s27, 1
      %s33 = ssub.s32 %s27, 2
      %s34 = sadd.s32 %s27, 1
      %s35 = ssub.s32 %s27, %s34
      %p36 = scmp.eq.s32.totalorder %s35, 0
      %s38 = sadd.s32 %s37, 1
      %s39 = scalar_select %p36, %s37, %s38
      %p42 = pneg %p36
      %p43 = scmp.eq.s32.totalorder %s27, 1
      %p44 = por %p42, %p43
      %p45 = scmp.ne.s32.totalorder %s37, %s40
      %p46 = scmp.eq.s32.totalorder %s27, 0
      %p47 = por %p45, %p46
      %p48 = scmp.ne.s32.totalorder %s37, %s40
      %p49 = scmp.eq.s32.totalorder %s32, 1
      %p50 = por %p48, %p49
      %p51 = scmp.ne.s32.totalorder %s40, %s41
      %p52 = scmp.eq.s32.totalorder %s32, 0
      %p53 = por %p51, %p52
      %p54 = scmp.ne.s32.totalorder %s40, %s41
      %p55 = scmp.eq.s32.totalorder %s33, 1
      %p56 = por %p54, %p55
      %p58 = scmp.ne.s32.totalorder %s41, %s57
      %p59 = scmp.eq.s32.totalorder %s33, 0
      %p60 = por %p58, %p59
      %s62 = sadd.s32 %s61, 1
      %p65 = scmp.eq.s32.totalorder %s27, 1
      %p66 = scmp.ne.s32.totalorder %s61, %s63
      %p67 = scmp.eq.s32.totalorder %s27, 0
      %p68 = por %p66, %p67
      %p69 = scmp.ne.s32.totalorder %s61, %s63
      %p70 = scmp.eq.s32.totalorder %s32, 1
      %p71 = por %p69, %p70
      %p72 = scmp.ne.s32.totalorder %s63, %s64
      %p73 = scmp.eq.s32.totalorder %s32, 0
      %p74 = por %p72, %p73
      %p75 = scmp.ne.s32.totalorder %s63, %s64
      %p76 = scmp.eq.s32.totalorder %s33, 1
      %p77 = por %p75, %p76
      %p79 = scmp.ne.s32.totalorder %s64, %s78
      %p80 = scmp.eq.s32.totalorder %s33, 0
      %p81 = por %p79, %p80
      %s83 = sadd.s32 %s82, 1
      %p86 = scmp.eq.s32.totalorder %s27, 1
      %p87 = scmp.ne.s32.totalorder %s82, %s84
      %p88 = scmp.eq.s32.totalorder %s27, 0
      %p89 = por %p87, %p88
      %p90 = scmp.ne.s32.totalorder %s82, %s84
      %p91 = scmp.eq.s32.totalorder %s32, 1
      %p92 = por %p90, %p91
      %p93 = scmp.ne.s32.totalorder %s84, %s85
      %p94 = scmp.eq.s32.totalorder %s32, 0
      %p95 = por %p93, %p94
      %p96 = scmp.ne.s32.totalorder %s84, %s85
      %p97 = scmp.eq.s32.totalorder %s33, 1
      %p98 = por %p96, %p97
      %p100 = scmp.ne.s32.totalorder %s85, %s99
      %p101 = scmp.eq.s32.totalorder %s33, 0
      %p102 = por %p100, %p101
      %s104 = sadd.s32 %s103, 1
      %p107 = scmp.eq.s32.totalorder %s27, 1
      %p108 = scmp.ne.s32.totalorder %s103, %s105
      %p109 = scmp.eq.s32.totalorder %s27, 0
      %p110 = por %p108, %p109
      %p111 = scmp.ne.s32.totalorder %s103, %s105
      %p112 = scmp.eq.s32.totalorder %s32, 1
      %p113 = por %p111, %p112
      %p114 = scmp.ne.s32.totalorder %s105, %s106
      %p115 = scmp.eq.s32.totalorder %s32, 0
      %p116 = por %p114, %p115
      %p117 = scmp.ne.s32.totalorder %s105, %s106
      %p118 = scmp.eq.s32.totalorder %s33, 1
      %p119 = por %p117, %p118
      %p121 = scmp.ne.s32.totalorder %s106, %s120
      %p122 = scmp.eq.s32.totalorder %s33, 0
      %p123 = por %p121, %p122
      %s125 = sadd.s32 %s124, 1
      %p128 = scmp.eq.s32.totalorder %s27, 1
      %p129 = scmp.ne.s32.totalorder %s124, %s126
      %p130 = scmp.eq.s32.totalorder %s27, 0
      %p131 = por %p129, %p130
      %p132 = scmp.ne.s32.totalorder %s124, %s126
      %p133 = scmp.eq.s32.totalorder %s32, 1
      %p134 = por %p132, %p133
      %p135 = scmp.ne.s32.totalorder %s126, %s127
      %p136 = scmp.eq.s32.totalorder %s32, 0
      %p137 = por %p135, %p136
      %p138 = scmp.ne.s32.totalorder %s126, %s127
      %p139 = scmp.eq.s32.totalorder %s33, 1
      %p140 = por %p138, %p139
      %p142 = scmp.ne.s32.totalorder %s127, %s141
      %p143 = scmp.eq.s32.totalorder %s33, 0
      %p144 = por %p142, %p143
      %s146 = sadd.s32 %s145, 1
      %p149 = scmp.eq.s32.totalorder %s27, 1
      %p150 = scmp.ne.s32.totalorder %s145, %s147
      %p151 = scmp.eq.s32.totalorder %s27, 0
      %p152 = por %p150, %p151
      %p153 = scmp.ne.s32.totalorder %s145, %s147
      %p154 = scmp.eq.s32.totalorder %s32, 1
      %p155 = por %p153, %p154
      %p156 = scmp.ne.s32.totalorder %s147, %s148
      %p157 = scmp.eq.s32.totalorder %s32, 0
      %p158 = por %p156, %p157
      %p159 = scmp.ne.s32.totalorder %s147, %s148
      %p160 = scmp.eq.s32.totalorder %s33, 1
      %p161 = por %p159, %p160
      %p163 = scmp.ne.s32.totalorder %s148, %s162
      %p164 = scmp.eq.s32.totalorder %s33, 0
      %p165 = por %p163, %p164
      %s167 = sadd.s32 %s166, 1
      %p170 = scmp.eq.s32.totalorder %s27, 1
      %p171 = scmp.ne.s32.totalorder %s166, %s168
      %p172 = scmp.eq.s32.totalorder %s27, 0
      %p173 = por %p171, %p172
      %p174 = scmp.ne.s32.totalorder %s166, %s168
      %p175 = scmp.eq.s32.totalorder %s32, 1
      %p176 = por %p174, %p175
      %p177 = scmp.ne.s32.totalorder %s168, %s169
      %p178 = scmp.eq.s32.totalorder %s32, 0
      %p179 = por %p177, %p178
      %p180 = scmp.ne.s32.totalorder %s168, %s169
      %p181 = scmp.eq.s32.totalorder %s33, 1
      %p182 = por %p180, %p181
      %p184 = scmp.ne.s32.totalorder %s169, %s183
      %p185 = scmp.eq.s32.totalorder %s33, 0
      %p186 = por %p184, %p185
      %s188 = sadd.s32 %s187, 1
      %p191 = scmp.eq.s32.totalorder %s27, 1
      %p192 = scmp.ne.s32.totalorder %s187, %s189
      %p193 = scmp.eq.s32.totalorder %s27, 0
      %p194 = por %p192, %p193
      %p195 = scmp.ne.s32.totalorder %s187, %s189
      %p196 = scmp.eq.s32.totalorder %s32, 1
      %p197 = por %p195, %p196
      %p198 = scmp.ne.s32.totalorder %s189, %s190
      %p199 = scmp.eq.s32.totalorder %s32, 0
      %p200 = por %p198, %p199
      %p201 = scmp.ne.s32.totalorder %s189, %s190
      %p202 = scmp.eq.s32.totalorder %s33, 1
      %p203 = por %p201, %p202
      %p205 = scmp.ne.s32.totalorder %s190, %s204
      %p206 = scmp.eq.s32.totalorder %s33, 0
      %p207 = por %p205, %p206
      %s209 = sadd.s32 %s208, 1
      %p212 = scmp.eq.s32.totalorder %s27, 1
      %p213 = scmp.ne.s32.totalorder %s208, %s210
      %p214 = scmp.eq.s32.totalorder %s27, 0
      %p215 = por %p213, %p214
      %p216 = scmp.ne.s32.totalorder %s208, %s210
      %p217 = scmp.eq.s32.totalorder %s32, 1
      %p218 = por %p216, %p217
      %p219 = scmp.ne.s32.totalorder %s210, %s211
      %p220 = scmp.eq.s32.totalorder %s32, 0
      %p221 = por %p219, %p220
      %p222 = scmp.ne.s32.totalorder %s210, %s211
      %p223 = scmp.eq.s32.totalorder %s33, 1
      %p224 = por %p222, %p223
      %p226 = scmp.ne.s32.totalorder %s211, %s225
      %p227 = scmp.eq.s32.totalorder %s33, 0
      %p228 = por %p226, %p227
      %s230 = sadd.s32 %s229, 1
      %p233 = scmp.eq.s32.totalorder %s27, 1
      %p234 = scmp.ne.s32.totalorder %s229, %s231
      %p235 = scmp.eq.s32.totalorder %s27, 0
      %p236 = por %p234, %p235
      %p237 = scmp.ne.s32.totalorder %s229, %s231
      %p238 = scmp.eq.s32.totalorder %s32, 1
      %p239 = por %p237, %p238
      %p240 = scmp.ne.s32.totalorder %s231, %s232
      %p241 = scmp.eq.s32.totalorder %s32, 0
      %p242 = por %p240, %p241
      %p243 = scmp.ne.s32.totalorder %s231, %s232
      %p244 = scmp.eq.s32.totalorder %s33, 1
      %p245 = por %p243, %p244
      %p247 = scmp.ne.s32.totalorder %s232, %s246
      %p248 = scmp.eq.s32.totalorder %s33, 0
      %p249 = por %p247, %p248
      %s251 = sadd.s32 %s250, 1
      %p254 = scmp.eq.s32.totalorder %s27, 1
      %p255 = scmp.ne.s32.totalorder %s250, %s252
      %p256 = scmp.eq.s32.totalorder %s27, 0
      %p257 = por %p255, %p256
      %p258 = scmp.ne.s32.totalorder %s250, %s252
      %p259 = scmp.eq.s32.totalorder %s32, 1
      %p260 = por %p258, %p259
      %p261 = scmp.ne.s32.totalorder %s252, %s253
      %p262 = scmp.eq.s32.totalorder %s32, 0
      %p263 = por %p261, %p262
      %p264 = scmp.ne.s32.totalorder %s252, %s253
      %p265 = scmp.eq.s32.totalorder %s33, 1
      %p266 = por %p264, %p265
      %p268 = scmp.ne.s32.totalorder %s253, %s267
      %p269 = scmp.eq.s32.totalorder %s33, 0
      %p270 = por %p268, %p269
      %s272 = sadd.s32 %s271, 1
      %p275 = scmp.eq.s32.totalorder %s27, 1
      %p276 = scmp.ne.s32.totalorder %s271, %s273
      %p277 = scmp.eq.s32.totalorder %s27, 0
      %p278 = por %p276, %p277
      %p279 = scmp.ne.s32.totalorder %s271, %s273
      %p280 = scmp.eq.s32.totalorder %s32, 1
      %p281 = por %p279, %p280
      %p282 = scmp.ne.s32.totalorder %s273, %s274
      %p283 = scmp.eq.s32.totalorder %s32, 0
      %p284 = por %p282, %p283
      %p285 = scmp.ne.s32.totalorder %s273, %s274
      %p286 = scmp.eq.s32.totalorder %s33, 1
      %p287 = por %p285, %p286
      %p289 = scmp.ne.s32.totalorder %s274, %s288
      %p290 = scmp.eq.s32.totalorder %s33, 0
      %p291 = por %p289, %p290
      %s293 = sadd.s32 %s292, 1
      %p296 = scmp.eq.s32.totalorder %s27, 1
      %p297 = scmp.ne.s32.totalorder %s292, %s294
      %p298 = scmp.eq.s32.totalorder %s27, 0
      %p299 = por %p297, %p298
      %p300 = scmp.ne.s32.totalorder %s292, %s294
      %p301 = scmp.eq.s32.totalorder %s32, 1
      %p302 = por %p300, %p301
      %p303 = scmp.ne.s32.totalorder %s294, %s295
      %p304 = scmp.eq.s32.totalorder %s32, 0
      %p305 = por %p303, %p304
      %p306 = scmp.ne.s32.totalorder %s294, %s295
      %p307 = scmp.eq.s32.totalorder %s33, 1
      %p308 = por %p306, %p307
      %p310 = scmp.ne.s32.totalorder %s295, %s309
      %p311 = scmp.eq.s32.totalorder %s33, 0
      %p312 = por %p310, %p311
      %s314 = sadd.s32 %s313, 1
      %p317 = scmp.eq.s32.totalorder %s27, 1
      %p318 = scmp.ne.s32.totalorder %s313, %s315
      %p319 = scmp.eq.s32.totalorder %s27, 0
      %p320 = por %p318, %p319
      %p321 = scmp.ne.s32.totalorder %s313, %s315
      %p322 = scmp.eq.s32.totalorder %s32, 1
      %p323 = por %p321, %p322
      %p324 = scmp.ne.s32.totalorder %s315, %s316
      %p325 = scmp.eq.s32.totalorder %s32, 0
      %p326 = por %p324, %p325
      %p327 = scmp.ne.s32.totalorder %s315, %s316
      %p328 = scmp.eq.s32.totalorder %s33, 1
      %p329 = por %p327, %p328
      %p331 = scmp.ne.s32.totalorder %s316, %s330
      %p332 = scmp.eq.s32.totalorder %s33, 0
      %p333 = por %p331, %p332
      %s335 = sadd.s32 %s334, 1
      %p338 = scmp.eq.s32.totalorder %s27, 1
      %p339 = scmp.ne.s32.totalorder %s334, %s336
      %p340 = scmp.eq.s32.totalorder %s27, 0
      %p341 = por %p339, %p340
      %p342 = scmp.ne.s32.totalorder %s334, %s336
      %p343 = scmp.eq.s32.totalorder %s32, 1
      %p344 = por %p342, %p343
      %p345 = scmp.ne.s32.totalorder %s336, %s337
      %p346 = scmp.eq.s32.totalorder %s32, 0
      %p347 = por %p345, %p346
      %p348 = scmp.ne.s32.totalorder %s336, %s337
      %p349 = scmp.eq.s32.totalorder %s33, 1
      %p350 = por %p348, %p349
      %p352 = scmp.ne.s32.totalorder %s337, %s351
      %p353 = scmp.eq.s32.totalorder %s33, 0
      %p354 = por %p352, %p353
      %s356 = sadd.s32 %s355, 1
      %p359 = scmp.eq.s32.totalorder %s27, 1
      %p360 = scmp.ne.s32.totalorder %s355, %s357
      %p361 = scmp.eq.s32.totalorder %s27, 0
      %p362 = por %p360, %p361
      %p363 = scmp.ne.s32.totalorder %s355, %s357
      %p364 = scmp.eq.s32.totalorder %s32, 1
      %p365 = por %p363, %p364
      %p366 = scmp.ne.s32.totalorder %s357, %s358
      %p367 = scmp.eq.s32.totalorder %s32, 0
      %p368 = por %p366, %p367
      %p369 = scmp.ne.s32.totalorder %s357, %s358
      %p370 = scmp.eq.s32.totalorder %s33, 1
      %p371 = por %p369, %p370
      %p373 = scmp.ne.s32.totalorder %s358, %s372
      %p374 = scmp.eq.s32.totalorder %s33, 0
      %p375 = por %p373, %p374
      %s377 = sadd.s32 %s376, 1
      %p380 = scmp.eq.s32.totalorder %s27, 1
      %p381 = scmp.ne.s32.totalorder %s376, %s378
      %p382 = scmp.eq.s32.totalorder %s27, 0
      %p383 = por %p381, %p382
      %p384 = scmp.ne.s32.totalorder %s376, %s378
      %p385 = scmp.eq.s32.totalorder %s32, 1
      %p386 = por %p384, %p385
      %p387 = scmp.ne.s32.totalorder %s378, %s379
      %p388 = scmp.eq.s32.totalorder %s32, 0
      %p389 = por %p387, %p388
      %p390 = scmp.ne.s32.totalorder %s378, %s379
      %p391 = scmp.eq.s32.totalorder %s33, 1
      %p392 = por %p390, %p391
      %p394 = scmp.ne.s32.totalorder %s379, %s393
      %p395 = scmp.eq.s32.totalorder %s33, 0
      %p396 = por %p394, %p395
      %s398 = sadd.s32 %s397, 1
      %p401 = scmp.eq.s32.totalorder %s27, 1
      %p402 = scmp.ne.s32.totalorder %s397, %s399
      %p403 = scmp.eq.s32.totalorder %s27, 0
      %p404 = por %p402, %p403
      %p405 = scmp.ne.s32.totalorder %s397, %s399
      %p406 = scmp.eq.s32.totalorder %s32, 1
      %p407 = por %p405, %p406
      %p408 = scmp.ne.s32.totalorder %s399, %s400
      %p409 = scmp.eq.s32.totalorder %s32, 0
      %p410 = por %p408, %p409
      %p411 = scmp.ne.s32.totalorder %s399, %s400
      %p412 = scmp.eq.s32.totalorder %s33, 1
      %p413 = por %p411, %p412
      %p415 = scmp.ne.s32.totalorder %s400, %s414
      %p416 = scmp.eq.s32.totalorder %s33, 0
      %p417 = por %p415, %p416
      %s418 = ssub.s32 %s27, %s34
      %p419 = scmp.eq.s32.totalorder %s418, 0
      %s421 = sadd.s32 %s420, 1
      %s422 = scalar_select %p419, %s420, %s421
      %p425 = pneg %p419
      %p426 = scmp.eq.s32.totalorder %s27, 1
      %p427 = por %p425, %p426
      %p428 = scmp.ne.s32.totalorder %s420, %s423
      %p429 = scmp.eq.s32.totalorder %s27, 0
      %p430 = por %p428, %p429
      %p431 = scmp.ne.s32.totalorder %s420, %s423
      %p432 = scmp.eq.s32.totalorder %s32, 1
      %p433 = por %p431, %p432
      %p434 = scmp.ne.s32.totalorder %s423, %s424
      %p435 = scmp.eq.s32.totalorder %s32, 0
      %p436 = por %p434, %p435
      %p437 = scmp.ne.s32.totalorder %s423, %s424
      %p438 = scmp.eq.s32.totalorder %s33, 1
      %p439 = por %p437, %p438
      %p441 = scmp.ne.s32.totalorder %s424, %s440
      %p442 = scmp.eq.s32.totalorder %s33, 0
      %p443 = por %p441, %p442
      %p444 = scmp.le.s32.totalorder 1, %s27
      %p445 = scmp.lt.s32.totalorder %s27, 3
      %p446 = pnand %p444, %p445
      %p447 = pneg %p446
      // Predicated region
      $region9: #{vision_encoder.1} parent=5 // pred_check
        _
      $region10: #{vision_encoder.1} parent=5 // pred_check_branch
        %449 = sbr.rel (%p446) target = $region12
      $region11: #{vision_encoder.1} parent=5 // pred_region
        %s450 = ssub.s32 %s27, 1
        // Predicated region
        $region13: #{vision_encoder.1} parent=11 // pred_check
          %p451 = pneg %p74
        $region14: #{vision_encoder.1} parent=11 // pred_check_branch
          %453 = sbr.rel (%p451) target = $region16
        $region15: #{vision_encoder.1} parent=11 // pred_region
          _
        $region16: #{vision_encoder.1} parent=11 // pred_fallthru
          _
        // Predicated region
        $region17: #{vision_encoder.1} parent=11 // pred_check
          %p454 = pneg %p95
        $region18: #{vision_encoder.1} parent=11 // pred_check_branch
          %456 = sbr.rel (%p454) target = $region20
        $region19: #{vision_encoder.1} parent=11 // pred_region
          _
        $region20: #{vision_encoder.1} parent=11 // pred_fallthru
          _
        // Predicated region
        $region21: #{vision_encoder.1} parent=11 // pred_check
          %p457 = pneg %p116
        $region22: #{vision_encoder.1} parent=11 // pred_check_branch
          %459 = sbr.rel (%p457) target = $region24
        $region23: #{vision_encoder.1} parent=11 // pred_region
          _
        $region24: #{vision_encoder.1} parent=11 // pred_fallthru
          _
        // Predicated region
        $region25: #{vision_encoder.1} parent=11 // pred_check
          %p460 = pneg %p137
        $region26: #{vision_encoder.1} parent=11 // pred_check_branch
          %462 = sbr.rel (%p460) target = $region28
        $region27: #{vision_encoder.1} parent=11 // pred_region
          _
        $region28: #{vision_encoder.1} parent=11 // pred_fallthru
          _
        // Predicated region
        $region29: #{vision_encoder.1} parent=11 // pred_check
          %p463 = pneg %p158
        $region30: #{vision_encoder.1} parent=11 // pred_check_branch
          %465 = sbr.rel (%p463) target = $region32
        $region31: #{vision_encoder.1} parent=11 // pred_region
          _
        $region32: #{vision_encoder.1} parent=11 // pred_fallthru
          _
        // Predicated region
        $region33: #{vision_encoder.1} parent=11 // pred_check
          %p466 = pneg %p179
        $region34: #{vision_encoder.1} parent=11 // pred_check_branch
          %468 = sbr.rel (%p466) target = $region36
        $region35: #{vision_encoder.1} parent=11 // pred_region
          _
        $region36: #{vision_encoder.1} parent=11 // pred_fallthru
          _
        // Predicated region
        $region37: #{vision_encoder.1} parent=11 // pred_check
          %p469 = pneg %p200
        $region38: #{vision_encoder.1} parent=11 // pred_check_branch
          %471 = sbr.rel (%p469) target = $region40
        $region39: #{vision_encoder.1} parent=11 // pred_region
          _
        $region40: #{vision_encoder.1} parent=11 // pred_fallthru
          _
        // Predicated region
        $region41: #{vision_encoder.1} parent=11 // pred_check
          %p472 = pneg %p221
        $region42: #{vision_encoder.1} parent=11 // pred_check_branch
          %474 = sbr.rel (%p472) target = $region44
        $region43: #{vision_encoder.1} parent=11 // pred_region
          _
        $region44: #{vision_encoder.1} parent=11 // pred_fallthru
          _
        // Predicated region
        $region45: #{vision_encoder.1} parent=11 // pred_check
          %p475 = pneg %p242
        $region46: #{vision_encoder.1} parent=11 // pred_check_branch
          %477 = sbr.rel (%p475) target = $region48
        $region47: #{vision_encoder.1} parent=11 // pred_region
          _
        $region48: #{vision_encoder.1} parent=11 // pred_fallthru
          _
        // Predicated region
        $region49: #{vision_encoder.1} parent=11 // pred_check
          %p478 = pneg %p263
        $region50: #{vision_encoder.1} parent=11 // pred_check_branch
          %480 = sbr.rel (%p478) target = $region52
        $region51: #{vision_encoder.1} parent=11 // pred_region
          _
        $region52: #{vision_encoder.1} parent=11 // pred_fallthru
          _
        // Predicated region
        $region53: #{vision_encoder.1} parent=11 // pred_check
          %p481 = pneg %p284
        $region54: #{vision_encoder.1} parent=11 // pred_check_branch
          %483 = sbr.rel (%p481) target = $region56
        $region55: #{vision_encoder.1} parent=11 // pred_region
          _
        $region56: #{vision_encoder.1} parent=11 // pred_fallthru
          _
        // Predicated region
        $region57: #{vision_encoder.1} parent=11 // pred_check
          %p484 = pneg %p305
        $region58: #{vision_encoder.1} parent=11 // pred_check_branch
          %486 = sbr.rel (%p484) target = $region60
        $region59: #{vision_encoder.1} parent=11 // pred_region
          _
        $region60: #{vision_encoder.1} parent=11 // pred_fallthru
          _
        // Predicated region
        $region61: #{vision_encoder.1} parent=11 // pred_check
          %p487 = pneg %p326
        $region62: #{vision_encoder.1} parent=11 // pred_check_branch
          %489 = sbr.rel (%p487) target = $region64
        $region63: #{vision_encoder.1} parent=11 // pred_region
          _
        $region64: #{vision_encoder.1} parent=11 // pred_fallthru
          _
        // Predicated region
        $region65: #{vision_encoder.1} parent=11 // pred_check
          %p490 = pneg %p347
        $region66: #{vision_encoder.1} parent=11 // pred_check_branch
          %492 = sbr.rel (%p490) target = $region68
        $region67: #{vision_encoder.1} parent=11 // pred_region
          _
        $region68: #{vision_encoder.1} parent=11 // pred_fallthru
          _
        // Predicated region
        $region69: #{vision_encoder.1} parent=11 // pred_check
          %p493 = pneg %p368
        $region70: #{vision_encoder.1} parent=11 // pred_check_branch
          %495 = sbr.rel (%p493) target = $region72
        $region71: #{vision_encoder.1} parent=11 // pred_region
          _
        $region72: #{vision_encoder.1} parent=11 // pred_fallthru
          _
        // Predicated region
        $region73: #{vision_encoder.1} parent=11 // pred_check
          %p496 = pneg %p389
        $region74: #{vision_encoder.1} parent=11 // pred_check_branch
          %498 = sbr.rel (%p496) target = $region76
        $region75: #{vision_encoder.1} parent=11 // pred_region
          _
        $region76: #{vision_encoder.1} parent=11 // pred_fallthru
          _
        // Predicated region
        $region77: #{vision_encoder.1} parent=11 // pred_check
          %p499 = pneg %p410
        $region78: #{vision_encoder.1} parent=11 // pred_check_branch
          %501 = sbr.rel (%p499) target = $region80
        $region79: #{vision_encoder.1} parent=11 // pred_region
          _
        $region80: #{vision_encoder.1} parent=11 // pred_fallthru
          _
      $region12: #{vision_encoder.1} parent=5 // pred_fallthru
        _
      %p502 = scmp.lt.s32.totalorder %s27, 2
      // Predicated region
      $region81: #{vision_encoder.1} parent=5 // pred_check
        %p503 = pneg %p502
      $region82: #{vision_encoder.1} parent=5 // pred_check_branch
        %505 = sbr.rel (%p503) target = $region84
      $region83: #{vision_encoder.1} parent=5 // pred_region
        // Predicated region
        $region85: #{vision_encoder.1} parent=83 // pred_check
          %p506 = pneg %p47
        $region86: #{vision_encoder.1} parent=83 // pred_check_branch
          %508 = sbr.rel (%p506) target = $region88
        $region87: #{vision_encoder.1} parent=83 // pred_region
          %p509 = scmp.lt.s32.totalorder %s27, 1
          %s510 = scalar_select %p509, %s27, 1
          %s511 = smul.addr %s510, 2
          %s512 = smul.addr %s511, 4
          %s513 = scalar_lea.vmem %s0, %s512
        $region88: #{vision_encoder.1} parent=83 // pred_fallthru
          _
      $region84: #{vision_encoder.1} parent=5 // pred_fallthru
        _
      %p514 = scmp.le.s32.totalorder 1, %s27
      %p515 = scmp.lt.s32.totalorder %s27, 3
      %p516 = pnand %p514, %p515
      %p517 = pneg %p516
      // Predicated region
      $region89: #{vision_encoder.1} parent=5 // pred_check
        _
      $region90: #{vision_encoder.1} parent=5 // pred_check_branch
        %519 = sbr.rel (%p516) target = $region92
      $region91: #{vision_encoder.1} parent=5 // pred_region
        %s520 = ssub.s32 %s27, 1
        %p521 = scmp.lt.s32.totalorder %s32, 1
        %s522 = scalar_select %p521, %s32, 1
        %s523 = smul.addr %s522, 2
        %s524 = smul.addr %s523, 4
        %s525 = scalar_lea.vmem %s0, %s524
        %p526 = pneg %p53
        %p527 = pneg %p50
        %p528 = pneg %p74
        %p529 = pneg %p71
        %p530 = pneg %p95
        %p531 = pneg %p92
        %p532 = pneg %p116
        %p533 = pneg %p113
        %p534 = pneg %p137
        %p535 = pneg %p134
        %p536 = pneg %p158
        %p537 = pneg %p155
        %p538 = pneg %p179
        %p539 = pneg %p176
        %p540 = pneg %p200
        %p541 = pneg %p197
        %p542 = pneg %p221
        %p543 = pneg %p218
        %p544 = pneg %p242
        %p545 = pneg %p239
        %p546 = pneg %p263
        %p547 = pneg %p260
        %p548 = pneg %p284
        %p549 = pneg %p281
        %p550 = pneg %p305
        %p551 = pneg %p302
        %p552 = pneg %p326
        %p553 = pneg %p323
        %p554 = pneg %p347
        %p555 = pneg %p344
        %p556 = pneg %p368
        %p557 = pneg %p365
        %p558 = pneg %p389
        %p559 = pneg %p386
        %p560 = pneg %p410
        %p561 = pneg %p407
        %p562 = pneg %p436
        %p563 = pneg %p433
        %s564 = sand.u32 %s423, 1
        %s565 = scalar_lea.sflag [#allocation3], %s564
        %s566 = sand.u32 %s423, 1
        %s567 = smul.addr %s566, 4
        %s568 = scalar_lea.vmem [#allocation2], %s567
        %p569 = scmp.lt.s32.totalorder %s32, 1
        %s570 = scalar_select %p569, %s32, 1
        %s571 = smul.addr %s570, 2
        %s572 = smul.addr %s571, 4
        %s573 = scalar_lea.vmem %s0, %s572
        %v574 = vld [vmem:[%s573] sm:$0xff]
        %v575 = vld [vmem:[%s2] sm:$0xff]
        %v576 = vld [vmem:[%s2 + $0x8] sm:$0xff]
        %v577 = vld [vmem:[%s2 + $0x10] sm:$0xff]
        %v578 = vld [vmem:[%s2 + $0x18] sm:$0xff]
        %v579 = vld [vmem:[%s2 + $0x20] sm:$0xff]
        %v580 = vld [vmem:[%s2 + $0x28] sm:$0xff]
        %v581 = vld [vmem:[%s2 + $0x30] sm:$0xff]
        %v582 = vld [vmem:[%s2 + $0x38] sm:$0xff]
        %v583 = vld [vmem:[%s2 + $0x40] sm:$0xff]
        %v584 = vld [vmem:[%s2 + $0x48] sm:$0xff]
        %v585 = vld [vmem:[%s2 + $0x50] sm:$0xff]
        %v586 = vld [vmem:[%s2 + $0x58] sm:$0xff]
        %v587 = vld [vmem:[%s2 + $0x60] sm:$0xff]
        %v588 = vld [vmem:[%s2 + $0x68] sm:$0xff]
        %v589 = vld [vmem:[%s2 + $0x70] sm:$0xff]
        %v590 = vld [vmem:[%s2 + $0x78] sm:$0xff]
        %v591 = vld [vmem:[%s2 + $0x80] sm:$0xff]
        %v592 = vld [vmem:[%s2 + $0x88] sm:$0xff]
        %v593 = vld [vmem:[%s2 + $0x90] sm:$0xff]
        %v594 = vld [vmem:[%s2 + $0x98] sm:$0xff]
        %v595 = vld [vmem:[%s2 + $0xa0] sm:$0xff]
        %v596 = vld [vmem:[%s2 + $0xa8] sm:$0xff]
        %v597 = vld [vmem:[%s2 + $0xb0] sm:$0xff]
        %v598 = vld [vmem:[%s2 + $0xb8] sm:$0xff]
        %v599 = vld [vmem:[%s3] sm:$0x1]
        %v601 = vlaneseq
        %v602 = vshrl.u32 %v601, 7
        %v603 = vsub.s32 0, %v602
        %v604 = vrot.slane %v599, %v603
        %v607 = vcombine.high %v574, %v574
        %vm608 = vcmask 523264
        %v609 = vsel %vm608, %v607, 0
        %611 = vmatprep.subr.mxu0 0.0
        %612 = vmatpush1.msra.mxu0 %v575
        %613 = vmatprep.subr.mxu0 0.0
        %614 = vmatpush1.msra.mxu0 %v576
        %615 = vmatprep.subr.mxu0 0.0
        %616 = vmatpush1.msra.mxu0 %v577
        %617 = vmatprep.subr.mxu0 0.0
        %618 = vmatpush1.msra.mxu0 %v578
        %619 = vmatprep.subr.mxu0 0.0
        %620 = vmatpush1.msra.mxu0 %v579
        %621 = vmatprep.subr.mxu0 0.0
        %622 = vmatpush1.msra.mxu0 %v580
        %623 = vmatprep.subr.mxu0 0.0
        %624 = vmatpush1.msra.mxu0 %v581
        %625 = vmatprep.subr.mxu0 0.0
        %626 = vmatpush1.msra.mxu0 %v582
        %627 = vmatprep.subr.mxu0 0.0
        %628 = vmatpush1.msra.mxu0 %v583
        %629 = vmatprep.subr.mxu0 0.0
        %630 = vmatpush1.msra.mxu0 %v584
        %631 = vmatprep.subr.mxu0 0.0
        %632 = vmatpush1.msra.mxu0 %v585
        %633 = vmatprep.subr.mxu0 0.0
        %634 = vmatpush1.msra.mxu0 %v586
        %635 = vmatprep.subr.mxu0 0.0
        %636 = vmatpush1.msra.mxu0 %v587
        %637 = vmatprep.subr.mxu0 0.0
        %638 = vmatpush1.msra.mxu0 %v588
        %639 = vmatprep.subr.mxu0 0.0
        %640 = vmatpush1.msra.mxu0 %v589
        %641 = vmatprep.subr.mxu0 0.0
        %642 = vmatpush1.msra.mxu0 %v590
        %643 = vmatprep.subr.mxu0 0.0
        %644 = vmatpush1.msra.mxu0 %v591
        %645 = vmatprep.subr.mxu0 0.0
        %646 = vmatpush1.msra.mxu0 %v592
        %647 = vmatprep.subr.mxu0 0.0
        %648 = vmatpush1.msra.mxu0 %v593
        %649 = vmatprep.subr.mxu0 0.0
        %650 = vmatpush1.msra.mxu0 %v594
        %651 = vmatprep.subr.mxu0 0.0
        %652 = vmatpush1.msra.mxu0 %v595
        %653 = vmatprep.subr.mxu0 0.0
        %654 = vmatpush1.msra.mxu0 %v596
        %655 = vmatprep.subr.mxu0 0.0
        %656 = vmatpush1.msra.mxu0 %v597
        %657 = vmatprep.subr.mxu0 0.0
        %658 = vmatpush1.msra.mxu0 %v598
        %659 = vmatprep.subr.mxu0 0.0
        %660 = vmatpush1.msra.mxu0 0.0
        %661 = vmatprep.subr.mxu0 0.0
        %662 = vmatpush1.msra.mxu0 0.0
        %663 = vmatprep.subr.mxu0 0.0
        %664 = vmatpush1.msra.mxu0 0.0
        %665 = vmatprep.subr.mxu0 0.0
        %666 = vmatpush1.msra.mxu0 0.0
        %667 = vmatprep.subr.mxu0 0.0
        %668 = vmatpush1.msra.mxu0 0.0
        %669 = vmatprep.subr.mxu0 0.0
        %670 = vmatpush1.msra.mxu0 0.0
        %671 = vmatprep.subr.mxu0 0.0
        %672 = vmatpush1.msra.mxu0 0.0
        %673 = vmatprep.subr.mxu0 0.0
        %674 = vmatpush1.msra.mxu0 0.0
        %675 = vmatprep.mubr.f32.mxu0 %v609
        %676 = vmatmul.mubr.f32.gmra.mrb[0].mxu0 %v574
        %v677 = vpop.f32.mrb[0].mxu0
        %v678 = vadd.f32 %v604, %v677
        %v679 = vpop.f32.mrb[0].mxu0
        %680 = vdwg.mxu0
        %v681 = vld [vmem:[%s1] sm:$0xf]
        %v682 = vadd.f32 %v678, %v681
        %v683 = vld [vmem:[%s4] sm:$0x1]
        %v684 = vld [vmem:[%s5] sm:$0x1]
        %vm685 = vcmask 257024
        %v686 = vsel %vm685, %v682, 0.0
        %687 = vadd.xlane.f32.xlu0 %v686
        %v688 = vpop.xlane.xlu0 %687
        %v689 = vrcp.pop 32.0
        %v690 = vmul.f32 %v688, %v689
        %v691 = vsub.f32 %v682, %v690
        %v692 = vmul.f32 %v691, %v691
        %v693 = vsel %vm685, %v692, 0.0
        %694 = vadd.xlane.f32.xlu0 %v693
        %v695 = vpop.xlane.xlu0 %694
        %v696 = vmul.f32 %v695, %v689
        %v697 = vadd.f32 %v696, 1e-06
        %v698 = vrsqrt.pop %v697
        %v699 = vmul.f32 %v691, %v698
        %v701 = vlaneseq
        %v702 = vshrl.u32 %v701, 7
        %v703 = vsub.s32 0, %v702
        %v704 = vrot.slane %v683, %v703
        %v706 = vmul.f32 %v699, %v704
        %v708 = vlaneseq
        %v709 = vshrl.u32 %v708, 7
        %v710 = vsub.s32 0, %v709
        %v711 = vrot.slane %v684, %v710
        %v713 = vadd.f32 %v706, %v711
        %v714 = vld [vmem:[%s6] sm:$0xff]
        %v715 = vld [vmem:[%s6 + $0x8] sm:$0xff]
        %v716 = vld [vmem:[%s6 + $0x10] sm:$0xff]
        %v717 = vld [vmem:[%s6 + $0x18] sm:$0xff]
        %v718 = vld [vmem:[%s7] sm:$0x1]
        %v720 = vlaneseq
        %v721 = vshrl.u32 %v720, 7
        %v722 = vsub.s32 0, %v721
        %v723 = vrot.slane %v718, %v722
        %vm725 = vcmask 261120
        %v727 = vsel %vm725, %v713, 0
        %729 = vmatprep.subr.mxu0 0.0
        %730 = vmatpush1.msra.mxu0 %v714
        %731 = vmatprep.subr.mxu0 0.0
        %732 = vmatpush1.msra.mxu0 %v715
        %733 = vmatprep.subr.mxu0 0.0
        %734 = vmatpush1.msra.mxu0 %v716
        %735 = vmatprep.subr.mxu0 0.0
        %736 = vmatpush1.msra.mxu0 %v717
        %737 = vmatprep.subr.mxu0 0.0
        %738 = vmatpush1.msra.mxu0 0.0
        %739 = vmatprep.subr.mxu0 0.0
        %740 = vmatpush1.msra.mxu0 0.0
        %741 = vmatprep.subr.mxu0 0.0
        %742 = vmatpush1.msra.mxu0 0.0
        %743 = vmatprep.subr.mxu0 0.0
        %744 = vmatpush1.msra.mxu0 0.0
        %745 = vmatprep.subr.mxu0 0.0
        %746 = vmatpush1.msra.mxu0 0.0
        %747 = vmatprep.subr.mxu0 0.0
        %748 = vmatpush1.msra.mxu0 0.0
        %749 = vmatprep.subr.mxu0 0.0
        %750 = vmatpush1.msra.mxu0 0.0
        %751 = vmatprep.subr.mxu0 0.0
        %752 = vmatpush1.msra.mxu0 0.0
        %753 = vmatprep.subr.mxu0 0.0
        %754 = vmatpush1.msra.mxu0 0.0
        %755 = vmatprep.subr.mxu0 0.0
        %756 = vmatpush1.msra.mxu0 0.0
        %757 = vmatprep.subr.mxu0 0.0
        %758 = vmatpush1.msra.mxu0 0.0
        %759 = vmatprep.subr.mxu0 0.0
        %760 = vmatpush1.msra.mxu0 0.0
        %761 = vmatprep.subr.mxu0 0.0
        %762 = vmatpush1.msra.mxu0 0.0
        %763 = vmatprep.subr.mxu0 0.0
        %764 = vmatpush1.msra.mxu0 0.0
        %765 = vmatprep.subr.mxu0 0.0
        %766 = vmatpush1.msra.mxu0 0.0
        %767 = vmatprep.subr.mxu0 0.0
        %768 = vmatpush1.msra.mxu0 0.0
        %769 = vmatprep.subr.mxu0 0.0
        %770 = vmatpush1.msra.mxu0 0.0
        %771 = vmatprep.subr.mxu0 0.0
        %772 = vmatpush1.msra.mxu0 0.0
        %773 = vmatprep.subr.mxu0 0.0
        %774 = vmatpush1.msra.mxu0 0.0
        %775 = vmatprep.subr.mxu0 0.0
        %776 = vmatpush1.msra.mxu0 0.0
        %777 = vmatprep.subr.mxu0 0.0
        %778 = vmatpush1.msra.mxu0 0.0
        %779 = vmatprep.subr.mxu0 0.0
        %780 = vmatpush1.msra.mxu0 0.0
        %781 = vmatprep.subr.mxu0 0.0
        %782 = vmatpush1.msra.mxu0 0.0
        %783 = vmatprep.subr.mxu0 0.0
        %784 = vmatpush1.msra.mxu0 0.0
        %785 = vmatprep.subr.mxu0 0.0
        %786 = vmatpush1.msra.mxu0 0.0
        %787 = vmatprep.subr.mxu0 0.0
        %788 = vmatpush1.msra.mxu0 0.0
        %789 = vmatprep.subr.mxu0 0.0
        %790 = vmatpush1.msra.mxu0 0.0
        %791 = vmatprep.subr.mxu0 0.0
        %792 = vmatpush1.msra.mxu0 0.0
        %793 = vmatprep.mubr.f32.mxu0 0.0
        %794 = vmatmul.mubr.f32.gmra.mrb[0].mxu0 %v727
        %v795 = vpop.f32.mrb[0].mxu0
        %v796 = vadd.f32 %v723, %v795
        %v797 = vpop.f32.mrb[0].mxu0
        %798 = vdwg.mxu0
        %v799 = vmul.f32 %v796, 0.35355338
        %v800 = vld [vmem:[%s8] sm:$0xff]
        %v801 = vld [vmem:[%s8 + $0x8] sm:$0xff]
        %v802 = vld [vmem:[%s8 + $0x10] sm:$0xff]
        %v803 = vld [vmem:[%s8 + $0x18] sm:$0xff]
        %805 = vrot.lane.b32.xlu0 %v796, 96
        %v806 = vpop.permute.xlu0 %805
        %vm807 = vcmask 64512
        %v809 = vsel %vm807, %v799, 0
        %v811 = vsel %vm807, %v806, 0
        %813 = vmatprep.subr.mxu0 0.0
        %814 = vmatpush1.xpose.msra.mxu0 %v811
        %815 = vmatprep.subr.mxu0 0.0
        %816 = vmatpush1.xpose.msra.mxu0 0.0
        %817 = vmatprep.subr.mxu0 0.0
        %818 = vmatpush1.xpose.msra.mxu0 0.0
        %819 = vmatprep.subr.mxu0 0.0
        %820 = vmatpush1.xpose.msra.mxu0 0.0
        %821 = vmatprep.subr.mxu0 0.0
        %822 = vmatpush1.xpose.msra.mxu0 0.0
        %823 = vmatprep.subr.mxu0 0.0
        %824 = vmatpush1.xpose.msra.mxu0 0.0
        %825 = vmatprep.subr.mxu0 0.0
        %826 = vmatpush1.xpose.msra.mxu0 0.0
        %827 = vmatprep.subr.mxu0 0.0
        %828 = vmatpush1.xpose.msra.mxu0 0.0
        %829 = vmatprep.subr.mxu0 0.0
        %830 = vmatpush1.xpose.msra.mxu0 0.0
        %831 = vmatprep.subr.mxu0 0.0
        %832 = vmatpush1.xpose.msra.mxu0 0.0
        %833 = vmatprep.subr.mxu0 0.0
        %834 = vmatpush1.xpose.msra.mxu0 0.0
        %835 = vmatprep.subr.mxu0 0.0
        %836 = vmatpush1.xpose.msra.mxu0 0.0
        %837 = vmatprep.subr.mxu0 0.0
        %838 = vmatpush1.xpose.msra.mxu0 0.0
        %839 = vmatprep.subr.mxu0 0.0
        %840 = vmatpush1.xpose.msra.mxu0 0.0
        %841 = vmatprep.subr.mxu0 0.0
        %842 = vmatpush1.xpose.msra.mxu0 0.0
        %843 = vmatprep.subr.mxu0 0.0
        %844 = vmatpush1.xpose.msra.mxu0 0.0
        %845 = vmatprep.subr.mxu0 0.0
        %846 = vmatpush1.xpose.msra.mxu0 0.0
        %847 = vmatprep.subr.mxu0 0.0
        %848 = vmatpush1.xpose.msra.mxu0 0.0
        %849 = vmatprep.subr.mxu0 0.0
        %850 = vmatpush1.xpose.msra.mxu0 0.0
        %851 = vmatprep.subr.mxu0 0.0
        %852 = vmatpush1.xpose.msra.mxu0 0.0
        %853 = vmatprep.subr.mxu0 0.0
        %854 = vmatpush1.xpose.msra.mxu0 0.0
        %855 = vmatprep.subr.mxu0 0.0
        %856 = vmatpush1.xpose.msra.mxu0 0.0
        %857 = vmatprep.subr.mxu0 0.0
        %858 = vmatpush1.xpose.msra.mxu0 0.0
        %859 = vmatprep.subr.mxu0 0.0
        %860 = vmatpush1.xpose.msra.mxu0 0.0
        %861 = vmatprep.subr.mxu0 0.0
        %862 = vmatpush1.xpose.msra.mxu0 0.0
        %863 = vmatprep.subr.mxu0 0.0
        %864 = vmatpush1.xpose.msra.mxu0 0.0
        %865 = vmatprep.subr.mxu0 0.0
        %866 = vmatpush1.xpose.msra.mxu0 0.0
        %867 = vmatprep.subr.mxu0 0.0
        %868 = vmatpush1.xpose.msra.mxu0 0.0
        %869 = vmatprep.subr.mxu0 0.0
        %870 = vmatpush1.xpose.msra.mxu0 0.0
        %871 = vmatprep.subr.mxu0 0.0
        %872 = vmatpush1.xpose.msra.mxu0 0.0
        %873 = vmatprep.subr.mxu0 0.0
        %874 = vmatpush1.xpose.msra.mxu0 0.0
        %875 = vmatprep.subr.mxu0 0.0
        %876 = vmatpush1.xpose.msra.mxu0 0.0
        %877 = vmatprep.mubr.f32.mxu0 0.0
        %878 = vmatmul.mubr.f32.gmra.mrb[0].mxu0 %v809
        %v879 = vpop.f32.mrb[0].mxu0
        %v880 = vadd.f32 0.0, %v879
        %v881 = vpop.f32.mrb[0].mxu0
        %882 = vdwg.mxu0
        %vm883 = vcmask 27648
        %v884 = vsel %vm883, %v880, -inf
        %885 = vmax.xlane.f32.xlu0 %v884
        %v886 = vpop.xlane.xlu0 %885
        %v887 = vsub.f32 %v880, %v886
        %v888 = vmul.f32 %v887, 1.442695
        %v889 = vpow.pop %v888
        %v890 = vsel %vm883, %v889, 0.0
        %891 = vadd.xlane.f32.xlu0 %v890
        %v892 = vpop.xlane.xlu0 %891
        %v893 = vrcp.pop %v892
        %v894 = vmul.f32 %v889, %v893
        %895 = vrot.lane.b32.xlu0 %v796, 64
        %v896 = vpop.permute.xlu0 %895
        %vm897 = vcmask 31744
        %v899 = vsel %vm897, %v894, 0
        %vm901 = vcmask 1043456
        %v902 = vsel %vm901, %v896, 0
        %904 = vmatprep.subr.mxu0 0.0
        %905 = vmatpush1.msra.mxu0 %v902
        %906 = vmatprep.subr.mxu0 0.0
        %907 = vmatpush1.msra.mxu0 0.0
        %908 = vmatprep.subr.mxu0 0.0
        %909 = vmatpush1.msra.mxu0 0.0
        %910 = vmatprep.subr.mxu0 0.0
        %911 = vmatpush1.msra.mxu0 0.0
        %912 = vmatprep.subr.mxu0 0.0
        %913 = vmatpush1.msra.mxu0 0.0
        %914 = vmatprep.subr.mxu0 0.0
        %915 = vmatpush1.msra.mxu0 0.0
        %916 = vmatprep.subr.mxu0 0.0
        %917 = vmatpush1.msra.mxu0 0.0
        %918 = vmatprep.subr.mxu0 0.0
        %919 = vmatpush1.msra.mxu0 0.0
        %920 = vmatprep.subr.mxu0 0.0
        %921 = vmatpush1.msra.mxu0 0.0
        %922 = vmatprep.subr.mxu0 0.0
        %923 = vmatpush1.msra.mxu0 0.0
        %924 = vmatprep.subr.mxu0 0.0
        %925 = vmatpush1.msra.mxu0 0.0
        %926 = vmatprep.subr.mxu0 0.0
        %927 = vmatpush1.msra.mxu0 0.0
        %928 = vmatprep.subr.mxu0 0.0
        %929 = vmatpush1.msra.mxu0 0.0
        %930 = vmatprep.subr.mxu0 0.0
        %931 = vmatpush1.msra.mxu0 0.0
        %932 = vmatprep.subr.mxu0 0.0
        %933 = vmatpush1.msra.mxu0 0.0
        %934 = vmatprep.subr.mxu0 0.0
        %935 = vmatpush1.msra.mxu0 0.0
        %936 = vmatprep.subr.mxu0 0.0
        %937 = vmatpush1.msra.mxu0 0.0
        %938 = vmatprep.subr.mxu0 0.0
        %939 = vmatpush1.msra.mxu0 0.0
        %940 = vmatprep.subr.mxu0 0.0
        %941 = vmatpush1.msra.mxu0 0.0
        %942 = vmatprep.subr.mxu0 0.0
        %943 = vmatpush1.msra.mxu0 0.0
        %944 = vmatprep.subr.mxu0 0.0
        %945 = vmatpush1.msra.mxu0 0.0
        %946 = vmatprep.subr.mxu0 0.0
        %947 = vmatpush1.msra.mxu0 0.0
        %948 = vmatprep.subr.mxu0 0.0
        %949 = vmatpush1.msra.mxu0 0.0
        %950 = vmatprep.subr.mxu0 0.0
        %951 = vmatpush1.msra.mxu0 0.0
        %952 = vmatprep.subr.mxu0 0.0
        %953 = vmatpush1.msra.mxu0 0.0
        %954 = vmatprep.subr.mxu0 0.0
        %955 = vmatpush1.msra.mxu0 0.0
        %956 = vmatprep.subr.mxu0 0.0
        %957 = vmatpush1.msra.mxu0 0.0
        %958 = vmatprep.subr.mxu0 0.0
        %959 = vmatpush1.msra.mxu0 0.0
        %960 = vmatprep.subr.mxu0 0.0
        %961 = vmatpush1.msra.mxu0 0.0
        %962 = vmatprep.subr.mxu0 0.0
        %963 = vmatpush1.msra.mxu0 0.0
        %964 = vmatprep.subr.mxu0 0.0
        %965 = vmatpush1.msra.mxu0 0.0
        %966 = vmatprep.subr.mxu0 0.0
        %967 = vmatpush1.msra.mxu0 0.0
        %968 = vmatprep.mubr.f32.mxu0 0.0
        %969 = vmatmul.mubr.f32.gmra.mrb[0].mxu0 %v899
        %v970 = vpop.f32.mrb[0].mxu0
        %v971 = vadd.f32 0.0, %v970
        %v972 = vpop.f32.mrb[0].mxu0
        %973 = vdwg.mxu0
        %974 = vrot.lane.b32.xlu0 %v799, 120
        %v975 = vpop.permute.xlu0 %974
        %976 = vrot.lane.b32.xlu0 %v796, 88
        %v977 = vpop.permute.xlu0 %976
        %v978 = vsel %vm807, %v975, 0
        %v980 = vsel %vm807, %v977, 0
        %982 = vmatprep.subr.mxu0 0.0
        %983 = vmatpush1.xpose.msra.mxu0 %v980
        %984 = vmatprep.subr.mxu0 0.0
        %985 = vmatpush1.xpose.msra.mxu0 0.0
        %986 = vmatprep.subr.mxu0 0.0
        %987 = vmatpush1.xpose.msra.mxu0 0.0
        %988 = vmatprep.subr.mxu0 0.0
        %989 = vmatpush1.xpose.msra.mxu0 0.0
        %990 = vmatprep.subr.mxu0 0.0
        %991 = vmatpush1.xpose.msra.mxu0 0.0
        %992 = vmatprep.subr.mxu0 0.0
        %993 = vmatpush1.xpose.msra.mxu0 0.0
        %994 = vmatprep.subr.mxu0 0.0
        %995 = vmatpush1.xpose.msra.mxu0 0.0
        %996 = vmatprep.subr.mxu0 0.0
        %997 = vmatpush1.xpose.msra.mxu0 0.0
        %998 = vmatprep.subr.mxu0 0.0
        %999 = vmatpush1.xpose.msra.mxu0 0.0
        %1000 = vmatprep.subr.mxu0 0.0
        %1001 = vmatpush1.xpose.msra.mxu0 0.0
        %1002 = vmatprep.subr.mxu0 0.0
        %1003 = vmatpush1.xpose.msra.mxu0 0.0
        %1004 = vmatprep.subr.mxu0 0.0
        %1005 = vmatpush1.xpose.msra.mxu0 0.0
        %1006 = vmatprep.subr.mxu0 0.0
        %1007 = vmatpush1.xpose.msra.mxu0 0.0
        %1008 = vmatprep.subr.mxu0 0.0
        %1009 = vmatpush1.xpose.msra.mxu0 0.0
        %1010 = vmatprep.subr.mxu0 0.0
        %1011 = vmatpush1.xpose.msra.mxu0 0.0
        %1012 = vmatprep.subr.mxu0 0.0
        %1013 = vmatpush1.xpose.msra.mxu0 0.0
        %1014 = vmatprep.subr.mxu0 0.0
        %1015 = vmatpush1.xpose.msra.mxu0 0.0
        %1016 = vmatprep.subr.mxu0 0.0
        %1017 = vmatpush1.xpose.msra.mxu0 0.0
        %1018 = vmatprep.subr.mxu0 0.0
        %1019 = vmatpush1.xpose.msra.mxu0 0.0
        %1020 = vmatprep.subr.mxu0 0.0
        %1021 = vmatpush1.xpose.msra.mxu0 0.0
        %1022 = vmatprep.subr.mxu0 0.0
        %1023 = vmatpush1.xpose.msra.mxu0 0.0
        %1024 = vmatprep.subr.mxu0 0.0
        %1025 = vmatpush1.xpose.msra.mxu0 0.0
        %1026 = vmatprep.subr.mxu0 0.0
        %1027 = vmatpush1.xpose.msra.mxu0 0.0
        %1028 = vmatprep.subr.mxu0 0.0
        %1029 = vmatpush1.xpose.msra.mxu0 0.0
        %1030 = vmatprep.subr.mxu0 0.0
        %1031 = vmatpush1.xpose.msra.mxu0 0.0
        %1032 = vmatprep.subr.mxu0 0.0
        %1033 = vmatpush1.xpose.msra.mxu0 0.0
        %1034 = vmatprep.subr.mxu0 0.0
        %1035 = vmatpush1.xpose.msra.mxu0 0.0
        %1036 = vmatprep.subr.mxu0 0.0
        %1037 = vmatpush1.xpose.msra.mxu0 0.0
        %1038 = vmatprep.subr.mxu0 0.0
        %1039 = vmatpush1.xpose.msra.mxu0 0.0
        %1040 = vmatprep.subr.mxu0 0.0
        %1041 = vmatpush1.xpose.msra.mxu0 0.0
        %1042 = vmatprep.subr.mxu0 0.0
        %1043 = vmatpush1.xpose.msra.mxu0 0.0
        %1044 = vmatprep.subr.mxu0 0.0
        %1045 = vmatpush1.xpose.msra.mxu0 0.0
        %1046 = vmatprep.mubr.f32.mxu0 0.0
        %1047 = vmatmul.mubr.f32.gmra.mrb[0].mxu0 %v978
        %v1048 = vpop.f32.mrb[0].mxu0
        %v1049 = vadd.f32 0.0, %v1048
        %v1050 = vpop.f32.mrb[0].mxu0
        %1051 = vdwg.mxu0
        %v1052 = vsel %vm883, %v1049, -inf
        %1053 = vmax.xlane.f32.xlu0 %v1052
        %v1054 = vpop.xlane.xlu0 %1053
        %v1055 = vsub.f32 %v1049, %v1054
        %v1056 = vmul.f32 %v1055, 1.442695
        %v1057 = vpow.pop %v1056
        %v1058 = vsel %vm883, %v1057, 0.0
        %1059 = vadd.xlane.f32.xlu0 %v1058
        %v1060 = vpop.xlane.xlu0 %1059
        %v1061 = vrcp.pop %v1060
        %v1062 = vmul.f32 %v1057, %v1061
        %1063 = vrot.lane.b32.xlu0 %v796, 56
        %v1064 = vpop.permute.xlu0 %1063
        %v1066 = vsel %vm897, %v1062, 0
        %v1068 = vsel %vm901, %v1064, 0
        %1070 = vmatprep.subr.mxu0 0.0
        %1071 = vmatpush1.msra.mxu0 %v1068
        %1072 = vmatprep.subr.mxu0 0.0
        %1073 = vmatpush1.msra.mxu0 0.0
        %1074 = vmatprep.subr.mxu0 0.0
        %1075 = vmatpush1.msra.mxu0 0.0
        %1076 = vmatprep.subr.mxu0 0.0
        %1077 = vmatpush1.msra.mxu0 0.0
        %1078 = vmatprep.subr.mxu0 0.0
        %1079 = vmatpush1.msra.mxu0 0.0
        %1080 = vmatprep.subr.mxu0 0.0
        %1081 = vmatpush1.msra.mxu0 0.0
        %1082 = vmatprep.subr.mxu0 0.0
        %1083 = vmatpush1.msra.mxu0 0.0
        %1084 = vmatprep.subr.mxu0 0.0
        %1085 = vmatpush1.msra.mxu0 0.0
        %1086 = vmatprep.subr.mxu0 0.0
        %1087 = vmatpush1.msra.mxu0 0.0
        %1088 = vmatprep.subr.mxu0 0.0
        %1089 = vmatpush1.msra.mxu0 0.0
        %1090 = vmatprep.subr.mxu0 0.0
        %1091 = vmatpush1.msra.mxu0 0.0
        %1092 = vmatprep.subr.mxu0 0.0
        %1093 = vmatpush1.msra.mxu0 0.0
        %1094 = vmatprep.subr.mxu0 0.0
        %1095 = vmatpush1.msra.mxu0 0.0
        %1096 = vmatprep.subr.mxu0 0.0
        %1097 = vmatpush1.msra.mxu0 0.0
        %1098 = vmatprep.subr.mxu0 0.0
        %1099 = vmatpush1.msra.mxu0 0.0
        %1100 = vmatprep.subr.mxu0 0.0
        %1101 = vmatpush1.msra.mxu0 0.0
        %1102 = vmatprep.subr.mxu0 0.0
        %1103 = vmatpush1.msra.mxu0 0.0
        %1104 = vmatprep.subr.mxu0 0.0
        %1105 = vmatpush1.msra.mxu0 0.0
        %1106 = vmatprep.subr.mxu0 0.0
        %1107 = vmatpush1.msra.mxu0 0.0
        %1108 = vmatprep.subr.mxu0 0.0
        %1109 = vmatpush1.msra.mxu0 0.0
        %1110 = vmatprep.subr.mxu0 0.0
        %1111 = vmatpush1.msra.mxu0 0.0
        %1112 = vmatprep.subr.mxu0 0.0
        %1113 = vmatpush1.msra.mxu0 0.0
        %1114 = vmatprep.subr.mxu0 0.0
        %1115 = vmatpush1.msra.mxu0 0.0
        %1116 = vmatprep.subr.mxu0 0.0
        %1117 = vmatpush1.msra.mxu0 0.0
        %1118 = vmatprep.subr.mxu0 0.0
        %1119 = vmatpush1.msra.mxu0 0.0
        %1120 = vmatprep.subr.mxu0 0.0
        %1121 = vmatpush1.msra.mxu0 0.0
        %1122 = vmatprep.subr.mxu0 0.0
        %1123 = vmatpush1.msra.mxu0 0.0
        %1124 = vmatprep.subr.mxu0 0.0
        %1125 = vmatpush1.msra.mxu0 0.0
        %1126 = vmatprep.subr.mxu0 0.0
        %1127 = vmatpush1.msra.mxu0 0.0
        %1128 = vmatprep.subr.mxu0 0.0
        %1129 = vmatpush1.msra.mxu0 0.0
        %1130 = vmatprep.subr.mxu0 0.0
        %1131 = vmatpush1.msra.mxu0 0.0
        %1132 = vmatprep.subr.mxu0 0.0
        %1133 = vmatpush1.msra.mxu0 0.0
        %1134 = vmatprep.mubr.f32.mxu0 0.0
        %1135 = vmatmul.mubr.f32.gmra.mrb[0].mxu0 %v1066
        %v1136 = vpop.f32.mrb[0].mxu0
        %v1137 = vadd.f32 0.0, %v1136
        %v1138 = vpop.f32.mrb[0].mxu0
        %1139 = vdwg.mxu0
        %v1141 = vsel %vm807, %v1137, 0
        %1143 = vmatprep.subr.mxu0 0.0
        %1144 = vmatpush1.msra.mxu0 %v801
        %1145 = vmatprep.subr.mxu0 0.0
        %1146 = vmatpush1.msra.mxu0 0.0
        %1147 = vmatprep.subr.mxu0 0.0
        %1148 = vmatpush1.msra.mxu0 0.0
        %1149 = vmatprep.subr.mxu0 0.0
        %1150 = vmatpush1.msra.mxu0 0.0
        %1151 = vmatprep.subr.mxu0 0.0
        %1152 = vmatpush1.msra.mxu0 0.0
        %1153 = vmatprep.subr.mxu0 0.0
        %1154 = vmatpush1.msra.mxu0 0.0
        %1155 = vmatprep.subr.mxu0 0.0
        %1156 = vmatpush1.msra.mxu0 0.0
        %1157 = vmatprep.subr.mxu0 0.0
        %1158 = vmatpush1.msra.mxu0 0.0
        %1159 = vmatprep.subr.mxu0 0.0
        %1160 = vmatpush1.msra.mxu0 0.0
        %1161 = vmatprep.subr.mxu0 0.0
        %1162 = vmatpush1.msra.mxu0 0.0
        %1163 = vmatprep.subr.mxu0 0.0
        %1164 = vmatpush1.msra.mxu0 0.0
        %1165 = vmatprep.subr.mxu0 0.0
        %1166 = vmatpush1.msra.mxu0 0.0
        %1167 = vmatprep.subr.mxu0 0.0
        %1168 = vmatpush1.msra.mxu0 0.0
        %1169 = vmatprep.subr.mxu0 0.0
        %1170 = vmatpush1.msra.mxu0 0.0
        %1171 = vmatprep.subr.mxu0 0.0
        %1172 = vmatpush1.msra.mxu0 0.0
        %1173 = vmatprep.subr.mxu0 0.0
        %1174 = vmatpush1.msra.mxu0 0.0
        %1175 = vmatprep.subr.mxu0 0.0
        %1176 = vmatpush1.msra.mxu0 0.0
        %1177 = vmatprep.subr.mxu0 0.0
        %1178 = vmatpush1.msra.mxu0 0.0
        %1179 = vmatprep.subr.mxu0 0.0
        %1180 = vmatpush1.msra.mxu0 0.0
        %1181 = vmatprep.subr.mxu0 0.0
        %1182 = vmatpush1.msra.mxu0 0.0
        %1183 = vmatprep.subr.mxu0 0.0
        %1184 = vmatpush1.msra.mxu0 0.0
        %1185 = vmatprep.subr.mxu0 0.0
        %1186 = vmatpush1.msra.mxu0 0.0
        %1187 = vmatprep.subr.mxu0 0.0
        %1188 = vmatpush1.msra.mxu0 0.0
        %1189 = vmatprep.subr.mxu0 0.0
        %1190 = vmatpush1.msra.mxu0 0.0
        %1191 = vmatprep.subr.mxu0 0.0
        %1192 = vmatpush1.msra.mxu0 0.0
        %1193 = vmatprep.subr.mxu0 0.0
        %1194 = vmatpush1.msra.mxu0 0.0
        %1195 = vmatprep.subr.mxu0 0.0
        %1196 = vmatpush1.msra.mxu0 0.0
        %1197 = vmatprep.subr.mxu0 0.0
        %1198 = vmatpush1.msra.mxu0 0.0
        %1199 = vmatprep.subr.mxu0 0.0
        %1200 = vmatpush1.msra.mxu0 0.0
        %1201 = vmatprep.subr.mxu0 0.0
        %1202 = vmatpush1.msra.mxu0 0.0
        %1203 = vmatprep.subr.mxu0 0.0
        %1204 = vmatpush1.msra.mxu0 0.0
        %1205 = vmatprep.subr.mxu0 0.0
        %1206 = vmatpush1.msra.mxu0 0.0
        %1207 = vmatprep.mubr.f32.mxu0 0.0
        %1208 = vmatmul.mubr.f32.gmra.mrb[0].mxu0 %v1141
        %v1209 = vpop.f32.mrb[0].mxu0
        %v1210 = vadd.f32 0.0, %v1209
        %v1211 = vpop.f32.mrb[0].mxu0
        %1212 = vdwg.mxu0
        %v1214 = vsel %vm807, %v971, 0
        %1216 = vmatprep.subr.mxu0 0.0
        %1217 = vmatpush1.msra.mxu0 %v800
        %1218 = vmatprep.subr.mxu0 0.0
        %1219 = vmatpush1.msra.mxu0 0.0
        %1220 = vmatprep.subr.mxu0 0.0
        %1221 = vmatpush1.msra.mxu0 0.0
        %1222 = vmatprep.subr.mxu0 0.0
        %1223 = vmatpush1.msra.mxu0 0.0
        %1224 = vmatprep.subr.mxu0 0.0
        %1225 = vmatpush1.msra.mxu0 0.0
        %1226 = vmatprep.subr.mxu0 0.0
        %1227 = vmatpush1.msra.mxu0 0.0
        %1228 = vmatprep.subr.mxu0 0.0
        %1229 = vmatpush1.msra.mxu0 0.0
        %1230 = vmatprep.subr.mxu0 0.0
        %1231 = vmatpush1.msra.mxu0 0.0
        %1232 = vmatprep.subr.mxu0 0.0
        %1233 = vmatpush1.msra.mxu0 0.0
        %1234 = vmatprep.subr.mxu0 0.0
        %1235 = vmatpush1.msra.mxu0 0.0
        %1236 = vmatprep.subr.mxu0 0.0
        %1237 = vmatpush1.msra.mxu0 0.0
        %1238 = vmatprep.subr.mxu0 0.0
        %1239 = vmatpush1.msra.mxu0 0.0
        %1240 = vmatprep.subr.mxu0 0.0
        %1241 = vmatpush1.msra.mxu0 0.0
        %1242 = vmatprep.subr.mxu0 0.0
        %1243 = vmatpush1.msra.mxu0 0.0
        %1244 = vmatprep.subr.mxu0 0.0
        %1245 = vmatpush1.msra.mxu0 0.0
        %1246 = vmatprep.subr.mxu0 0.0
        %1247 = vmatpush1.msra.mxu0 0.0
        %1248 = vmatprep.subr.mxu0 0.0
        %1249 = vmatpush1.msra.mxu0 0.0
        %1250 = vmatprep.subr.mxu0 0.0
        %1251 = vmatpush1.msra.mxu0 0.0
        %1252 = vmatprep.subr.mxu0 0.0
        %1253 = vmatpush1.msra.mxu0 0.0
        %1254 = vmatprep.subr.mxu0 0.0
        %1255 = vmatpush1.msra.mxu0 0.0
        %1256 = vmatprep.subr.mxu0 0.0
        %1257 = vmatpush1.msra.mxu0 0.0
        %1258 = vmatprep.subr.mxu0 0.0
        %1259 = vmatpush1.msra.mxu0 0.0
        %1260 = vmatprep.subr.mxu0 0.0
        %1261 = vmatpush1.msra.mxu0 0.0
        %1262 = vmatprep.subr.mxu0 0.0
        %1263 = vmatpush1.msra.mxu0 0.0
        %1264 = vmatprep.subr.mxu0 0.0
        %1265 = vmatpush1.msra.mxu0 0.0
        %1266 = vmatprep.subr.mxu0 0.0
        %1267 = vmatpush1.msra.mxu0 0.0
        %1268 = vmatprep.subr.mxu0 0.0
        %1269 = vmatpush1.msra.mxu0 0.0
        %1270 = vmatprep.subr.mxu0 0.0
        %1271 = vmatpush1.msra.mxu0 0.0
        %1272 = vmatprep.subr.mxu0 0.0
        %1273 = vmatpush1.msra.mxu0 0.0
        %1274 = vmatprep.subr.mxu0 0.0
        %1275 = vmatpush1.msra.mxu0 0.0
        %1276 = vmatprep.subr.mxu0 0.0
        %1277 = vmatpush1.msra.mxu0 0.0
        %1278 = vmatprep.subr.mxu0 0.0
        %1279 = vmatpush1.msra.mxu0 0.0
        %1280 = vmatprep.mubr.f32.mxu0 0.0
        %1281 = vmatmul.mubr.f32.gmra.mrb[0].mxu0 %v1214
        %v1282 = vpop.f32.mrb[0].mxu0
        %v1283 = vadd.f32 %v1210, %v1282
        %v1284 = vpop.f32.mrb[0].mxu0
        %1285 = vdwg.mxu0
        %1286 = vrot.lane.b32.xlu0 %v799, 112
        %v1287 = vpop.permute.xlu0 %1286
        %1288 = vrot.lane.b32.xlu0 %v796, 80
        %v1289 = vpop.permute.xlu0 %1288
        %v1290 = vsel %vm807, %v1287, 0
        %v1292 = vsel %vm807, %v1289, 0
        %1294 = vmatprep.subr.mxu0 0.0
        %1295 = vmatpush1.xpose.msra.mxu0 %v1292
        %1296 = vmatprep.subr.mxu0 0.0
        %1297 = vmatpush1.xpose.msra.mxu0 0.0
        %1298 = vmatprep.subr.mxu0 0.0
        %1299 = vmatpush1.xpose.msra.mxu0 0.0
        %1300 = vmatprep.subr.mxu0 0.0
        %1301 = vmatpush1.xpose.msra.mxu0 0.0
        %1302 = vmatprep.subr.mxu0 0.0
        %1303 = vmatpush1.xpose.msra.mxu0 0.0
        %1304 = vmatprep.subr.mxu0 0.0
        %1305 = vmatpush1.xpose.msra.mxu0 0.0
        %1306 = vmatprep.subr.mxu0 0.0
        %1307 = vmatpush1.xpose.msra.mxu0 0.0
        %1308 = vmatprep.subr.mxu0 0.0
        %1309 = vmatpush1.xpose.msra.mxu0 0.0
        %1310 = vmatprep.subr.mxu0 0.0
        %1311 = vmatpush1.xpose.msra.mxu0 0.0
        %1312 = vmatprep.subr.mxu0 0.0
        %1313 = vmatpush1.xpose.msra.mxu0 0.0
        %1314 = vmatprep.subr.mxu0 0.0
        %1315 = vmatpush1.xpose.msra.mxu0 0.0
        %1316 = vmatprep.subr.mxu0 0.0
        %1317 = vmatpush1.xpose.msra.mxu0 0.0
        %1318 = vmatprep.subr.mxu0 0.0
        %1319 = vmatpush1.xpose.msra.mxu0 0.0
        %1320 = vmatprep.subr.mxu0 0.0
        %1321 = vmatpush1.xpose.msra.mxu0 0.0
        %1322 = vmatprep.subr.mxu0 0.0
        %1323 = vmatpush1.xpose.msra.mxu0 0.0
        %1324 = vmatprep.subr.mxu0 0.0
        %1325 = vmatpush1.xpose.msra.mxu0 0.0
        %1326 = vmatprep.subr.mxu0 0.0
        %1327 = vmatpush1.xpose.msra.mxu0 0.0
        %1328 = vmatprep.subr.mxu0 0.0
        %1329 = vmatpush1.xpose.msra.mxu0 0.0
        %1330 = vmatprep.subr.mxu0 0.0
        %1331 = vmatpush1.xpose.msra.mxu0 0.0
        %1332 = vmatprep.subr.mxu0 0.0
        %1333 = vmatpush1.xpose.msra.mxu0 0.0
        %1334 = vmatprep.subr.mxu0 0.0
        %1335 = vmatpush1.xpose.msra.mxu0 0.0
        %1336 = vmatprep.subr.mxu0 0.0
        %1337 = vmatpush1.xpose.msra.mxu0 0.0
        %1338 = vmatprep.subr.mxu0 0.0
        %1339 = vmatpush1.xpose.msra.mxu0 0.0
        %1340 = vmatprep.subr.mxu0 0.0
        %1341 = vmatpush1.xpose.msra.mxu0 0.0
        %1342 = vmatprep.subr.mxu0 0.0
        %1343 = vmatpush1.xpose.msra.mxu0 0.0
        %1344 = vmatprep.subr.mxu0 0.0
        %1345 = vmatpush1.xpose.msra.mxu0 0.0
        %1346 = vmatprep.subr.mxu0 0.0
        %1347 = vmatpush1.xpose.msra.mxu0 0.0
        %1348 = vmatprep.subr.mxu0 0.0
        %1349 = vmatpush1.xpose.msra.mxu0 0.0
        %1350 = vmatprep.subr.mxu0 0.0
        %1351 = vmatpush1.xpose.msra.mxu0 0.0
        %1352 = vmatprep.subr.mxu0 0.0
        %1353 = vmatpush1.xpose.msra.mxu0 0.0
        %1354 = vmatprep.subr.mxu0 0.0
        %1355 = vmatpush1.xpose.msra.mxu0 0.0
        %1356 = vmatprep.subr.mxu0 0.0
        %1357 = vmatpush1.xpose.msra.mxu0 0.0
        %1358 = vmatprep.mubr.f32.mxu0 0.0
        %1359 = vmatmul.mubr.f32.gmra.mrb[0].mxu0 %v1290
        %v1360 = vpop.f32.mrb[0].mxu0
        %v1361 = vadd.f32 0.0, %v1360
        %v1362 = vpop.f32.mrb[0].mxu0
        %1363 = vdwg.mxu0
        %v1364 = vsel %vm883, %v1361, -inf
        %1365 = vmax.xlane.f32.xlu0 %v1364
        %v1366 = vpop.xlane.xlu0 %1365
        %v1367 = vsub.f32 %v1361, %v1366
        %v1368 = vmul.f32 %v1367, 1.442695
        %v1369 = vpow.pop %v1368
        %v1370 = vsel %vm883, %v1369, 0.0
        %1371 = vadd.xlane.f32.xlu0 %v1370
        %v1372 = vpop.xlane.xlu0 %1371
        %v1373 = vrcp.pop %v1372
        %v1374 = vmul.f32 %v1369, %v1373
        %1375 = vrot.lane.b32.xlu0 %v796, 48
        %v1376 = vpop.permute.xlu0 %1375
        %v1378 = vsel %vm897, %v1374, 0
        %v1380 = vsel %vm901, %v1376, 0
        %1382 = vmatprep.subr.mxu0 0.0
        %1383 = vmatpush1.msra.mxu0 %v1380
        %1384 = vmatprep.subr.mxu0 0.0
        %1385 = vmatpush1.msra.mxu0 0.0
        %1386 = vmatprep.subr.mxu0 0.0
        %1387 = vmatpush1.msra.mxu0 0.0
        %1388 = vmatprep.subr.mxu0 0.0
        %1389 = vmatpush1.msra.mxu0 0.0
        %1390 = vmatprep.subr.mxu0 0.0
        %1391 = vmatpush1.msra.mxu0 0.0
        %1392 = vmatprep.subr.mxu0 0.0
        %1393 = vmatpush1.msra.mxu0 0.0
        %1394 = vmatprep.subr.mxu0 0.0
        %1395 = vmatpush1.msra.mxu0 0.0
        %1396 = vmatprep.subr.mxu0 0.0
        %1397 = vmatpush1.msra.mxu0 0.0
        %1398 = vmatprep.subr.mxu0 0.0
        %1399 = vmatpush1.msra.mxu0 0.0
        %1400 = vmatprep.subr.mxu0 0.0
        %1401 = vmatpush1.msra.mxu0 0.0
        %1402 = vmatprep.subr.mxu0 0.0
        %1403 = vmatpush1.msra.mxu0 0.0
        %1404 = vmatprep.subr.mxu0 0.0
        %1405 = vmatpush1.msra.mxu0 0.0
        %1406 = vmatprep.subr.mxu0 0.0
        %1407 = vmatpush1.msra.mxu0 0.0
        %1408 = vmatprep.subr.mxu0 0.0
        %1409 = vmatpush1.msra.mxu0 0.0
        %1410 = vmatprep.subr.mxu0 0.0
        %1411 = vmatpush1.msra.mxu0 0.0
        %1412 = vmatprep.subr.mxu0 0.0
        %1413 = vmatpush1.msra.mxu0 0.0
        %1414 = vmatprep.subr.mxu0 0.0
        %1415 = vmatpush1.msra.mxu0 0.0
        %1416 = vmatprep.subr.mxu0 0.0
        %1417 = vmatpush1.msra.mxu0 0.0
        %1418 = vmatprep.subr.mxu0 0.0
        %1419 = vmatpush1.msra.mxu0 0.0
        %1420 = vmatprep.subr.mxu0 0.0
        %1421 = vmatpush1.msra.mxu0 0.0
        %1422 = vmatprep.subr.mxu0 0.0
        %1423 = vmatpush1.msra.mxu0 0.0
        %1424 = vmatprep.subr.mxu0 0.0
        %1425 = vmatpush1.msra.mxu0 0.0
        %1426 = vmatprep.subr.mxu0 0.0
        %1427 = vmatpush1.msra.mxu0 0.0
        %1428 = vmatprep.subr.mxu0 0.0
        %1429 = vmatpush1.msra.mxu0 0.0
        %1430 = vmatprep.subr.mxu0 0.0
        %1431 = vmatpush1.msra.mxu0 0.0
        %1432 = vmatprep.subr.mxu0 0.0
        %1433 = vmatpush1.msra.mxu0 0.0
        %1434 = vmatprep.subr.mxu0 0.0
        %1435 = vmatpush1.msra.mxu0 0.0
        %1436 = vmatprep.subr.mxu0 0.0
        %1437 = vmatpush1.msra.mxu0 0.0
        %1438 = vmatprep.subr.mxu0 0.0
        %1439 = vmatpush1.msra.mxu0 0.0
        %1440 = vmatprep.subr.mxu0 0.0
        %1441 = vmatpush1.msra.mxu0 0.0
        %1442 = vmatprep.subr.mxu0 0.0
        %1443 = vmatpush1.msra.mxu0 0.0
        %1444 = vmatprep.subr.mxu0 0.0
        %1445 = vmatpush1.msra.mxu0 0.0
        %1446 = vmatprep.mubr.f32.mxu0 0.0
        %1447 = vmatmul.mubr.f32.gmra.mrb[0].mxu0 %v1378
        %v1448 = vpop.f32.mrb[0].mxu0
        %v1449 = vadd.f32 0.0, %v1448
        %v1450 = vpop.f32.mrb[0].mxu0
        %1451 = vdwg.mxu0
        %v1453 = vsel %vm807, %v1449, 0
        %1455 = vmatprep.subr.mxu0 0.0
        %1456 = vmatpush1.msra.mxu0 %v802
        %1457 = vmatprep.subr.mxu0 0.0
        %1458 = vmatpush1.msra.mxu0 0.0
        %1459 = vmatprep.subr.mxu0 0.0
        %1460 = vmatpush1.msra.mxu0 0.0
        %1461 = vmatprep.subr.mxu0 0.0
        %1462 = vmatpush1.msra.mxu0 0.0
        %1463 = vmatprep.subr.mxu0 0.0
        %1464 = vmatpush1.msra.mxu0 0.0
        %1465 = vmatprep.subr.mxu0 0.0
        %1466 = vmatpush1.msra.mxu0 0.0
        %1467 = vmatprep.subr.mxu0 0.0
        %1468 = vmatpush1.msra.mxu0 0.0
        %1469 = vmatprep.subr.mxu0 0.0
        %1470 = vmatpush1.msra.mxu0 0.0
        %1471 = vmatprep.subr.mxu0 0.0
        %1472 = vmatpush1.msra.mxu0 0.0
        %1473 = vmatprep.subr.mxu0 0.0
        %1474 = vmatpush1.msra.mxu0 0.0
        %1475 = vmatprep.subr.mxu0 0.0
        %1476 = vmatpush1.msra.mxu0 0.0
        %1477 = vmatprep.subr.mxu0 0.0
        %1478 = vmatpush1.msra.mxu0 0.0
        %1479 = vmatprep.subr.mxu0 0.0
        %1480 = vmatpush1.msra.mxu0 0.0
        %1481 = vmatprep.subr.mxu0 0.0
        %1482 = vmatpush1.msra.mxu0 0.0
        %1483 = vmatprep.subr.mxu0 0.0
        %1484 = vmatpush1.msra.mxu0 0.0
        %1485 = vmatprep.subr.mxu0 0.0
        %1486 = vmatpush1.msra.mxu0 0.0
        %1487 = vmatprep.subr.mxu0 0.0
        %1488 = vmatpush1.msra.mxu0 0.0
        %1489 = vmatprep.subr.mxu0 0.0
        %1490 = vmatpush1.msra.mxu0 0.0
        %1491 = vmatprep.subr.mxu0 0.0
        %1492 = vmatpush1.msra.mxu0 0.0
        %1493 = vmatprep.subr.mxu0 0.0
        %1494 = vmatpush1.msra.mxu0 0.0
        %1495 = vmatprep.subr.mxu0 0.0
        %1496 = vmatpush1.msra.mxu0 0.0
        %1497 = vmatprep.subr.mxu0 0.0
        %1498 = vmatpush1.msra.mxu0 0.0
        %1499 = vmatprep.subr.mxu0 0.0
        %1500 = vmatpush1.msra.mxu0 0.0
        %1501 = vmatprep.subr.mxu0 0.0
        %1502 = vmatpush1.msra.mxu0 0.0
        %1503 = vmatprep.subr.mxu0 0.0
        %1504 = vmatpush1.msra.mxu0 0.0
        %1505 = vmatprep.subr.mxu0 0.0
        %1506 = vmatpush1.msra.mxu0 0.0
        %1507 = vmatprep.subr.mxu0 0.0
        %1508 = vmatpush1.msra.mxu0 0.0
        %1509 = vmatprep.subr.mxu0 0.0
        %1510 = vmatpush1.msra.mxu0 0.0
        %1511 = vmatprep.subr.mxu0 0.0
        %1512 = vmatpush1.msra.mxu0 0.0
        %1513 = vmatprep.subr.mxu0 0.0
        %1514 = vmatpush1.msra.mxu0 0.0
        %1515 = vmatprep.subr.mxu0 0.0
        %1516 = vmatpush1.msra.mxu0 0.0
        %1517 = vmatprep.subr.mxu0 0.0
        %1518 = vmatpush1.msra.mxu0 0.0
        %1519 = vmatprep.mubr.f32.mxu0 0.0
        %1520 = vmatmul.mubr.f32.gmra.mrb[0].mxu0 %v1453
        %v1521 = vpop.f32.mrb[0].mxu0
        %v1522 = vadd.f32 0.0, %v1521
        %v1523 = vpop.f32.mrb[0].mxu0
        %1524 = vdwg.mxu0
        %v1525 = vadd.f32 %v1283, %v1522
        %1526 = vrot.lane.b32.xlu0 %v799, 104
        %v1527 = vpop.permute.xlu0 %1526
        %1528 = vrot.lane.b32.xlu0 %v796, 72
        %v1529 = vpop.permute.xlu0 %1528
        %v1530 = vsel %vm807, %v1527, 0
        %v1532 = vsel %vm807, %v1529, 0
        %1534 = vmatprep.subr.mxu0 0.0
        %1535 = vmatpush1.xpose.msra.mxu0 %v1532
        %1536 = vmatprep.subr.mxu0 0.0
        %1537 = vmatpush1.xpose.msra.mxu0 0.0
        %1538 = vmatprep.subr.mxu0 0.0
        %1539 = vmatpush1.xpose.msra.mxu0 0.0
        %1540 = vmatprep.subr.mxu0 0.0
        %1541 = vmatpush1.xpose.msra.mxu0 0.0
        %1542 = vmatprep.subr.mxu0 0.0
        %1543 = vmatpush1.xpose.msra.mxu0 0.0
        %1544 = vmatprep.subr.mxu0 0.0
        %1545 = vmatpush1.xpose.msra.mxu0 0.0
        %1546 = vmatprep.subr.mxu0 0.0
        %1547 = vmatpush1.xpose.msra.mxu0 0.0
        %1548 = vmatprep.subr.mxu0 0.0
        %1549 = vmatpush1.xpose.msra.mxu0 0.0
        %1550 = vmatprep.subr.mxu0 0.0
        %1551 = vmatpush1.xpose.msra.mxu0 0.0
        %1552 = vmatprep.subr.mxu0 0.0
        %1553 = vmatpush1.xpose.msra.mxu0 0.0
        %1554 = vmatprep.subr.mxu0 0.0
        %1555 = vmatpush1.xpose.msra.mxu0 0.0
        %1556 = vmatprep.subr.mxu0 0.0
        %1557 = vmatpush1.xpose.msra.mxu0 0.0
        %1558 = vmatprep.subr.mxu0 0.0
        %1559 = vmatpush1.xpose.msra.mxu0 0.0
        %1560 = vmatprep.subr.mxu0 0.0
        %1561 = vmatpush1.xpose.msra.mxu0 0.0
        %1562 = vmatprep.subr.mxu0 0.0
        %1563 = vmatpush1.xpose.msra.mxu0 0.0
        %1564 = vmatprep.subr.mxu0 0.0
        %1565 = vmatpush1.xpose.msra.mxu0 0.0
        %1566 = vmatprep.subr.mxu0 0.0
        %1567 = vmatpush1.xpose.msra.mxu0 0.0
        %1568 = vmatprep.subr.mxu0 0.0
        %1569 = vmatpush1.xpose.msra.mxu0 0.0
        %1570 = vmatprep.subr.mxu0 0.0
        %1571 = vmatpush1.xpose.msra.mxu0 0.0
        %1572 = vmatprep.subr.mxu0 0.0
        %1573 = vmatpush1.xpose.msra.mxu0 0.0
        %1574 = vmatprep.subr.mxu0 0.0
        %1575 = vmatpush1.xpose.msra.mxu0 0.0
        %1576 = vmatprep.subr.mxu0 0.0
        %1577 = vmatpush1.xpose.msra.mxu0 0.0
        %1578 = vmatprep.subr.mxu0 0.0
        %1579 = vmatpush1.xpose.msra.mxu0 0.0
        %1580 = vmatprep.subr.mxu0 0.0
        %1581 = vmatpush1.xpose.msra.mxu0 0.0
        %1582 = vmatprep.subr.mxu0 0.0
        %1583 = vmatpush1.xpose.msra.mxu0 0.0
        %1584 = vmatprep.subr.mxu0 0.0
        %1585 = vmatpush1.xpose.msra.mxu0 0.0
        %1586 = vmatprep.subr.mxu0 0.0
        %1587 = vmatpush1.xpose.msra.mxu0 0.0
        %1588 = vmatprep.subr.mxu0 0.0
        %1589 = vmatpush1.xpose.msra.mxu0 0.0
        %1590 = vmatprep.subr.mxu0 0.0
        %1591 = vmatpush1.xpose.msra.mxu0 0.0
        %1592 = vmatprep.subr.mxu0 0.0
        %1593 = vmatpush1.xpose.msra.mxu0 0.0
        %1594 = vmatprep.subr.mxu0 0.0
        %1595 = vmatpush1.xpose.msra.mxu0 0.0
        %1596 = vmatprep.subr.mxu0 0.0
        %1597 = vmatpush1.xpose.msra.mxu0 0.0
        %1598 = vmatprep.mubr.f32.mxu0 0.0
        %1599 = vmatmul.mubr.f32.gmra.mrb[0].mxu0 %v1530
        %v1600 = vpop.f32.mrb[0].mxu0
        %v1601 = vadd.f32 0.0, %v1600
        %v1602 = vpop.f32.mrb[0].mxu0
        %1603 = vdwg.mxu0
        %v1604 = vsel %vm883, %v1601, -inf
        %1605 = vmax.xlane.f32.xlu0 %v1604
        %v1606 = vpop.xlane.xlu0 %1605
        %v1607 = vsub.f32 %v1601, %v1606
        %v1608 = vmul.f32 %v1607, 1.442695
        %v1609 = vpow.pop %v1608
        %v1610 = vsel %vm883, %v1609, 0.0
        %1611 = vadd.xlane.f32.xlu0 %v1610
        %v1612 = vpop.xlane.xlu0 %1611
        %v1613 = vrcp.pop %v1612
        %v1614 = vmul.f32 %v1609, %v1613
        %1615 = vrot.lane.b32.xlu0 %v796, 40
        %v1616 = vpop.permute.xlu0 %1615
        %v1618 = vsel %vm897, %v1614, 0
        %v1620 = vsel %vm901, %v1616, 0
        %1622 = vmatprep.subr.mxu0 0.0
        %1623 = vmatpush1.msra.mxu0 %v1620
        %1624 = vmatprep.subr.mxu0 0.0
        %1625 = vmatpush1.msra.mxu0 0.0
        %1626 = vmatprep.subr.mxu0 0.0
        %1627 = vmatpush1.msra.mxu0 0.0
        %1628 = vmatprep.subr.mxu0 0.0
        %1629 = vmatpush1.msra.mxu0 0.0
        %1630 = vmatprep.subr.mxu0 0.0
        %1631 = vmatpush1.msra.mxu0 0.0
        %1632 = vmatprep.subr.mxu0 0.0
        %1633 = vmatpush1.msra.mxu0 0.0
        %1634 = vmatprep.subr.mxu0 0.0
        %1635 = vmatpush1.msra.mxu0 0.0
        %1636 = vmatprep.subr.mxu0 0.0
        %1637 = vmatpush1.msra.mxu0 0.0
        %1638 = vmatprep.subr.mxu0 0.0
        %1639 = vmatpush1.msra.mxu0 0.0
        %1640 = vmatprep.subr.mxu0 0.0
        %1641 = vmatpush1.msra.mxu0 0.0
        %1642 = vmatprep.subr.mxu0 0.0
        %1643 = vmatpush1.msra.mxu0 0.0
        %1644 = vmatprep.subr.mxu0 0.0
        %1645 = vmatpush1.msra.mxu0 0.0
        %1646 = vmatprep.subr.mxu0 0.0
        %1647 = vmatpush1.msra.mxu0 0.0
        %1648 = vmatprep.subr.mxu0 0.0
        %1649 = vmatpush1.msra.mxu0 0.0
        %1650 = vmatprep.subr.mxu0 0.0
        %1651 = vmatpush1.msra.mxu0 0.0
        %1652 = vmatprep.subr.mxu0 0.0
        %1653 = vmatpush1.msra.mxu0 0.0
        %1654 = vmatprep.subr.mxu0 0.0
        %1655 = vmatpush1.msra.mxu0 0.0
        %1656 = vmatprep.subr.mxu0 0.0
        %1657 = vmatpush1.msra.mxu0 0.0
        %1658 = vmatprep.subr.mxu0 0.0
        %1659 = vmatpush1.msra.mxu0 0.0
        %1660 = vmatprep.subr.mxu0 0.0
        %1661 = vmatpush1.msra.mxu0 0.0
        %1662 = vmatprep.subr.mxu0 0.0
        %1663 = vmatpush1.msra.mxu0 0.0
        %1664 = vmatprep.subr.mxu0 0.0
        %1665 = vmatpush1.msra.mxu0 0.0
        %1666 = vmatprep.subr.mxu0 0.0
        %1667 = vmatpush1.msra.mxu0 0.0
        %1668 = vmatprep.subr.mxu0 0.0
        %1669 = vmatpush1.msra.mxu0 0.0
        %1670 = vmatprep.subr.mxu0 0.0
        %1671 = vmatpush1.msra.mxu0 0.0
        %1672 = vmatprep.subr.mxu0 0.0
        %1673 = vmatpush1.msra.mxu0 0.0
        %1674 = vmatprep.subr.mxu0 0.0
        %1675 = vmatpush1.msra.mxu0 0.0
        %1676 = vmatprep.subr.mxu0 0.0
        %1677 = vmatpush1.msra.mxu0 0.0
        %1678 = vmatprep.subr.mxu0 0.0
        %1679 = vmatpush1.msra.mxu0 0.0
        %1680 = vmatprep.subr.mxu0 0.0
        %1681 = vmatpush1.msra.mxu0 0.0
        %1682 = vmatprep.subr.mxu0 0.0
        %1683 = vmatpush1.msra.mxu0 0.0
        %1684 = vmatprep.subr.mxu0 0.0
        %1685 = vmatpush1.msra.mxu0 0.0
        %1686 = vmatprep.mubr.f32.mxu0 0.0
        %1687 = vmatmul.mubr.f32.gmra.mrb[0].mxu0 %v1618
        %v1688 = vpop.f32.mrb[0].mxu0
        %v1689 = vadd.f32 0.0, %v1688
        %v1690 = vpop.f32.mrb[0].mxu0
        %1691 = vdwg.mxu0
        %v1693 = vsel %vm807, %v1689, 0
        %1695 = vmatprep.subr.mxu0 0.0
        %1696 = vmatpush1.msra.mxu0 %v803
        %1697 = vmatprep.subr.mxu0 0.0
        %1698 = vmatpush1.msra.mxu0 0.0
        %1699 = vmatprep.subr.mxu0 0.0
        %1700 = vmatpush1.msra.mxu0 0.0
        %1701 = vmatprep.subr.mxu0 0.0
        %1702 = vmatpush1.msra.mxu0 0.0
        %1703 = vmatprep.subr.mxu0 0.0
        %1704 = vmatpush1.msra.mxu0 0.0
        %1705 = vmatprep.subr.mxu0 0.0
        %1706 = vmatpush1.msra.mxu0 0.0
        %1707 = vmatprep.subr.mxu0 0.0
        %1708 = vmatpush1.msra.mxu0 0.0
        %1709 = vmatprep.subr.mxu0 0.0
        %1710 = vmatpush1.msra.mxu0 0.0
        %1711 = vmatprep.subr.mxu0 0.0
        %1712 = vmatpush1.msra.mxu0 0.0
        %1713 = vmatprep.subr.mxu0 0.0
        %1714 = vmatpush1.msra.mxu0 0.0
        %1715 = vmatprep.subr.mxu0 0.0
        %1716 = vmatpush1.msra.mxu0 0.0
        %1717 = vmatprep.subr.mxu0 0.0
        %1718 = vmatpush1.msra.mxu0 0.0
        %1719 = vmatprep.subr.mxu0 0.0
        %1720 = vmatpush1.msra.mxu0 0.0
        %1721 = vmatprep.subr.mxu0 0.0
        %1722 = vmatpush1.msra.mxu0 0.0
        %1723 = vmatprep.subr.mxu0 0.0
        %1724 = vmatpush1.msra.mxu0 0.0
        %1725 = vmatprep.subr.mxu0 0.0
        %1726 = vmatpush1.msra.mxu0 0.0
        %1727 = vmatprep.subr.mxu0 0.0
        %1728 = vmatpush1.msra.mxu0 0.0
        %1729 = vmatprep.subr.mxu0 0.0
        %1730 = vmatpush1.msra.mxu0 0.0
        %1731 = vmatprep.subr.mxu0 0.0
        %1732 = vmatpush1.msra.mxu0 0.0
        %1733 = vmatprep.subr.mxu0 0.0
        %1734 = vmatpush1.msra.mxu0 0.0
        %1735 = vmatprep.subr.mxu0 0.0
        %1736 = vmatpush1.msra.mxu0 0.0
        %1737 = vmatprep.subr.mxu0 0.0
        %1738 = vmatpush1.msra.mxu0 0.0
        %1739 = vmatprep.subr.mxu0 0.0
        %1740 = vmatpush1.msra.mxu0 0.0
        %1741 = vmatprep.subr.mxu0 0.0
        %1742 = vmatpush1.msra.mxu0 0.0
        %1743 = vmatprep.subr.mxu0 0.0
        %1744 = vmatpush1.msra.mxu0 0.0
        %1745 = vmatprep.subr.mxu0 0.0
        %1746 = vmatpush1.msra.mxu0 0.0
        %1747 = vmatprep.subr.mxu0 0.0
        %1748 = vmatpush1.msra.mxu0 0.0
        %1749 = vmatprep.subr.mxu0 0.0
        %1750 = vmatpush1.msra.mxu0 0.0
        %1751 = vmatprep.subr.mxu0 0.0
        %1752 = vmatpush1.msra.mxu0 0.0
        %1753 = vmatprep.subr.mxu0 0.0
        %1754 = vmatpush1.msra.mxu0 0.0
        %1755 = vmatprep.subr.mxu0 0.0
        %1756 = vmatpush1.msra.mxu0 0.0
        %1757 = vmatprep.subr.mxu0 0.0
        %1758 = vmatpush1.msra.mxu0 0.0
        %1759 = vmatprep.mubr.f32.mxu0 0.0
        %1760 = vmatmul.mubr.f32.gmra.mrb[0].mxu0 %v1693
        %v1761 = vpop.f32.mrb[0].mxu0
        %v1762 = vadd.f32 0.0, %v1761
        %v1763 = vpop.f32.mrb[0].mxu0
        %1764 = vdwg.mxu0
        %v1765 = vadd.f32 %v1525, %v1762
        %v1766 = vadd.f32 %v682, %v1765
        %v1767 = vld [vmem:[%s9] sm:$0x1]
        %v1769 = vlaneseq
        %v1770 = vshrl.u32 %v1769, 7
        %v1771 = vsub.s32 0, %v1770
        %v1772 = vrot.slane %v1767, %v1771
        %v1774 = vadd.f32 %v1766, %v1772
        %v1775 = vld [vmem:[%s10] sm:$0x1]
        %v1776 = vld [vmem:[%s11] sm:$0x1]
        %v1777 = vsel %vm685, %v1774, 0.0
        %1778 = vadd.xlane.f32.xlu0 %v1777
        %v1779 = vpop.xlane.xlu0 %1778
        %v1780 = vmul.f32 %v1779, %v689
        %v1781 = vsub.f32 %v1774, %v1780
        %v1782 = vmul.f32 %v1781, %v1781
        %v1783 = vsel %vm685, %v1782, 0.0
        %1784 = vadd.xlane.f32.xlu0 %v1783
        %v1785 = vpop.xlane.xlu0 %1784
        %v1786 = vmul.f32 %v1785, %v689
        %v1787 = vadd.f32 %v1786, 1e-06
        %v1788 = vrsqrt.pop %v1787
        %v1789 = vmul.f32 %v1781, %v1788
        %v1791 = vlaneseq
        %v1792 = vshrl.u32 %v1791, 7
        %v1793 = vsub.s32 0, %v1792
        %v1794 = vrot.slane %v1775, %v1793
        %v1796 = vmul.f32 %v1789, %v1794
        %v1798 = vlaneseq
        %v1799 = vshrl.u32 %v1798, 7
        %v1800 = vsub.s32 0, %v1799
        %v1801 = vrot.slane %v1776, %v1800
        %v1803 = vadd.f32 %v1796, %v1801
        %v1804 = vld [vmem:[%s12] sm:$0xff]
        %v1805 = vld [vmem:[%s12 + $0x8] sm:$0xff]
        %v1806 = vld [vmem:[%s12 + $0x10] sm:$0xff]
        %v1807 = vld [vmem:[%s12 + $0x18] sm:$0xff]
        %v1808 = vld [vmem:[%s13] sm:$0x1]
        %v1810 = vlaneseq
        %v1811 = vshrl.u32 %v1810, 7
        %v1812 = vsub.s32 0, %v1811
        %v1813 = vrot.slane %v1808, %v1812
        %v1816 = vsel %vm725, %v1803, 0
        %1818 = vmatprep.subr.mxu0 0.0
        %1819 = vmatpush1.msra.mxu0 %v1804
        %1820 = vmatprep.subr.mxu0 0.0
        %1821 = vmatpush1.msra.mxu0 %v1805
        %1822 = vmatprep.subr.mxu0 0.0
        %1823 = vmatpush1.msra.mxu0 %v1806
        %1824 = vmatprep.subr.mxu0 0.0
        %1825 = vmatpush1.msra.mxu0 %v1807
        %1826 = vmatprep.subr.mxu0 0.0
        %1827 = vmatpush1.msra.mxu0 0.0
        %1828 = vmatprep.subr.mxu0 0.0
        %1829 = vmatpush1.msra.mxu0 0.0
        %1830 = vmatprep.subr.mxu0 0.0
        %1831 = vmatpush1.msra.mxu0 0.0
        %1832 = vmatprep.subr.mxu0 0.0
        %1833 = vmatpush1.msra.mxu0 0.0
        %1834 = vmatprep.subr.mxu0 0.0
        %1835 = vmatpush1.msra.mxu0 0.0
        %1836 = vmatprep.subr.mxu0 0.0
        %1837 = vmatpush1.msra.mxu0 0.0
        %1838 = vmatprep.subr.mxu0 0.0
        %1839 = vmatpush1.msra.mxu0 0.0
        %1840 = vmatprep.subr.mxu0 0.0
        %1841 = vmatpush1.msra.mxu0 0.0
        %1842 = vmatprep.subr.mxu0 0.0
        %1843 = vmatpush1.msra.mxu0 0.0
        %1844 = vmatprep.subr.mxu0 0.0
        %1845 = vmatpush1.msra.mxu0 0.0
        %1846 = vmatprep.subr.mxu0 0.0
        %1847 = vmatpush1.msra.mxu0 0.0
        %1848 = vmatprep.subr.mxu0 0.0
        %1849 = vmatpush1.msra.mxu0 0.0
        %1850 = vmatprep.subr.mxu0 0.0
        %1851 = vmatpush1.msra.mxu0 0.0
        %1852 = vmatprep.subr.mxu0 0.0
        %1853 = vmatpush1.msra.mxu0 0.0
        %1854 = vmatprep.subr.mxu0 0.0
        %1855 = vmatpush1.msra.mxu0 0.0
        %1856 = vmatprep.subr.mxu0 0.0
        %1857 = vmatpush1.msra.mxu0 0.0
        %1858 = vmatprep.subr.mxu0 0.0
        %1859 = vmatpush1.msra.mxu0 0.0
        %1860 = vmatprep.subr.mxu0 0.0
        %1861 = vmatpush1.msra.mxu0 0.0
        %1862 = vmatprep.subr.mxu0 0.0
        %1863 = vmatpush1.msra.mxu0 0.0
        %1864 = vmatprep.subr.mxu0 0.0
        %1865 = vmatpush1.msra.mxu0 0.0
        %1866 = vmatprep.subr.mxu0 0.0
        %1867 = vmatpush1.msra.mxu0 0.0
        %1868 = vmatprep.subr.mxu0 0.0
        %1869 = vmatpush1.msra.mxu0 0.0
        %1870 = vmatprep.subr.mxu0 0.0
        %1871 = vmatpush1.msra.mxu0 0.0
        %1872 = vmatprep.subr.mxu0 0.0
        %1873 = vmatpush1.msra.mxu0 0.0
        %1874 = vmatprep.subr.mxu0 0.0
        %1875 = vmatpush1.msra.mxu0 0.0
        %1876 = vmatprep.subr.mxu0 0.0
        %1877 = vmatpush1.msra.mxu0 0.0
        %1878 = vmatprep.subr.mxu0 0.0
        %1879 = vmatpush1.msra.mxu0 0.0
        %1880 = vmatprep.subr.mxu0 0.0
        %1881 = vmatpush1.msra.mxu0 0.0
        %1882 = vmatprep.mubr.f32.mxu0 0.0
        %1883 = vmatmul.mubr.f32.gmra.mrb[0].mxu0 %v1816
        %v1884 = vpop.f32.mrb[0].mxu0
        %v1885 = vadd.f32 %v1813, %v1884
        %v1886 = vpop.f32.mrb[0].mxu0
        %1887 = vdwg.mxu0
        %v1888 = vmul.f32 %v1885, 0.5
        %v1889 = vmul.f32 %v1885, 0.044715
        %v1890 = vmul.f32 %v1889, %v1885
        %v1891 = vmul.f32 %v1890, %v1885
        %v1892 = vadd.f32 %v1885, %v1891
        %v1893 = vmul.f32 %v1892, 0.7978846
        %v1894 = vtanh.pop %v1893
        %v1895 = vadd.f32 %v1894, 1.0
        %v1896 = vmul.f32 %v1888, %v1895
        %v1897 = vld [vmem:[%s14] sm:$0xff]
        %v1898 = vld [vmem:[%s14 + $0x8] sm:$0xff]
        %v1899 = vld [vmem:[%s14 + $0x10] sm:$0xff]
        %v1900 = vld [vmem:[%s14 + $0x18] sm:$0xff]
        %v1901 = vld [vmem:[%s14 + $0x20] sm:$0xff]
        %v1902 = vld [vmem:[%s14 + $0x28] sm:$0xff]
        %v1903 = vld [vmem:[%s14 + $0x30] sm:$0xff]
        %v1904 = vld [vmem:[%s14 + $0x38] sm:$0xff]
        %v1906 = vsel %vm608, %v1896, 0
        %1908 = vmatprep.subr.mxu0 0.0
        %1909 = vmatpush1.msra.mxu0 %v1897
        %1910 = vmatprep.subr.mxu0 0.0
        %1911 = vmatpush1.msra.mxu0 %v1898
        %1912 = vmatprep.subr.mxu0 0.0
        %1913 = vmatpush1.msra.mxu0 %v1899
        %1914 = vmatprep.subr.mxu0 0.0
        %1915 = vmatpush1.msra.mxu0 %v1900
        %1916 = vmatprep.subr.mxu0 0.0
        %1917 = vmatpush1.msra.mxu0 %v1901
        %1918 = vmatprep.subr.mxu0 0.0
        %1919 = vmatpush1.msra.mxu0 %v1902
        %1920 = vmatprep.subr.mxu0 0.0
        %1921 = vmatpush1.msra.mxu0 %v1903
        %1922 = vmatprep.subr.mxu0 0.0
        %1923 = vmatpush1.msra.mxu0 %v1904
        %1924 = vmatprep.subr.mxu0 0.0
        %1925 = vmatpush1.msra.mxu0 0.0
        %1926 = vmatprep.subr.mxu0 0.0
        %1927 = vmatpush1.msra.mxu0 0.0
        %1928 = vmatprep.subr.mxu0 0.0
        %1929 = vmatpush1.msra.mxu0 0.0
        %1930 = vmatprep.subr.mxu0 0.0
        %1931 = vmatpush1.msra.mxu0 0.0
        %1932 = vmatprep.subr.mxu0 0.0
        %1933 = vmatpush1.msra.mxu0 0.0
        %1934 = vmatprep.subr.mxu0 0.0
        %1935 = vmatpush1.msra.mxu0 0.0
        %1936 = vmatprep.subr.mxu0 0.0
        %1937 = vmatpush1.msra.mxu0 0.0
        %1938 = vmatprep.subr.mxu0 0.0
        %1939 = vmatpush1.msra.mxu0 0.0
        %1940 = vmatprep.subr.mxu0 0.0
        %1941 = vmatpush1.msra.mxu0 0.0
        %1942 = vmatprep.subr.mxu0 0.0
        %1943 = vmatpush1.msra.mxu0 0.0
        %1944 = vmatprep.subr.mxu0 0.0
        %1945 = vmatpush1.msra.mxu0 0.0
        %1946 = vmatprep.subr.mxu0 0.0
        %1947 = vmatpush1.msra.mxu0 0.0
        %1948 = vmatprep.subr.mxu0 0.0
        %1949 = vmatpush1.msra.mxu0 0.0
        %1950 = vmatprep.subr.mxu0 0.0
        %1951 = vmatpush1.msra.mxu0 0.0
        %1952 = vmatprep.subr.mxu0 0.0
        %1953 = vmatpush1.msra.mxu0 0.0
        %1954 = vmatprep.subr.mxu0 0.0
        %1955 = vmatpush1.msra.mxu0 0.0
        %1956 = vmatprep.subr.mxu0 0.0
        %1957 = vmatpush1.msra.mxu0 0.0
        %1958 = vmatprep.subr.mxu0 0.0
        %1959 = vmatpush1.msra.mxu0 0.0
        %1960 = vmatprep.subr.mxu0 0.0
        %1961 = vmatpush1.msra.mxu0 0.0
        %1962 = vmatprep.subr.mxu0 0.0
        %1963 = vmatpush1.msra.mxu0 0.0
        %1964 = vmatprep.subr.mxu0 0.0
        %1965 = vmatpush1.msra.mxu0 0.0
        %1966 = vmatprep.subr.mxu0 0.0
        %1967 = vmatpush1.msra.mxu0 0.0
        %1968 = vmatprep.subr.mxu0 0.0
        %1969 = vmatpush1.msra.mxu0 0.0
        %1970 = vmatprep.subr.mxu0 0.0
        %1971 = vmatpush1.msra.mxu0 0.0
        %1972 = vmatprep.mubr.f32.mxu0 0.0
        %1973 = vmatmul.mubr.f32.gmra.mrb[0].mxu0 %v1906
        %v1974 = vpop.f32.mrb[0].mxu0
        %v1975 = vadd.f32 0.0, %v1974
        %v1976 = vpop.f32.mrb[0].mxu0
        %1977 = vdwg.mxu0
        %v1978 = vadd.f32 %v1774, %v1975
        %v1979 = vld [vmem:[%s15] sm:$0x1]
        %v1981 = vlaneseq
        %v1982 = vshrl.u32 %v1981, 7
        %v1983 = vsub.s32 0, %v1982
        %v1984 = vrot.slane %v1979, %v1983
        %v1986 = vadd.f32 %v1978, %v1984
        %s1987 = scalar_lea.vmem %s4, 1
        %v1988 = vld [vmem:[%s1987] sm:$0x1]
        %s1989 = scalar_lea.vmem %s5, 1
        %v1990 = vld [vmem:[%s1989] sm:$0x1]
        %v1991 = vsel %vm685, %v1986, 0.0
        %1992 = vadd.xlane.f32.xlu0 %v1991
        %v1993 = vpop.xlane.xlu0 %1992
        %v1994 = vmul.f32 %v1993, %v689
        %v1995 = vsub.f32 %v1986, %v1994
        %v1996 = vmul.f32 %v1995, %v1995
        %v1997 = vsel %vm685, %v1996, 0.0
        %1998 = vadd.xlane.f32.xlu0 %v1997
        %v1999 = vpop.xlane.xlu0 %1998
        %v2000 = vmul.f32 %v1999, %v689
        %v2001 = vadd.f32 %v2000, 1e-06
        %v2002 = vrsqrt.pop %v2001
        %v2003 = vmul.f32 %v1995, %v2002
        %v2005 = vlaneseq
        %v2006 = vshrl.u32 %v2005, 7
        %v2007 = vsub.s32 0, %v2006
        %v2008 = vrot.slane %v1988, %v2007
        %v2010 = vmul.f32 %v2003, %v2008
        %v2012 = vlaneseq
        %v2013 = vshrl.u32 %v2012, 7
        %v2014 = vsub.s32 0, %v2013
        %v2015 = vrot.slane %v1990, %v2014
        %v2017 = vadd.f32 %v2010, %v2015
        %s2018 = scalar_lea.vmem %s6, 32
        %v2019 = vld [vmem:[%s2018] sm:$0xff]
        %v2020 = vld [vmem:[%s2018 + $0x8] sm:$0xff]
        %v2021 = vld [vmem:[%s2018 + $0x10] sm:$0xff]
        %v2022 = vld [vmem:[%s2018 + $0x18] sm:$0xff]
        %s2023 = scalar_lea.vmem %s7, 1
        %v2024 = vld [vmem:[%s2023] sm:$0x1]
        %v2026 = vlaneseq
        %v2027 = vshrl.u32 %v2026, 7
        %v2028 = vsub.s32 0, %v2027
        %v2029 = vrot.slane %v2024, %v2028
        %v2032 = vsel %vm725, %v2017, 0
        %2034 = vmatprep.subr.mxu0 0.0
        %2035 = vmatpush1.msra.mxu0 %v2019
        %2036 = vmatprep.subr.mxu0 0.0
        %2037 = vmatpush1.msra.mxu0 %v2020
        %2038 = vmatprep.subr.mxu0 0.0
        %2039 = vmatpush1.msra.mxu0 %v2021
        %2040 = vmatprep.subr.mxu0 0.0
        %2041 = vmatpush1.msra.mxu0 %v2022
        %2042 = vmatprep.subr.mxu0 0.0
        %2043 = vmatpush1.msra.mxu0 0.0
        %2044 = vmatprep.subr.mxu0 0.0
        %2045 = vmatpush1.msra.mxu0 0.0
        %2046 = vmatprep.subr.mxu0 0.0
        %2047 = vmatpush1.msra.mxu0 0.0
        %2048 = vmatprep.subr.mxu0 0.0
        %2049 = vmatpush1.msra.mxu0 0.0
        %2050 = vmatprep.subr.mxu0 0.0
        %2051 = vmatpush1.msra.mxu0 0.0
        %2052 = vmatprep.subr.mxu0 0.0
        %2053 = vmatpush1.msra.mxu0 0.0
        %2054 = vmatprep.subr.mxu0 0.0
        %2055 = vmatpush1.msra.mxu0 0.0
        %2056 = vmatprep.subr.mxu0 0.0
        %2057 = vmatpush1.msra.mxu0 0.0
        %2058 = vmatprep.subr.mxu0 0.0
        %2059 = vmatpush1.msra.mxu0 0.0
        %2060 = vmatprep.subr.mxu0 0.0
        %2061 = vmatpush1.msra.mxu0 0.0
        %2062 = vmatprep.subr.mxu0 0.0
        %2063 = vmatpush1.msra.mxu0 0.0
        %2064 = vmatprep.subr.mxu0 0.0
        %2065 = vmatpush1.msra.mxu0 0.0
        %2066 = vmatprep.subr.mxu0 0.0
        %2067 = vmatpush1.msra.mxu0 0.0
        %2068 = vmatprep.subr.mxu0 0.0
        %2069 = vmatpush1.msra.mxu0 0.0
        %2070 = vmatprep.subr.mxu0 0.0
        %2071 = vmatpush1.msra.mxu0 0.0
        %2072 = vmatprep.subr.mxu0 0.0
        %2073 = vmatpush1.msra.mxu0 0.0
        %2074 = vmatprep.subr.mxu0 0.0
        %2075 = vmatpush1.msra.mxu0 0.0
        %2076 = vmatprep.subr.mxu0 0.0
        %2077 = vmatpush1.msra.mxu0 0.0
        %2078 = vmatprep.subr.mxu0 0.0
        %2079 = vmatpush1.msra.mxu0 0.0
        %2080 = vmatprep.subr.mxu0 0.0
        %2081 = vmatpush1.msra.mxu0 0.0
        %2082 = vmatprep.subr.mxu0 0.0
        %2083 = vmatpush1.msra.mxu0 0.0
        %2084 = vmatprep.subr.mxu0 0.0
        %2085 = vmatpush1.msra.mxu0 0.0
        %2086 = vmatprep.subr.mxu0 0.0
        %2087 = vmatpush1.msra.mxu0 0.0
        %2088 = vmatprep.subr.mxu0 0.0
        %2089 = vmatpush1.msra.mxu0 0.0
        %2090 = vmatprep.subr.mxu0 0.0
        %2091 = vmatpush1.msra.mxu0 0.0
        %2092 = vmatprep.subr.mxu0 0.0
        %2093 = vmatpush1.msra.mxu0 0.0
        %2094 = vmatprep.subr.mxu0 0.0
        %2095 = vmatpush1.msra.mxu0 0.0
        %2096 = vmatprep.subr.mxu0 0.0
        %2097 = vmatpush1.msra.mxu0 0.0
        %2098 = vmatprep.mubr.f32.mxu0 0.0
        %2099 = vmatmul.mubr.f32.gmra.mrb[0].mxu0 %v2032
        %v2100 = vpop.f32.mrb[0].mxu0
        %v2101 = vadd.f32 %v2029, %v2100
        %v2102 = vpop.f32.mrb[0].mxu0
        %2103 = vdwg.mxu0
        %v2104 = vmul.f32 %v2101, 0.35355338
        %s2105 = scalar_lea.vmem %s8, 32
        %v2106 = vld [vmem:[%s2105] sm:$0xff]
        %v2107 = vld [vmem:[%s2105 + $0x8] sm:$0xff]
        %v2108 = vld [vmem:[%s2105 + $0x10] sm:$0xff]
        %v2109 = vld [vmem:[%s2105 + $0x18] sm:$0xff]
        %2111 = vrot.lane.b32.xlu0 %v2101, 96
        %v2112 = vpop.permute.xlu0 %2111
        %v2114 = vsel %vm807, %v2104, 0
        %v2116 = vsel %vm807, %v2112, 0
        %2118 = vmatprep.subr.mxu0 0.0
        %2119 = vmatpush1.xpose.msra.mxu0 %v2116
        %2120 = vmatprep.subr.mxu0 0.0
        %2121 = vmatpush1.xpose.msra.mxu0 0.0
        %2122 = vmatprep.subr.mxu0 0.0
        %2123 = vmatpush1.xpose.msra.mxu0 0.0
        %2124 = vmatprep.subr.mxu0 0.0
        %2125 = vmatpush1.xpose.msra.mxu0 0.0
        %2126 = vmatprep.subr.mxu0 0.0
        %2127 = vmatpush1.xpose.msra.mxu0 0.0
        %2128 = vmatprep.subr.mxu0 0.0
        %2129 = vmatpush1.xpose.msra.mxu0 0.0
        %2130 = vmatprep.subr.mxu0 0.0
        %2131 = vmatpush1.xpose.msra.mxu0 0.0
        %2132 = vmatprep.subr.mxu0 0.0
        %2133 = vmatpush1.xpose.msra.mxu0 0.0
        %2134 = vmatprep.subr.mxu0 0.0
        %2135 = vmatpush1.xpose.msra.mxu0 0.0
        %2136 = vmatprep.subr.mxu0 0.0
        %2137 = vmatpush1.xpose.msra.mxu0 0.0
        %2138 = vmatprep.subr.mxu0 0.0
        %2139 = vmatpush1.xpose.msra.mxu0 0.0
        %2140 = vmatprep.subr.mxu0 0.0
        %2141 = vmatpush1.xpose.msra.mxu0 0.0
        %2142 = vmatprep.subr.mxu0 0.0
        %2143 = vmatpush1.xpose.msra.mxu0 0.0
        %2144 = vmatprep.subr.mxu0 0.0
        %2145 = vmatpush1.xpose.msra.mxu0 0.0
        %2146 = vmatprep.subr.mxu0 0.0
        %2147 = vmatpush1.xpose.msra.mxu0 0.0
        %2148 = vmatprep.subr.mxu0 0.0
        %2149 = vmatpush1.xpose.msra.mxu0 0.0
        %2150 = vmatprep.subr.mxu0 0.0
        %2151 = vmatpush1.xpose.msra.mxu0 0.0
        %2152 = vmatprep.subr.mxu0 0.0
        %2153 = vmatpush1.xpose.msra.mxu0 0.0
        %2154 = vmatprep.subr.mxu0 0.0
        %2155 = vmatpush1.xpose.msra.mxu0 0.0
        %2156 = vmatprep.subr.mxu0 0.0
        %2157 = vmatpush1.xpose.msra.mxu0 0.0
        %2158 = vmatprep.subr.mxu0 0.0
        %2159 = vmatpush1.xpose.msra.mxu0 0.0
        %2160 = vmatprep.subr.mxu0 0.0
        %2161 = vmatpush1.xpose.msra.mxu0 0.0
        %2162 = vmatprep.subr.mxu0 0.0
        %2163 = vmatpush1.xpose.msra.mxu0 0.0
        %2164 = vmatprep.subr.mxu0 0.0
        %2165 = vmatpush1.xpose.msra.mxu0 0.0
        %2166 = vmatprep.subr.mxu0 0.0
        %2167 = vmatpush1.xpose.msra.mxu0 0.0
        %2168 = vmatprep.subr.mxu0 0.0
        %2169 = vmatpush1.xpose.msra.mxu0 0.0
        %2170 = vmatprep.subr.mxu0 0.0
        %2171 = vmatpush1.xpose.msra.mxu0 0.0
        %2172 = vmatprep.subr.mxu0 0.0
        %2173 = vmatpush1.xpose.msra.mxu0 0.0
        %2174 = vmatprep.subr.mxu0 0.0
        %2175 = vmatpush1.xpose.msra.mxu0 0.0
        %2176 = vmatprep.subr.mxu0 0.0
        %2177 = vmatpush1.xpose.msra.mxu0 0.0
        %2178 = vmatprep.subr.mxu0 0.0
        %2179 = vmatpush1.xpose.msra.mxu0 0.0
        %2180 = vmatprep.subr.mxu0 0.0
        %2181 = vmatpush1.xpose.msra.mxu0 0.0
        %2182 = vmatprep.mubr.f32.mxu0 0.0
        %2183 = vmatmul.mubr.f32.gmra.mrb[0].mxu0 %v2114
        %v2184 = vpop.f32.mrb[0].mxu0
        %v2185 = vadd.f32 0.0, %v2184
        %v2186 = vpop.f32.mrb[0].mxu0
        %2187 = vdwg.mxu0
        %v2188 = vsel %vm883, %v2185, -inf
        %2189 = vmax.xlane.f32.xlu0 %v2188
        %v2190 = vpop.xlane.xlu0 %2189
        %v2191 = vsub.f32 %v2185, %v2190
        %v2192 = vmul.f32 %v2191, 1.442695
        %v2193 = vpow.pop %v2192
        %v2194 = vsel %vm883, %v2193, 0.0
        %2195 = vadd.xlane.f32.xlu0 %v2194
        %v2196 = vpop.xlane.xlu0 %2195
        %v2197 = vrcp.pop %v2196
        %v2198 = vmul.f32 %v2193, %v2197
        %2199 = vrot.lane.b32.xlu0 %v2101, 64
        %v2200 = vpop.permute.xlu0 %2199
        %v2202 = vsel %vm897, %v2198, 0
        %v2204 = vsel %vm901, %v2200, 0
        %2206 = vmatprep.subr.mxu0 0.0
        %2207 = vmatpush1.msra.mxu0 %v2204
        %2208 = vmatprep.subr.mxu0 0.0
        %2209 = vmatpush1.msra.mxu0 0.0
        %2210 = vmatprep.subr.mxu0 0.0
        %2211 = vmatpush1.msra.mxu0 0.0
        %2212 = vmatprep.subr.mxu0 0.0
        %2213 = vmatpush1.msra.mxu0 0.0
        %2214 = vmatprep.subr.mxu0 0.0
        %2215 = vmatpush1.msra.mxu0 0.0
        %2216 = vmatprep.subr.mxu0 0.0
        %2217 = vmatpush1.msra.mxu0 0.0
        %2218 = vmatprep.subr.mxu0 0.0
        %2219 = vmatpush1.msra.mxu0 0.0
        %2220 = vmatprep.subr.mxu0 0.0
        %2221 = vmatpush1.msra.mxu0 0.0
        %2222 = vmatprep.subr.mxu0 0.0
        %2223 = vmatpush1.msra.mxu0 0.0
        %2224 = vmatprep.subr.mxu0 0.0
        %2225 = vmatpush1.msra.mxu0 0.0
        %2226 = vmatprep.subr.mxu0 0.0
        %2227 = vmatpush1.msra.mxu0 0.0
        %2228 = vmatprep.subr.mxu0 0.0
        %2229 = vmatpush1.msra.mxu0 0.0
        %2230 = vmatprep.subr.mxu0 0.0
        %2231 = vmatpush1.msra.mxu0 0.0
        %2232 = vmatprep.subr.mxu0 0.0
        %2233 = vmatpush1.msra.mxu0 0.0
        %2234 = vmatprep.subr.mxu0 0.0
        %2235 = vmatpush1.msra.mxu0 0.0
        %2236 = vmatprep.subr.mxu0 0.0
        %2237 = vmatpush1.msra.mxu0 0.0
        %2238 = vmatprep.subr.mxu0 0.0
        %2239 = vmatpush1.msra.mxu0 0.0
        %2240 = vmatprep.subr.mxu0 0.0
        %2241 = vmatpush1.msra.mxu0 0.0
        %2242 = vmatprep.subr.mxu0 0.0
        %2243 = vmatpush1.msra.mxu0 0.0
        %2244 = vmatprep.subr.mxu0 0.0
        %2245 = vmatpush1.msra.mxu0 0.0
        %2246 = vmatprep.subr.mxu0 0.0
        %2247 = vmatpush1.msra.mxu0 0.0
        %2248 = vmatprep.subr.mxu0 0.0
        %2249 = vmatpush1.msra.mxu0 0.0
        %2250 = vmatprep.subr.mxu0 0.0
        %2251 = vmatpush1.msra.mxu0 0.0
        %2252 = vmatprep.subr.mxu0 0.0
        %2253 = vmatpush1.msra.mxu0 0.0
        %2254 = vmatprep.subr.mxu0 0.0
        %2255 = vmatpush1.msra.mxu0 0.0
        %2256 = vmatprep.subr.mxu0 0.0
        %2257 = vmatpush1.msra.mxu0 0.0
        %2258 = vmatprep.subr.mxu0 0.0
        %2259 = vmatpush1.msra.mxu0 0.0
        %2260 = vmatprep.subr.mxu0 0.0
        %2261 = vmatpush1.msra.mxu0 0.0
        %2262 = vmatprep.subr.mxu0 0.0
        %2263 = vmatpush1.msra.mxu0 0.0
        %2264 = vmatprep.subr.mxu0 0.0
        %2265 = vmatpush1.msra.mxu0 0.0
        %2266 = vmatprep.subr.mxu0 0.0
        %2267 = vmatpush1.msra.mxu0 0.0
        %2268 = vmatprep.subr.mxu0 0.0
        %2269 = vmatpush1.msra.mxu0 0.0
        %2270 = vmatprep.mubr.f32.mxu0 0.0
        %2271 = vmatmul.mubr.f32.gmra.mrb[0].mxu0 %v2202
        %v2272 = vpop.f32.mrb[0].mxu0
        %v2273 = vadd.f32 0.0, %v2272
        %v2274 = vpop.f32.mrb[0].mxu0
        %2275 = vdwg.mxu0
        %2276 = vrot.lane.b32.xlu0 %v2104, 120
        %v2277 = vpop.permute.xlu0 %2276
        %2278 = vrot.lane.b32.xlu0 %v2101, 88
        %v2279 = vpop.permute.xlu0 %2278
        %v2280 = vsel %vm807, %v2277, 0
        %v2282 = vsel %vm807, %v2279, 0
        %2284 = vmatprep.subr.mxu0 0.0
        %2285 = vmatpush1.xpose.msra.mxu0 %v2282
        %2286 = vmatprep.subr.mxu0 0.0
        %2287 = vmatpush1.xpose.msra.mxu0 0.0
        %2288 = vmatprep.subr.mxu0 0.0
        %2289 = vmatpush1.xpose.msra.mxu0 0.0
        %2290 = vmatprep.subr.mxu0 0.0
        %2291 = vmatpush1.xpose.msra.mxu0 0.0
        %2292 = vmatprep.subr.mxu0 0.0
        %2293 = vmatpush1.xpose.msra.mxu0 0.0
        %2294 = vmatprep.subr.mxu0 0.0
        %2295 = vmatpush1.xpose.msra.mxu0 0.0
        %2296 = vmatprep.subr.mxu0 0.0
        %2297 = vmatpush1.xpose.msra.mxu0 0.0
        %2298 = vmatprep.subr.mxu0 0.0
        %2299 = vmatpush1.xpose.msra.mxu0 0.0
        %2300 = vmatprep.subr.mxu0 0.0
        %2301 = vmatpush1.xpose.msra.mxu0 0.0
        %2302 = vmatprep.subr.mxu0 0.0
        %2303 = vmatpush1.xpose.msra.mxu0 0.0
        %2304 = vmatprep.subr.mxu0 0.0
        %2305 = vmatpush1.xpose.msra.mxu0 0.0
        %2306 = vmatprep.subr.mxu0 0.0
        %2307 = vmatpush1.xpose.msra.mxu0 0.0
        %2308 = vmatprep.subr.mxu0 0.0
        %2309 = vmatpush1.xpose.msra.mxu0 0.0
        %2310 = vmatprep.subr.mxu0 0.0
        %2311 = vmatpush1.xpose.msra.mxu0 0.0
        %2312 = vmatprep.subr.mxu0 0.0
        %2313 = vmatpush1.xpose.msra.mxu0 0.0
        %2314 = vmatprep.subr.mxu0 0.0
        %2315 = vmatpush1.xpose.msra.mxu0 0.0
        %2316 = vmatprep.subr.mxu0 0.0
        %2317 = vmatpush1.xpose.msra.mxu0 0.0
        %2318 = vmatprep.subr.mxu0 0.0
        %2319 = vmatpush1.xpose.msra.mxu0 0.0
        %2320 = vmatprep.subr.mxu0 0.0
        %2321 = vmatpush1.xpose.msra.mxu0 0.0
        %2322 = vmatprep.subr.mxu0 0.0
        %2323 = vmatpush1.xpose.msra.mxu0 0.0
        %2324 = vmatprep.subr.mxu0 0.0
        %2325 = vmatpush1.xpose.msra.mxu0 0.0
        %2326 = vmatprep.subr.mxu0 0.0
        %2327 = vmatpush1.xpose.msra.mxu0 0.0
        %2328 = vmatprep.subr.mxu0 0.0
        %2329 = vmatpush1.xpose.msra.mxu0 0.0
        %2330 = vmatprep.subr.mxu0 0.0
        %2331 = vmatpush1.xpose.msra.mxu0 0.0
        %2332 = vmatprep.subr.mxu0 0.0
        %2333 = vmatpush1.xpose.msra.mxu0 0.0
        %2334 = vmatprep.subr.mxu0 0.0
        %2335 = vmatpush1.xpose.msra.mxu0 0.0
        %2336 = vmatprep.subr.mxu0 0.0
        %2337 = vmatpush1.xpose.msra.mxu0 0.0
        %2338 = vmatprep.subr.mxu0 0.0
        %2339 = vmatpush1.xpose.msra.mxu0 0.0
        %2340 = vmatprep.subr.mxu0 0.0
        %2341 = vmatpush1.xpose.msra.mxu0 0.0
        %2342 = vmatprep.subr.mxu0 0.0
        %2343 = vmatpush1.xpose.msra.mxu0 0.0
        %2344 = vmatprep.subr.mxu0 0.0
        %2345 = vmatpush1.xpose.msra.mxu0 0.0
        %2346 = vmatprep.subr.mxu0 0.0
        %2347 = vmatpush1.xpose.msra.mxu0 0.0
        %2348 = vmatprep.mubr.f32.mxu0 0.0
        %2349 = vmatmul.mubr.f32.gmra.mrb[0].mxu0 %v2280
        %v2350 = vpop.f32.mrb[0].mxu0
        %v2351 = vadd.f32 0.0, %v2350
        %v2352 = vpop.f32.mrb[0].mxu0
        %2353 = vdwg.mxu0
        %v2354 = vsel %vm883, %v2351, -inf
        %2355 = vmax.xlane.f32.xlu0 %v2354
        %v2356 = vpop.xlane.xlu0 %2355
        %v2357 = vsub.f32 %v2351, %v2356
        %v2358 = vmul.f32 %v2357, 1.442695
        %v2359 = vpow.pop %v2358
        %v2360 = vsel %vm883, %v2359, 0.0
        %2361 = vadd.xlane.f32.xlu0 %v2360
        %v2362 = vpop.xlane.xlu0 %2361
        %v2363 = vrcp.pop %v2362
        %v2364 = vmul.f32 %v2359, %v2363
        %2365 = vrot.lane.b32.xlu0 %v2101, 56
        %v2366 = vpop.permute.xlu0 %2365
        %v2368 = vsel %vm897, %v2364, 0
        %v2370 = vsel %vm901, %v2366, 0
        %2372 = vmatprep.subr.mxu0 0.0
        %2373 = vmatpush1.msra.mxu0 %v2370
        %2374 = vmatprep.subr.mxu0 0.0
        %2375 = vmatpush1.msra.mxu0 0.0
        %2376 = vmatprep.subr.mxu0 0.0
        %2377 = vmatpush1.msra.mxu0 0.0
        %2378 = vmatprep.subr.mxu0 0.0
        %2379 = vmatpush1.msra.mxu0 0.0
        %2380 = vmatprep.subr.mxu0 0.0
        %2381 = vmatpush1.msra.mxu0 0.0
        %2382 = vmatprep.subr.mxu0 0.0
        %2383 = vmatpush1.msra.mxu0 0.0
        %2384 = vmatprep.subr.mxu0 0.0
        %2385 = vmatpush1.msra.mxu0 0.0
        %2386 = vmatprep.subr.mxu0 0.0
        %2387 = vmatpush1.msra.mxu0 0.0
        %2388 = vmatprep.subr.mxu0 0.0
        %2389 = vmatpush1.msra.mxu0 0.0
        %2390 = vmatprep.subr.mxu0 0.0
        %2391 = vmatpush1.msra.mxu0 0.0
        %2392 = vmatprep.subr.mxu0 0.0
        %2393 = vmatpush1.msra.mxu0 0.0
        %2394 = vmatprep.subr.mxu0 0.0
        %2395 = vmatpush1.msra.mxu0 0.0
        %2396 = vmatprep.subr.mxu0 0.0
        %2397 = vmatpush1.msra.mxu0 0.0
        %2398 = vmatprep.subr.mxu0 0.0
        %2399 = vmatpush1.msra.mxu0 0.0
        %2400 = vmatprep.subr.mxu0 0.0
        %2401 = vmatpush1.msra.mxu0 0.0
        %2402 = vmatprep.subr.mxu0 0.0
        %2403 = vmatpush1.msra.mxu0 0.0
        %2404 = vmatprep.subr.mxu0 0.0
        %2405 = vmatpush1.msra.mxu0 0.0
        %2406 = vmatprep.subr.mxu0 0.0
        %2407 = vmatpush1.msra.mxu0 0.0
        %2408 = vmatprep.subr.mxu0 0.0
        %2409 = vmatpush1.msra.mxu0 0.0
        %2410 = vmatprep.subr.mxu0 0.0
        %2411 = vmatpush1.msra.mxu0 0.0
        %2412 = vmatprep.subr.mxu0 0.0
        %2413 = vmatpush1.msra.mxu0 0.0
        %2414 = vmatprep.subr.mxu0 0.0
        %2415 = vmatpush1.msra.mxu0 0.0
        %2416 = vmatprep.subr.mxu0 0.0
        %2417 = vmatpush1.msra.mxu0 0.0
        %2418 = vmatprep.subr.mxu0 0.0
        %2419 = vmatpush1.msra.mxu0 0.0
        %2420 = vmatprep.subr.mxu0 0.0
        %2421 = vmatpush1.msra.mxu0 0.0
        %2422 = vmatprep.subr.mxu0 0.0
        %2423 = vmatpush1.msra.mxu0 0.0
        %2424 = vmatprep.subr.mxu0 0.0
        %2425 = vmatpush1.msra.mxu0 0.0
        %2426 = vmatprep.subr.mxu0 0.0
        %2427 = vmatpush1.msra.mxu0 0.0
        %2428 = vmatprep.subr.mxu0 0.0
        %2429 = vmatpush1.msra.mxu0 0.0
        %2430 = vmatprep.subr.mxu0 0.0
        %2431 = vmatpush1.msra.mxu0 0.0
        %2432 = vmatprep.subr.mxu0 0.0
        %2433 = vmatpush1.msra.mxu0 0.0
        %2434 = vmatprep.subr.mxu0 0.0
        %2435 = vmatpush1.msra.mxu0 0.0
        %2436 = vmatprep.mubr.f32.mxu0 0.0
        %2437 = vmatmul.mubr.f32.gmra.mrb[0].mxu0 %v2368
        %v2438 = vpop.f32.mrb[0].mxu0
        %v2439 = vadd.f32 0.0, %v2438
        %v2440 = vpop.f32.mrb[0].mxu0
        %2441 = vdwg.mxu0
        %v2443 = vsel %vm807, %v2439, 0
        %2445 = vmatprep.subr.mxu0 0.0
        %2446 = vmatpush1.msra.mxu0 %v2107
        %2447 = vmatprep.subr.mxu0 0.0
        %2448 = vmatpush1.msra.mxu0 0.0
        %2449 = vmatprep.subr.mxu0 0.0
        %2450 = vmatpush1.msra.mxu0 0.0
        %2451 = vmatprep.subr.mxu0 0.0
        %2452 = vmatpush1.msra.mxu0 0.0
        %2453 = vmatprep.subr.mxu0 0.0
        %2454 = vmatpush1.msra.mxu0 0.0
        %2455 = vmatprep.subr.mxu0 0.0
        %2456 = vmatpush1.msra.mxu0 0.0
        %2457 = vmatprep.subr.mxu0 0.0
        %2458 = vmatpush1.msra.mxu0 0.0
        %2459 = vmatprep.subr.mxu0 0.0
        %2460 = vmatpush1.msra.mxu0 0.0
        %2461 = vmatprep.subr.mxu0 0.0
        %2462 = vmatpush1.msra.mxu0 0.0
        %2463 = vmatprep.subr.mxu0 0.0
        %2464 = vmatpush1.msra.mxu0 0.0
        %2465 = vmatprep.subr.mxu0 0.0
        %2466 = vmatpush1.msra.mxu0 0.0
        %2467 = vmatprep.subr.mxu0 0.0
        %2468 = vmatpush1.msra.mxu0 0.0
        %2469 = vmatprep.subr.mxu0 0.0
        %2470 = vmatpush1.msra.mxu0 0.0
        %2471 = vmatprep.subr.mxu0 0.0
        %2472 = vmatpush1.msra.mxu0 0.0
        %2473 = vmatprep.subr.mxu0 0.0
        %2474 = vmatpush1.msra.mxu0 0.0
        %2475 = vmatprep.subr.mxu0 0.0
        %2476 = vmatpush1.msra.mxu0 0.0
        %2477 = vmatprep.subr.mxu0 0.0
        %2478 = vmatpush1.msra.mxu0 0.0
        %2479 = vmatprep.subr.mxu0 0.0
        %2480 = vmatpush1.msra.mxu0 0.0
        %2481 = vmatprep.subr.mxu0 0.0
        %2482 = vmatpush1.msra.mxu0 0.0
        %2483 = vmatprep.subr.mxu0 0.0
        %2484 = vmatpush1.msra.mxu0 0.0
        %2485 = vmatprep.subr.mxu0 0.0
        %2486 = vmatpush1.msra.mxu0 0.0
        %2487 = vmatprep.subr.mxu0 0.0
        %2488 = vmatpush1.msra.mxu0 0.0
        %2489 = vmatprep.subr.mxu0 0.0
        %2490 = vmatpush1.msra.mxu0 0.0
        %2491 = vmatprep.subr.mxu0 0.0
        %2492 = vmatpush1.msra.mxu0 0.0
        %2493 = vmatprep.subr.mxu0 0.0
        %2494 = vmatpush1.msra.mxu0 0.0
        %2495 = vmatprep.subr.mxu0 0.0
        %2496 = vmatpush1.msra.mxu0 0.0
        %2497 = vmatprep.subr.mxu0 0.0
        %2498 = vmatpush1.msra.mxu0 0.0
        %2499 = vmatprep.subr.mxu0 0.0
        %2500 = vmatpush1.msra.mxu0 0.0
        %2501 = vmatprep.subr.mxu0 0.0
        %2502 = vmatpush1.msra.mxu0 0.0
        %2503 = vmatprep.subr.mxu0 0.0
        %2504 = vmatpush1.msra.mxu0 0.0
        %2505 = vmatprep.subr.mxu0 0.0
        %2506 = vmatpush1.msra.mxu0 0.0
        %2507 = vmatprep.subr.mxu0 0.0
        %2508 = vmatpush1.msra.mxu0 0.0
        %2509 = vmatprep.mubr.f32.mxu0 0.0
        %2510 = vmatmul.mubr.f32.gmra.mrb[0].mxu0 %v2443
        %v2511 = vpop.f32.mrb[0].mxu0
        %v2512 = vadd.f32 0.0, %v2511
        %v2513 = vpop.f32.mrb[0].mxu0
        %2514 = vdwg.mxu0
        %v2516 = vsel %vm807, %v2273, 0
        %2518 = vmatprep.subr.mxu0 0.0
        %2519 = vmatpush1.msra.mxu0 %v2106
        %2520 = vmatprep.subr.mxu0 0.0
        %2521 = vmatpush1.msra.mxu0 0.0
        %2522 = vmatprep.subr.mxu0 0.0
        %2523 = vmatpush1.msra.mxu0 0.0
        %2524 = vmatprep.subr.mxu0 0.0
        %2525 = vmatpush1.msra.mxu0 0.0
        %2526 = vmatprep.subr.mxu0 0.0
        %2527 = vmatpush1.msra.mxu0 0.0
        %2528 = vmatprep.subr.mxu0 0.0
        %2529 = vmatpush1.msra.mxu0 0.0
        %2530 = vmatprep.subr.mxu0 0.0
        %2531 = vmatpush1.msra.mxu0 0.0
        %2532 = vmatprep.subr.mxu0 0.0
        %2533 = vmatpush1.msra.mxu0 0.0
        %2534 = vmatprep.subr.mxu0 0.0
        %2535 = vmatpush1.msra.mxu0 0.0
        %2536 = vmatprep.subr.mxu0 0.0
        %2537 = vmatpush1.msra.mxu0 0.0
        %2538 = vmatprep.subr.mxu0 0.0
        %2539 = vmatpush1.msra.mxu0 0.0
        %2540 = vmatprep.subr.mxu0 0.0
        %2541 = vmatpush1.msra.mxu0 0.0
        %2542 = vmatprep.subr.mxu0 0.0
        %2543 = vmatpush1.msra.mxu0 0.0
        %2544 = vmatprep.subr.mxu0 0.0
        %2545 = vmatpush1.msra.mxu0 0.0
        %2546 = vmatprep.subr.mxu0 0.0
        %2547 = vmatpush1.msra.mxu0 0.0
        %2548 = vmatprep.subr.mxu0 0.0
        %2549 = vmatpush1.msra.mxu0 0.0
        %2550 = vmatprep.subr.mxu0 0.0
        %2551 = vmatpush1.msra.mxu0 0.0
        %2552 = vmatprep.subr.mxu0 0.0
        %2553 = vmatpush1.msra.mxu0 0.0
        %2554 = vmatprep.subr.mxu0 0.0
        %2555 = vmatpush1.msra.mxu0 0.0
        %2556 = vmatprep.subr.mxu0 0.0
        %2557 = vmatpush1.msra.mxu0 0.0
        %2558 = vmatprep.subr.mxu0 0.0
        %2559 = vmatpush1.msra.mxu0 0.0
        %2560 = vmatprep.subr.mxu0 0.0
        %2561 = vmatpush1.msra.mxu0 0.0
        %2562 = vmatprep.subr.mxu0 0.0
        %2563 = vmatpush1.msra.mxu0 0.0
        %2564 = vmatprep.subr.mxu0 0.0
        %2565 = vmatpush1.msra.mxu0 0.0
        %2566 = vmatprep.subr.mxu0 0.0
        %2567 = vmatpush1.msra.mxu0 0.0
        %2568 = vmatprep.subr.mxu0 0.0
        %2569 = vmatpush1.msra.mxu0 0.0
        %2570 = vmatprep.subr.mxu0 0.0
        %2571 = vmatpush1.msra.mxu0 0.0
        %2572 = vmatprep.subr.mxu0 0.0
        %2573 = vmatpush1.msra.mxu0 0.0
        %2574 = vmatprep.subr.mxu0 0.0
        %2575 = vmatpush1.msra.mxu0 0.0
        %2576 = vmatprep.subr.mxu0 0.0
        %2577 = vmatpush1.msra.mxu0 0.0
        %2578 = vmatprep.subr.mxu0 0.0
        %2579 = vmatpush1.msra.mxu0 0.0
        %2580 = vmatprep.subr.mxu0 0.0
        %2581 = vmatpush1.msra.mxu0 0.0
        %2582 = vmatprep.mubr.f32.mxu0 0.0
        %2583 = vmatmul.mubr.f32.gmra.mrb[0].mxu0 %v2516
        %v2584 = vpop.f32.mrb[0].mxu0
        %v2585 = vadd.f32 %v2512, %v2584
        %v2586 = vpop.f32.mrb[0].mxu0
        %2587 = vdwg.mxu0
        %2588 = vrot.lane.b32.xlu0 %v2104, 112
        %v2589 = vpop.permute.xlu0 %2588
        %2590 = vrot.lane.b32.xlu0 %v2101, 80
        %v2591 = vpop.permute.xlu0 %2590
        %v2592 = vsel %vm807, %v2589, 0
        %v2594 = vsel %vm807, %v2591, 0
        %2596 = vmatprep.subr.mxu0 0.0
        %2597 = vmatpush1.xpose.msra.mxu0 %v2594
        %2598 = vmatprep.subr.mxu0 0.0
        %2599 = vmatpush1.xpose.msra.mxu0 0.0
        %2600 = vmatprep.subr.mxu0 0.0
        %2601 = vmatpush1.xpose.msra.mxu0 0.0
        %2602 = vmatprep.subr.mxu0 0.0
        %2603 = vmatpush1.xpose.msra.mxu0 0.0
        %2604 = vmatprep.subr.mxu0 0.0
        %2605 = vmatpush1.xpose.msra.mxu0 0.0
        %2606 = vmatprep.subr.mxu0 0.0
        %2607 = vmatpush1.xpose.msra.mxu0 0.0
        %2608 = vmatprep.subr.mxu0 0.0
        %2609 = vmatpush1.xpose.msra.mxu0 0.0
        %2610 = vmatprep.subr.mxu0 0.0
        %2611 = vmatpush1.xpose.msra.mxu0 0.0
        %2612 = vmatprep.subr.mxu0 0.0
        %2613 = vmatpush1.xpose.msra.mxu0 0.0
        %2614 = vmatprep.subr.mxu0 0.0
        %2615 = vmatpush1.xpose.msra.mxu0 0.0
        %2616 = vmatprep.subr.mxu0 0.0
        %2617 = vmatpush1.xpose.msra.mxu0 0.0
        %2618 = vmatprep.subr.mxu0 0.0
        %2619 = vmatpush1.xpose.msra.mxu0 0.0
        %2620 = vmatprep.subr.mxu0 0.0
        %2621 = vmatpush1.xpose.msra.mxu0 0.0
        %2622 = vmatprep.subr.mxu0 0.0
        %2623 = vmatpush1.xpose.msra.mxu0 0.0
        %2624 = vmatprep.subr.mxu0 0.0
        %2625 = vmatpush1.xpose.msra.mxu0 0.0
        %2626 = vmatprep.subr.mxu0 0.0
        %2627 = vmatpush1.xpose.msra.mxu0 0.0
        %2628 = vmatprep.subr.mxu0 0.0
        %2629 = vmatpush1.xpose.msra.mxu0 0.0
        %2630 = vmatprep.subr.mxu0 0.0
        %2631 = vmatpush1.xpose.msra.mxu0 0.0
        %2632 = vmatprep.subr.mxu0 0.0
        %2633 = vmatpush1.xpose.msra.mxu0 0.0
        %2634 = vmatprep.subr.mxu0 0.0
        %2635 = vmatpush1.xpose.msra.mxu0 0.0
        %2636 = vmatprep.subr.mxu0 0.0
        %2637 = vmatpush1.xpose.msra.mxu0 0.0
        %2638 = vmatprep.subr.mxu0 0.0
        %2639 = vmatpush1.xpose.msra.mxu0 0.0
        %2640 = vmatprep.subr.mxu0 0.0
        %2641 = vmatpush1.xpose.msra.mxu0 0.0
        %2642 = vmatprep.subr.mxu0 0.0
        %2643 = vmatpush1.xpose.msra.mxu0 0.0
        %2644 = vmatprep.subr.mxu0 0.0
        %2645 = vmatpush1.xpose.msra.mxu0 0.0
        %2646 = vmatprep.subr.mxu0 0.0
        %2647 = vmatpush1.xpose.msra.mxu0 0.0
        %2648 = vmatprep.subr.mxu0 0.0
        %2649 = vmatpush1.xpose.msra.mxu0 0.0
        %2650 = vmatprep.subr.mxu0 0.0
        %2651 = vmatpush1.xpose.msra.mxu0 0.0
        %2652 = vmatprep.subr.mxu0 0.0
        %2653 = vmatpush1.xpose.msra.mxu0 0.0
        %2654 = vmatprep.subr.mxu0 0.0
        %2655 = vmatpush1.xpose.msra.mxu0 0.0
        %2656 = vmatprep.subr.mxu0 0.0
        %2657 = vmatpush1.xpose.msra.mxu0 0.0
        %2658 = vmatprep.subr.mxu0 0.0
        %2659 = vmatpush1.xpose.msra.mxu0 0.0
        %2660 = vmatprep.mubr.f32.mxu0 0.0
        %2661 = vmatmul.mubr.f32.gmra.mrb[0].mxu0 %v2592
        %v2662 = vpop.f32.mrb[0].mxu0
        %v2663 = vadd.f32 0.0, %v2662
        %v2664 = vpop.f32.mrb[0].mxu0
        %2665 = vdwg.mxu0
        %v2666 = vsel %vm883, %v2663, -inf
        %2667 = vmax.xlane.f32.xlu0 %v2666
        %v2668 = vpop.xlane.xlu0 %2667
        %v2669 = vsub.f32 %v2663, %v2668
        %v2670 = vmul.f32 %v2669, 1.442695
        %v2671 = vpow.pop %v2670
        %v2672 = vsel %vm883, %v2671, 0.0
        %2673 = vadd.xlane.f32.xlu0 %v2672
        %v2674 = vpop.xlane.xlu0 %2673
        %v2675 = vrcp.pop %v2674
        %v2676 = vmul.f32 %v2671, %v2675
        %2677 = vrot.lane.b32.xlu0 %v2101, 48
        %v2678 = vpop.permute.xlu0 %2677
        %v2680 = vsel %vm897, %v2676, 0
        %v2682 = vsel %vm901, %v2678, 0
        %2684 = vmatprep.subr.mxu0 0.0
        %2685 = vmatpush1.msra.mxu0 %v2682
        %2686 = vmatprep.subr.mxu0 0.0
        %2687 = vmatpush1.msra.mxu0 0.0
        %2688 = vmatprep.subr.mxu0 0.0
        %2689 = vmatpush1.msra.mxu0 0.0
        %2690 = vmatprep.subr.mxu0 0.0
        %2691 = vmatpush1.msra.mxu0 0.0
        %2692 = vmatprep.subr.mxu0 0.0
        %2693 = vmatpush1.msra.mxu0 0.0
        %2694 = vmatprep.subr.mxu0 0.0
        %2695 = vmatpush1.msra.mxu0 0.0
        %2696 = vmatprep.subr.mxu0 0.0
        %2697 = vmatpush1.msra.mxu0 0.0
        %2698 = vmatprep.subr.mxu0 0.0
        %2699 = vmatpush1.msra.mxu0 0.0
        %2700 = vmatprep.subr.mxu0 0.0
        %2701 = vmatpush1.msra.mxu0 0.0
        %2702 = vmatprep.subr.mxu0 0.0
        %2703 = vmatpush1.msra.mxu0 0.0
        %2704 = vmatprep.subr.mxu0 0.0
        %2705 = vmatpush1.msra.mxu0 0.0
        %2706 = vmatprep.subr.mxu0 0.0
        %2707 = vmatpush1.msra.mxu0 0.0
        %2708 = vmatprep.subr.mxu0 0.0
        %2709 = vmatpush1.msra.mxu0 0.0
        %2710 = vmatprep.subr.mxu0 0.0
        %2711 = vmatpush1.msra.mxu0 0.0
        %2712 = vmatprep.subr.mxu0 0.0
        %2713 = vmatpush1.msra.mxu0 0.0
        %2714 = vmatprep.subr.mxu0 0.0
        %2715 = vmatpush1.msra.mxu0 0.0
        %2716 = vmatprep.subr.mxu0 0.0
        %2717 = vmatpush1.msra.mxu0 0.0
        %2718 = vmatprep.subr.mxu0 0.0
        %2719 = vmatpush1.msra.mxu0 0.0
        %2720 = vmatprep.subr.mxu0 0.0
        %2721 = vmatpush1.msra.mxu0 0.0
        %2722 = vmatprep.subr.mxu0 0.0
        %2723 = vmatpush1.msra.mxu0 0.0
        %2724 = vmatprep.subr.mxu0 0.0
        %2725 = vmatpush1.msra.mxu0 0.0
        %2726 = vmatprep.subr.mxu0 0.0
        %2727 = vmatpush1.msra.mxu0 0.0
        %2728 = vmatprep.subr.mxu0 0.0
        %2729 = vmatpush1.msra.mxu0 0.0
        %2730 = vmatprep.subr.mxu0 0.0
        %2731 = vmatpush1.msra.mxu0 0.0
        %2732 = vmatprep.subr.mxu0 0.0
        %2733 = vmatpush1.msra.mxu0 0.0
        %2734 = vmatprep.subr.mxu0 0.0
        %2735 = vmatpush1.msra.mxu0 0.0
        %2736 = vmatprep.subr.mxu0 0.0
        %2737 = vmatpush1.msra.mxu0 0.0
        %2738 = vmatprep.subr.mxu0 0.0
        %2739 = vmatpush1.msra.mxu0 0.0
        %2740 = vmatprep.subr.mxu0 0.0
        %2741 = vmatpush1.msra.mxu0 0.0
        %2742 = vmatprep.subr.mxu0 0.0
        %2743 = vmatpush1.msra.mxu0 0.0
        %2744 = vmatprep.subr.mxu0 0.0
        %2745 = vmatpush1.msra.mxu0 0.0
        %2746 = vmatprep.subr.mxu0 0.0
        %2747 = vmatpush1.msra.mxu0 0.0
        %2748 = vmatprep.mubr.f32.mxu0 0.0
        %2749 = vmatmul.mubr.f32.gmra.mrb[0].mxu0 %v2680
        %v2750 = vpop.f32.mrb[0].mxu0
        %v2751 = vadd.f32 0.0, %v2750
        %v2752 = vpop.f32.mrb[0].mxu0
        %2753 = vdwg.mxu0
        %v2755 = vsel %vm807, %v2751, 0
        %2757 = vmatprep.subr.mxu0 0.0
        %2758 = vmatpush1.msra.mxu0 %v2108
        %2759 = vmatprep.subr.mxu0 0.0
        %2760 = vmatpush1.msra.mxu0 0.0
        %2761 = vmatprep.subr.mxu0 0.0
        %2762 = vmatpush1.msra.mxu0 0.0
        %2763 = vmatprep.subr.mxu0 0.0
        %2764 = vmatpush1.msra.mxu0 0.0
        %2765 = vmatprep.subr.mxu0 0.0
        %2766 = vmatpush1.msra.mxu0 0.0
        %2767 = vmatprep.subr.mxu0 0.0
        %2768 = vmatpush1.msra.mxu0 0.0
        %2769 = vmatprep.subr.mxu0 0.0
        %2770 = vmatpush1.msra.mxu0 0.0
        %2771 = vmatprep.subr.mxu0 0.0
        %2772 = vmatpush1.msra.mxu0 0.0
        %2773 = vmatprep.subr.mxu0 0.0
        %2774 = vmatpush1.msra.mxu0 0.0
        %2775 = vmatprep.subr.mxu0 0.0
        %2776 = vmatpush1.msra.mxu0 0.0
        %2777 = vmatprep.subr.mxu0 0.0
        %2778 = vmatpush1.msra.mxu0 0.0
        %2779 = vmatprep.subr.mxu0 0.0
        %2780 = vmatpush1.msra.mxu0 0.0
        %2781 = vmatprep.subr.mxu0 0.0
        %2782 = vmatpush1.msra.mxu0 0.0
        %2783 = vmatprep.subr.mxu0 0.0
        %2784 = vmatpush1.msra.mxu0 0.0
        %2785 = vmatprep.subr.mxu0 0.0
        %2786 = vmatpush1.msra.mxu0 0.0
        %2787 = vmatprep.subr.mxu0 0.0
        %2788 = vmatpush1.msra.mxu0 0.0
        %2789 = vmatprep.subr.mxu0 0.0
        %2790 = vmatpush1.msra.mxu0 0.0
        %2791 = vmatprep.subr.mxu0 0.0
        %2792 = vmatpush1.msra.mxu0 0.0
        %2793 = vmatprep.subr.mxu0 0.0
        %2794 = vmatpush1.msra.mxu0 0.0
        %2795 = vmatprep.subr.mxu0 0.0
        %2796 = vmatpush1.msra.mxu0 0.0
        %2797 = vmatprep.subr.mxu0 0.0
        %2798 = vmatpush1.msra.mxu0 0.0
        %2799 = vmatprep.subr.mxu0 0.0
        %2800 = vmatpush1.msra.mxu0 0.0
        %2801 = vmatprep.subr.mxu0 0.0
        %2802 = vmatpush1.msra.mxu0 0.0
        %2803 = vmatprep.subr.mxu0 0.0
        %2804 = vmatpush1.msra.mxu0 0.0
        %2805 = vmatprep.subr.mxu0 0.0
        %2806 = vmatpush1.msra.mxu0 0.0
        %2807 = vmatprep.subr.mxu0 0.0
        %2808 = vmatpush1.msra.mxu0 0.0
        %2809 = vmatprep.subr.mxu0 0.0
        %2810 = vmatpush1.msra.mxu0 0.0
        %2811 = vmatprep.subr.mxu0 0.0
        %2812 = vmatpush1.msra.mxu0 0.0
        %2813 = vmatprep.subr.mxu0 0.0
        %2814 = vmatpush1.msra.mxu0 0.0
        %2815 = vmatprep.subr.mxu0 0.0
        %2816 = vmatpush1.msra.mxu0 0.0
        %2817 = vmatprep.subr.mxu0 0.0
        %2818 = vmatpush1.msra.mxu0 0.0
        %2819 = vmatprep.subr.mxu0 0.0
        %2820 = vmatpush1.msra.mxu0 0.0
        %2821 = vmatprep.mubr.f32.mxu0 0.0
        %2822 = vmatmul.mubr.f32.gmra.mrb[0].mxu0 %v2755
        %v2823 = vpop.f32.mrb[0].mxu0
        %v2824 = vadd.f32 0.0, %v2823
        %v2825 = vpop.f32.mrb[0].mxu0
        %2826 = vdwg.mxu0
        %v2827 = vadd.f32 %v2585, %v2824
        %2828 = vrot.lane.b32.xlu0 %v2104, 104
        %v2829 = vpop.permute.xlu0 %2828
        %2830 = vrot.lane.b32.xlu0 %v2101, 72
        %v2831 = vpop.permute.xlu0 %2830
        %v2832 = vsel %vm807, %v2829, 0
        %v2834 = vsel %vm807, %v2831, 0
        %2836 = vmatprep.subr.mxu0 0.0
        %2837 = vmatpush1.xpose.msra.mxu0 %v2834
        %2838 = vmatprep.subr.mxu0 0.0
        %2839 = vmatpush1.xpose.msra.mxu0 0.0
        %2840 = vmatprep.subr.mxu0 0.0
        %2841 = vmatpush1.xpose.msra.mxu0 0.0
        %2842 = vmatprep.subr.mxu0 0.0
        %2843 = vmatpush1.xpose.msra.mxu0 0.0
        %2844 = vmatprep.subr.mxu0 0.0
        %2845 = vmatpush1.xpose.msra.mxu0 0.0
        %2846 = vmatprep.subr.mxu0 0.0
        %2847 = vmatpush1.xpose.msra.mxu0 0.0
        %2848 = vmatprep.subr.mxu0 0.0
        %2849 = vmatpush1.xpose.msra.mxu0 0.0
        %2850 = vmatprep.subr.mxu0 0.0
        %2851 = vmatpush1.xpose.msra.mxu0 0.0
        %2852 = vmatprep.subr.mxu0 0.0
        %2853 = vmatpush1.xpose.msra.mxu0 0.0
        %2854 = vmatprep.subr.mxu0 0.0
        %2855 = vmatpush1.xpose.msra.mxu0 0.0
        %2856 = vmatprep.subr.mxu0 0.0
        %2857 = vmatpush1.xpose.msra.mxu0 0.0
        %2858 = vmatprep.subr.mxu0 0.0
        %2859 = vmatpush1.xpose.msra.mxu0 0.0
        %2860 = vmatprep.subr.mxu0 0.0
        %2861 = vmatpush1.xpose.msra.mxu0 0.0
        %2862 = vmatprep.subr.mxu0 0.0
        %2863 = vmatpush1.xpose.msra.mxu0 0.0
        %2864 = vmatprep.subr.mxu0 0.0
        %2865 = vmatpush1.xpose.msra.mxu0 0.0
        %2866 = vmatprep.subr.mxu0 0.0
        %2867 = vmatpush1.xpose.msra.mxu0 0.0
        %2868 = vmatprep.subr.mxu0 0.0
        %2869 = vmatpush1.xpose.msra.mxu0 0.0
        %2870 = vmatprep.subr.mxu0 0.0
        %2871 = vmatpush1.xpose.msra.mxu0 0.0
        %2872 = vmatprep.subr.mxu0 0.0
        %2873 = vmatpush1.xpose.msra.mxu0 0.0
        %2874 = vmatprep.subr.mxu0 0.0
        %2875 = vmatpush1.xpose.msra.mxu0 0.0
        %2876 = vmatprep.subr.mxu0 0.0
        %2877 = vmatpush1.xpose.msra.mxu0 0.0
        %2878 = vmatprep.subr.mxu0 0.0
        %2879 = vmatpush1.xpose.msra.mxu0 0.0
        %2880 = vmatprep.subr.mxu0 0.0
        %2881 = vmatpush1.xpose.msra.mxu0 0.0
        %2882 = vmatprep.subr.mxu0 0.0
        %2883 = vmatpush1.xpose.msra.mxu0 0.0
        %2884 = vmatprep.subr.mxu0 0.0
        %2885 = vmatpush1.xpose.msra.mxu0 0.0
        %2886 = vmatprep.subr.mxu0 0.0
        %2887 = vmatpush1.xpose.msra.mxu0 0.0
        %2888 = vmatprep.subr.mxu0 0.0
        %2889 = vmatpush1.xpose.msra.mxu0 0.0
        %2890 = vmatprep.subr.mxu0 0.0
        %2891 = vmatpush1.xpose.msra.mxu0 0.0
        %2892 = vmatprep.subr.mxu0 0.0
        %2893 = vmatpush1.xpose.msra.mxu0 0.0
        %2894 = vmatprep.subr.mxu0 0.0
        %2895 = vmatpush1.xpose.msra.mxu0 0.0
        %2896 = vmatprep.subr.mxu0 0.0
        %2897 = vmatpush1.xpose.msra.mxu0 0.0
        %2898 = vmatprep.subr.mxu0 0.0
        %2899 = vmatpush1.xpose.msra.mxu0 0.0
        %2900 = vmatprep.mubr.f32.mxu0 0.0
        %2901 = vmatmul.mubr.f32.gmra.mrb[0].mxu0 %v2832
        %v2902 = vpop.f32.mrb[0].mxu0
        %v2903 = vadd.f32 0.0, %v2902
        %v2904 = vpop.f32.mrb[0].mxu0
        %2905 = vdwg.mxu0
        %v2906 = vsel %vm883, %v2903, -inf
        %2907 = vmax.xlane.f32.xlu0 %v2906
        %v2908 = vpop.xlane.xlu0 %2907
        %v2909 = vsub.f32 %v2903, %v2908
        %v2910 = vmul.f32 %v2909, 1.442695
        %v2911 = vpow.pop %v2910
        %v2912 = vsel %vm883, %v2911, 0.0
        %2913 = vadd.xlane.f32.xlu0 %v2912
        %v2914 = vpop.xlane.xlu0 %2913
        %v2915 = vrcp.pop %v2914
        %v2916 = vmul.f32 %v2911, %v2915
        %2917 = vrot.lane.b32.xlu0 %v2101, 40
        %v2918 = vpop.permute.xlu0 %2917
        %v2920 = vsel %vm897, %v2916, 0
        %v2922 = vsel %vm901, %v2918, 0
        %2924 = vmatprep.subr.mxu0 0.0
        %2925 = vmatpush1.msra.mxu0 %v2922
        %2926 = vmatprep.subr.mxu0 0.0
        %2927 = vmatpush1.msra.mxu0 0.0
        %2928 = vmatprep.subr.mxu0 0.0
        %2929 = vmatpush1.msra.mxu0 0.0
        %2930 = vmatprep.subr.mxu0 0.0
        %2931 = vmatpush1.msra.mxu0 0.0
        %2932 = vmatprep.subr.mxu0 0.0
        %2933 = vmatpush1.msra.mxu0 0.0
        %2934 = vmatprep.subr.mxu0 0.0
        %2935 = vmatpush1.msra.mxu0 0.0
        %2936 = vmatprep.subr.mxu0 0.0
        %2937 = vmatpush1.msra.mxu0 0.0
        %2938 = vmatprep.subr.mxu0 0.0
        %2939 = vmatpush1.msra.mxu0 0.0
        %2940 = vmatprep.subr.mxu0 0.0
        %2941 = vmatpush1.msra.mxu0 0.0
        %2942 = vmatprep.subr.mxu0 0.0
        %2943 = vmatpush1.msra.mxu0 0.0
        %2944 = vmatprep.subr.mxu0 0.0
        %2945 = vmatpush1.msra.mxu0 0.0
        %2946 = vmatprep.subr.mxu0 0.0
        %2947 = vmatpush1.msra.mxu0 0.0
        %2948 = vmatprep.subr.mxu0 0.0
        %2949 = vmatpush1.msra.mxu0 0.0
        %2950 = vmatprep.subr.mxu0 0.0
        %2951 = vmatpush1.msra.mxu0 0.0
        %2952 = vmatprep.subr.mxu0 0.0
        %2953 = vmatpush1.msra.mxu0 0.0
        %2954 = vmatprep.subr.mxu0 0.0
        %2955 = vmatpush1.msra.mxu0 0.0
        %2956 = vmatprep.subr.mxu0 0.0
        %2957 = vmatpush1.msra.mxu0 0.0
        %2958 = vmatprep.subr.mxu0 0.0
        %2959 = vmatpush1.msra.mxu0 0.0
        %2960 = vmatprep.subr.mxu0 0.0
        %2961 = vmatpush1.msra.mxu0 0.0
        %2962 = vmatprep.subr.mxu0 0.0
        %2963 = vmatpush1.msra.mxu0 0.0
        %2964 = vmatprep.subr.mxu0 0.0
        %2965 = vmatpush1.msra.mxu0 0.0
        %2966 = vmatprep.subr.mxu0 0.0
        %2967 = vmatpush1.msra.mxu0 0.0
        %2968 = vmatprep.subr.mxu0 0.0
        %2969 = vmatpush1.msra.mxu0 0.0
        %2970 = vmatprep.subr.mxu0 0.0
        %2971 = vmatpush1.msra.mxu0 0.0
        %2972 = vmatprep.subr.mxu0 0.0
        %2973 = vmatpush1.msra.mxu0 0.0
        %2974 = vmatprep.subr.mxu0 0.0
        %2975 = vmatpush1.msra.mxu0 0.0
        %2976 = vmatprep.subr.mxu0 0.0
        %2977 = vmatpush1.msra.mxu0 0.0
        %2978 = vmatprep.subr.mxu0 0.0
        %2979 = vmatpush1.msra.mxu0 0.0
        %2980 = vmatprep.subr.mxu0 0.0
        %2981 = vmatpush1.msra.mxu0 0.0
        %2982 = vmatprep.subr.mxu0 0.0
        %2983 = vmatpush1.msra.mxu0 0.0
        %2984 = vmatprep.subr.mxu0 0.0
        %2985 = vmatpush1.msra.mxu0 0.0
        %2986 = vmatprep.subr.mxu0 0.0
        %2987 = vmatpush1.msra.mxu0 0.0
        %2988 = vmatprep.mubr.f32.mxu0 0.0
        %2989 = vmatmul.mubr.f32.gmra.mrb[0].mxu0 %v2920
        %v2990 = vpop.f32.mrb[0].mxu0
        %v2991 = vadd.f32 0.0, %v2990
        %v2992 = vpop.f32.mrb[0].mxu0
        %2993 = vdwg.mxu0
        %v2995 = vsel %vm807, %v2991, 0
        %2997 = vmatprep.subr.mxu0 0.0
        %2998 = vmatpush1.msra.mxu0 %v2109
        %2999 = vmatprep.subr.mxu0 0.0
        %3000 = vmatpush1.msra.mxu0 0.0
        %3001 = vmatprep.subr.mxu0 0.0
        %3002 = vmatpush1.msra.mxu0 0.0
        %3003 = vmatprep.subr.mxu0 0.0
        %3004 = vmatpush1.msra.mxu0 0.0
        %3005 = vmatprep.subr.mxu0 0.0
        %3006 = vmatpush1.msra.mxu0 0.0
        %3007 = vmatprep.subr.mxu0 0.0
        %3008 = vmatpush1.msra.mxu0 0.0
        %3009 = vmatprep.subr.mxu0 0.0
        %3010 = vmatpush1.msra.mxu0 0.0
        %3011 = vmatprep.subr.mxu0 0.0
        %3012 = vmatpush1.msra.mxu0 0.0
        %3013 = vmatprep.subr.mxu0 0.0
        %3014 = vmatpush1.msra.mxu0 0.0
        %3015 = vmatprep.subr.mxu0 0.0
        %3016 = vmatpush1.msra.mxu0 0.0
        %3017 = vmatprep.subr.mxu0 0.0
        %3018 = vmatpush1.msra.mxu0 0.0
        %3019 = vmatprep.subr.mxu0 0.0
        %3020 = vmatpush1.msra.mxu0 0.0
        %3021 = vmatprep.subr.mxu0 0.0
        %3022 = vmatpush1.msra.mxu0 0.0
        %3023 = vmatprep.subr.mxu0 0.0
        %3024 = vmatpush1.msra.mxu0 0.0
        %3025 = vmatprep.subr.mxu0 0.0
        %3026 = vmatpush1.msra.mxu0 0.0
        %3027 = vmatprep.subr.mxu0 0.0
        %3028 = vmatpush1.msra.mxu0 0.0
        %3029 = vmatprep.subr.mxu0 0.0
        %3030 = vmatpush1.msra.mxu0 0.0
        %3031 = vmatprep.subr.mxu0 0.0
        %3032 = vmatpush1.msra.mxu0 0.0
        %3033 = vmatprep.subr.mxu0 0.0
        %3034 = vmatpush1.msra.mxu0 0.0
        %3035 = vmatprep.subr.mxu0 0.0
        %3036 = vmatpush1.msra.mxu0 0.0
        %3037 = vmatprep.subr.mxu0 0.0
        %3038 = vmatpush1.msra.mxu0 0.0
        %3039 = vmatprep.subr.mxu0 0.0
        %3040 = vmatpush1.msra.mxu0 0.0
        %3041 = vmatprep.subr.mxu0 0.0
        %3042 = vmatpush1.msra.mxu0 0.0
        %3043 = vmatprep.subr.mxu0 0.0
        %3044 = vmatpush1.msra.mxu0 0.0
        %3045 = vmatprep.subr.mxu0 0.0
        %3046 = vmatpush1.msra.mxu0 0.0
        %3047 = vmatprep.subr.mxu0 0.0
        %3048 = vmatpush1.msra.mxu0 0.0
        %3049 = vmatprep.subr.mxu0 0.0
        %3050 = vmatpush1.msra.mxu0 0.0
        %3051 = vmatprep.subr.mxu0 0.0
        %3052 = vmatpush1.msra.mxu0 0.0
        %3053 = vmatprep.subr.mxu0 0.0
        %3054 = vmatpush1.msra.mxu0 0.0
        %3055 = vmatprep.subr.mxu0 0.0
        %3056 = vmatpush1.msra.mxu0 0.0
        %3057 = vmatprep.subr.mxu0 0.0
        %3058 = vmatpush1.msra.mxu0 0.0
        %3059 = vmatprep.subr.mxu0 0.0
        %3060 = vmatpush1.msra.mxu0 0.0
        %3061 = vmatprep.mubr.f32.mxu0 0.0
        %3062 = vmatmul.mubr.f32.gmra.mrb[0].mxu0 %v2995
        %v3063 = vpop.f32.mrb[0].mxu0
        %v3064 = vadd.f32 0.0, %v3063
        %v3065 = vpop.f32.mrb[0].mxu0
        %3066 = vdwg.mxu0
        %v3067 = vadd.f32 %v2827, %v3064
        %v3068 = vadd.f32 %v1986, %v3067
        %s3069 = scalar_lea.vmem %s9, 1
        %v3070 = vld [vmem:[%s3069] sm:$0x1]
        %v3072 = vlaneseq
        %v3073 = vshrl.u32 %v3072, 7
        %v3074 = vsub.s32 0, %v3073
        %v3075 = vrot.slane %v3070, %v3074
        %v3077 = vadd.f32 %v3068, %v3075
        %s3078 = scalar_lea.vmem %s10, 1
        %v3079 = vld [vmem:[%s3078] sm:$0x1]
        %s3080 = scalar_lea.vmem %s11, 1
        %v3081 = vld [vmem:[%s3080] sm:$0x1]
        %v3082 = vsel %vm685, %v3077, 0.0
        %3083 = vadd.xlane.f32.xlu0 %v3082
        %v3084 = vpop.xlane.xlu0 %3083
        %v3085 = vmul.f32 %v3084, %v689
        %v3086 = vsub.f32 %v3077, %v3085
        %v3087 = vmul.f32 %v3086, %v3086
        %v3088 = vsel %vm685, %v3087, 0.0
        %3089 = vadd.xlane.f32.xlu0 %v3088
        %v3090 = vpop.xlane.xlu0 %3089
        %v3091 = vmul.f32 %v3090, %v689
        %v3092 = vadd.f32 %v3091, 1e-06
        %v3093 = vrsqrt.pop %v3092
        %v3094 = vmul.f32 %v3086, %v3093
        %v3096 = vlaneseq
        %v3097 = vshrl.u32 %v3096, 7
        %v3098 = vsub.s32 0, %v3097
        %v3099 = vrot.slane %v3079, %v3098
        %v3101 = vmul.f32 %v3094, %v3099
        %v3103 = vlaneseq
        %v3104 = vshrl.u32 %v3103, 7
        %v3105 = vsub.s32 0, %v3104
        %v3106 = vrot.slane %v3081, %v3105
        %v3108 = vadd.f32 %v3101, %v3106
        %s3109 = scalar_lea.vmem %s12, 32
        %v3110 = vld [vmem:[%s3109] sm:$0xff]
        %v3111 = vld [vmem:[%s3109 + $0x8] sm:$0xff]
        %v3112 = vld [vmem:[%s3109 + $0x10] sm:$0xff]
        %v3113 = vld [vmem:[%s3109 + $0x18] sm:$0xff]
        %s3114 = scalar_lea.vmem %s13, 1
        %v3115 = vld [vmem:[%s3114] sm:$0x1]
        %v3117 = vlaneseq
        %v3118 = vshrl.u32 %v3117, 7
        %v3119 = vsub.s32 0, %v3118
        %v3120 = vrot.slane %v3115, %v3119
        %v3123 = vsel %vm725, %v3108, 0
        %3125 = vmatprep.subr.mxu0 0.0
        %3126 = vmatpush1.msra.mxu0 %v3110
        %3127 = vmatprep.subr.mxu0 0.0
        %3128 = vmatpush1.msra.mxu0 %v3111
        %3129 = vmatprep.subr.mxu0 0.0
        %3130 = vmatpush1.msra.mxu0 %v3112
        %3131 = vmatprep.subr.mxu0 0.0
        %3132 = vmatpush1.msra.mxu0 %v3113
        %3133 = vmatprep.subr.mxu0 0.0
        %3134 = vmatpush1.msra.mxu0 0.0
        %3135 = vmatprep.subr.mxu0 0.0
        %3136 = vmatpush1.msra.mxu0 0.0
        %3137 = vmatprep.subr.mxu0 0.0
        %3138 = vmatpush1.msra.mxu0 0.0
        %3139 = vmatprep.subr.mxu0 0.0
        %3140 = vmatpush1.msra.mxu0 0.0
        %3141 = vmatprep.subr.mxu0 0.0
        %3142 = vmatpush1.msra.mxu0 0.0
        %3143 = vmatprep.subr.mxu0 0.0
        %3144 = vmatpush1.msra.mxu0 0.0
        %3145 = vmatprep.subr.mxu0 0.0
        %3146 = vmatpush1.msra.mxu0 0.0
        %3147 = vmatprep.subr.mxu0 0.0
        %3148 = vmatpush1.msra.mxu0 0.0
        %3149 = vmatprep.subr.mxu0 0.0
        %3150 = vmatpush1.msra.mxu0 0.0
        %3151 = vmatprep.subr.mxu0 0.0
        %3152 = vmatpush1.msra.mxu0 0.0
        %3153 = vmatprep.subr.mxu0 0.0
        %3154 = vmatpush1.msra.mxu0 0.0
        %3155 = vmatprep.subr.mxu0 0.0
        %3156 = vmatpush1.msra.mxu0 0.0
        %3157 = vmatprep.subr.mxu0 0.0
        %3158 = vmatpush1.msra.mxu0 0.0
        %3159 = vmatprep.subr.mxu0 0.0
        %3160 = vmatpush1.msra.mxu0 0.0
        %3161 = vmatprep.subr.mxu0 0.0
        %3162 = vmatpush1.msra.mxu0 0.0
        %3163 = vmatprep.subr.mxu0 0.0
        %3164 = vmatpush1.msra.mxu0 0.0
        %3165 = vmatprep.subr.mxu0 0.0
        %3166 = vmatpush1.msra.mxu0 0.0
        %3167 = vmatprep.subr.mxu0 0.0
        %3168 = vmatpush1.msra.mxu0 0.0
        %3169 = vmatprep.subr.mxu0 0.0
        %3170 = vmatpush1.msra.mxu0 0.0
        %3171 = vmatprep.subr.mxu0 0.0
        %3172 = vmatpush1.msra.mxu0 0.0
        %3173 = vmatprep.subr.mxu0 0.0
        %3174 = vmatpush1.msra.mxu0 0.0
        %3175 = vmatprep.subr.mxu0 0.0
        %3176 = vmatpush1.msra.mxu0 0.0
        %3177 = vmatprep.subr.mxu0 0.0
        %3178 = vmatpush1.msra.mxu0 0.0
        %3179 = vmatprep.subr.mxu0 0.0
        %3180 = vmatpush1.msra.mxu0 0.0
        %3181 = vmatprep.subr.mxu0 0.0
        %3182 = vmatpush1.msra.mxu0 0.0
        %3183 = vmatprep.subr.mxu0 0.0
        %3184 = vmatpush1.msra.mxu0 0.0
        %3185 = vmatprep.subr.mxu0 0.0
        %3186 = vmatpush1.msra.mxu0 0.0
        %3187 = vmatprep.subr.mxu0 0.0
        %3188 = vmatpush1.msra.mxu0 0.0
        %3189 = vmatprep.mubr.f32.mxu0 0.0
        %3190 = vmatmul.mubr.f32.gmra.mrb[0].mxu0 %v3123
        %v3191 = vpop.f32.mrb[0].mxu0
        %v3192 = vadd.f32 %v3120, %v3191
        %v3193 = vpop.f32.mrb[0].mxu0
        %3194 = vdwg.mxu0
        %v3195 = vmul.f32 %v3192, 0.5
        %v3196 = vmul.f32 %v3192, 0.044715
        %v3197 = vmul.f32 %v3196, %v3192
        %v3198 = vmul.f32 %v3197, %v3192
        %v3199 = vadd.f32 %v3192, %v3198
        %v3200 = vmul.f32 %v3199, 0.7978846
        %v3201 = vtanh.pop %v3200
        %v3202 = vadd.f32 %v3201, 1.0
        %v3203 = vmul.f32 %v3195, %v3202
        %s3204 = scalar_lea.vmem %s14, 64
        %v3205 = vld [vmem:[%s3204] sm:$0xff]
        %v3206 = vld [vmem:[%s3204 + $0x8] sm:$0xff]
        %v3207 = vld [vmem:[%s3204 + $0x10] sm:$0xff]
        %v3208 = vld [vmem:[%s3204 + $0x18] sm:$0xff]
        %v3209 = vld [vmem:[%s3204 + $0x20] sm:$0xff]
        %v3210 = vld [vmem:[%s3204 + $0x28] sm:$0xff]
        %v3211 = vld [vmem:[%s3204 + $0x30] sm:$0xff]
        %v3212 = vld [vmem:[%s3204 + $0x38] sm:$0xff]
        %v3214 = vsel %vm608, %v3203, 0
        %3216 = vmatprep.subr.mxu0 0.0
        %3217 = vmatpush1.msra.mxu0 %v3205
        %3218 = vmatprep.subr.mxu0 0.0
        %3219 = vmatpush1.msra.mxu0 %v3206
        %3220 = vmatprep.subr.mxu0 0.0
        %3221 = vmatpush1.msra.mxu0 %v3207
        %3222 = vmatprep.subr.mxu0 0.0
        %3223 = vmatpush1.msra.mxu0 %v3208
        %3224 = vmatprep.subr.mxu0 0.0
        %3225 = vmatpush1.msra.mxu0 %v3209
        %3226 = vmatprep.subr.mxu0 0.0
        %3227 = vmatpush1.msra.mxu0 %v3210
        %3228 = vmatprep.subr.mxu0 0.0
        %3229 = vmatpush1.msra.mxu0 %v3211
        %3230 = vmatprep.subr.mxu0 0.0
        %3231 = vmatpush1.msra.mxu0 %v3212
        %3232 = vmatprep.subr.mxu0 0.0
        %3233 = vmatpush1.msra.mxu0 0.0
        %3234 = vmatprep.subr.mxu0 0.0
        %3235 = vmatpush1.msra.mxu0 0.0
        %3236 = vmatprep.subr.mxu0 0.0
        %3237 = vmatpush1.msra.mxu0 0.0
        %3238 = vmatprep.subr.mxu0 0.0
        %3239 = vmatpush1.msra.mxu0 0.0
        %3240 = vmatprep.subr.mxu0 0.0
        %3241 = vmatpush1.msra.mxu0 0.0
        %3242 = vmatprep.subr.mxu0 0.0
        %3243 = vmatpush1.msra.mxu0 0.0
        %3244 = vmatprep.subr.mxu0 0.0
        %3245 = vmatpush1.msra.mxu0 0.0
        %3246 = vmatprep.subr.mxu0 0.0
        %3247 = vmatpush1.msra.mxu0 0.0
        %3248 = vmatprep.subr.mxu0 0.0
        %3249 = vmatpush1.msra.mxu0 0.0
        %3250 = vmatprep.subr.mxu0 0.0
        %3251 = vmatpush1.msra.mxu0 0.0
        %3252 = vmatprep.subr.mxu0 0.0
        %3253 = vmatpush1.msra.mxu0 0.0
        %3254 = vmatprep.subr.mxu0 0.0
        %3255 = vmatpush1.msra.mxu0 0.0
        %3256 = vmatprep.subr.mxu0 0.0
        %3257 = vmatpush1.msra.mxu0 0.0
        %3258 = vmatprep.subr.mxu0 0.0
        %3259 = vmatpush1.msra.mxu0 0.0
        %3260 = vmatprep.subr.mxu0 0.0
        %3261 = vmatpush1.msra.mxu0 0.0
        %3262 = vmatprep.subr.mxu0 0.0
        %3263 = vmatpush1.msra.mxu0 0.0
        %3264 = vmatprep.subr.mxu0 0.0
        %3265 = vmatpush1.msra.mxu0 0.0
        %3266 = vmatprep.subr.mxu0 0.0
        %3267 = vmatpush1.msra.mxu0 0.0
        %3268 = vmatprep.subr.mxu0 0.0
        %3269 = vmatpush1.msra.mxu0 0.0
        %3270 = vmatprep.subr.mxu0 0.0
        %3271 = vmatpush1.msra.mxu0 0.0
        %3272 = vmatprep.subr.mxu0 0.0
        %3273 = vmatpush1.msra.mxu0 0.0
        %3274 = vmatprep.subr.mxu0 0.0
        %3275 = vmatpush1.msra.mxu0 0.0
        %3276 = vmatprep.subr.mxu0 0.0
        %3277 = vmatpush1.msra.mxu0 0.0
        %3278 = vmatprep.subr.mxu0 0.0
        %3279 = vmatpush1.msra.mxu0 0.0
        %3280 = vmatprep.mubr.f32.mxu0 0.0
        %3281 = vmatmul.mubr.f32.gmra.mrb[0].mxu0 %v3214
        %v3282 = vpop.f32.mrb[0].mxu0
        %v3283 = vadd.f32 0.0, %v3282
        %v3284 = vpop.f32.mrb[0].mxu0
        %3285 = vdwg.mxu0
        %v3286 = vadd.f32 %v3077, %v3283
        %s3287 = scalar_lea.vmem %s15, 1
        %v3288 = vld [vmem:[%s3287] sm:$0x1]
        %v3290 = vlaneseq
        %v3291 = vshrl.u32 %v3290, 7
        %v3292 = vsub.s32 0, %v3291
        %v3293 = vrot.slane %v3288, %v3292
        %v3295 = vadd.f32 %v3286, %v3293
        %v3296 = vld [vmem:[%s16] sm:$0x1]
        %v3297 = vld [vmem:[%s17] sm:$0x1]
        %v3298 = vsel %vm685, %v3295, 0.0
        %3299 = vadd.xlane.f32.xlu0 %v3298
        %v3300 = vpop.xlane.xlu0 %3299
        %v3301 = vmul.f32 %v3300, %v689
        %v3302 = vsub.f32 %v3295, %v3301
        %v3303 = vmul.f32 %v3302, %v3302
        %v3304 = vsel %vm685, %v3303, 0.0
        %3305 = vadd.xlane.f32.xlu0 %v3304
        %v3306 = vpop.xlane.xlu0 %3305
        %v3307 = vmul.f32 %v3306, %v689
        %v3308 = vadd.f32 %v3307, 1e-06
        %v3309 = vrsqrt.pop %v3308
        %v3310 = vmul.f32 %v3302, %v3309
        %v3312 = vlaneseq
        %v3313 = vshrl.u32 %v3312, 7
        %v3314 = vsub.s32 0, %v3313
        %v3315 = vrot.slane %v3296, %v3314
        %v3317 = vmul.f32 %v3310, %v3315
        %v3319 = vlaneseq
        %v3320 = vshrl.u32 %v3319, 7
        %v3321 = vsub.s32 0, %v3320
        %v3322 = vrot.slane %v3297, %v3321
        %v3324 = vadd.f32 %v3317, %v3322
        %3325 = vst.msk [vmem:[%s568] sm:$0xf] %vm685, %v3324
        %s3326 = sand.u32 %s423, 1
        %s3327 = scalar_lea.sflag [#allocation3], %s3326
        %s3328 = sand.u32 %s423, 1
        %s3329 = smul.addr %s3328, 4
        %s3330 = scalar_lea.vmem [#allocation2], %s3329
        // Predicated region
        $region93: #{vision_encoder.1} parent=91 // pred_check
          %p3331 = pneg %p433
        $region94: #{vision_encoder.1} parent=91 // pred_check_branch
          %3333 = sbr.rel (%p3331) target = $region96
        $region95: #{vision_encoder.1} parent=91 // pred_region
          %s3335 = ssub.s32 64, 64
          %3336 = vsyncadd %s3327, %s3335
          %s3337 = smul.addr %s32, 64
          %s3338 = scalar_lea.hbm %s18, %s3337
          %s3340 = sshll.u32 %s3330, 4
          %s3341 = int_to_ptr.vmem [resolvable:$true] %s3340
          %3343 = dma.vmem_to_hbm [thread:$0]  %s3341, 64, %s3338, %s3327
        $region96: #{vision_encoder.1} parent=91 // pred_fallthru
          _
      $region92: #{vision_encoder.1} parent=5 // pred_fallthru
        _
      %p3344 = scmp.le.s32.totalorder 2, %s27
      // Predicated region
      $region97: #{vision_encoder.1} parent=5 // pred_check
        %p3345 = pneg %p3344
      $region98: #{vision_encoder.1} parent=5 // pred_check_branch
        %3347 = sbr.rel (%p3345) target = $region100
      $region99: #{vision_encoder.1} parent=5 // pred_region
        %s3348 = ssub.s32 %s27, 2
        // Predicated region
        $region101: #{vision_encoder.1} parent=99 // pred_check
          %p3349 = pneg %p439
        $region102: #{vision_encoder.1} parent=99 // pred_check_branch
          %3351 = sbr.rel (%p3349) target = $region104
        $region103: #{vision_encoder.1} parent=99 // pred_region
          %s3352 = sand.u32 %s424, 1
          %s3353 = scalar_lea.sflag [#allocation3], %s3352
          %s3354 = sand.u32 %s424, 1
          %s3355 = smul.addr %s3354, 4
          %s3356 = scalar_lea.vmem [#allocation2], %s3355
          %3357 = dma.done %s3353, 64
        $region104: #{vision_encoder.1} parent=99 // pred_fallthru
          _
      $region100: #{vision_encoder.1} parent=5 // pred_fallthru
        _
    $region6: #{vision_encoder.1} parent=1 // loop_footer
      %s31 = sadd.s32 1, %s27
    $region7: #{vision_encoder.1} parent=1 // loop_footer_branch
      %26 = sbr.rel target = $region3
    $region8: #{vision_encoder.1} parent=1 // loop_exit
      _
    %3358 = vsyncpa [#allocation3], 1
    %s3359 = scalar_lea.sflag [#allocation3], 1
    %3360 = vsyncpa %s3359, 1

</llo_original>
